<compile_context>
chip_gen: v7x
topology: tpu7x:2x2x1
jax: 0.10.0
libtpu: 0.0.40
codegen_flags: <defaults>
</compile_context>

<pallas_src>
import functools

import jax
import jax.numpy as jnp
from jax.experimental import pallas as pl
from jax.experimental.pallas import tpu as pltpu


# ---------------------------------------------------------------------------
# Chip-generation-aware tiling configuration
# ---------------------------------------------------------------------------
def _chip_config():
    vmem_bytes = None
    try:
        info = pltpu.get_tpu_info()
        vmem_bytes = getattr(info, "vmem_capacity_bytes", None)
        if vmem_bytes is not None:
            vmem_bytes = int(vmem_bytes)
    except Exception:
        vmem_bytes = None

    kind = ""
    try:
        kind = jax.devices()[0].device_kind.lower()
    except Exception:
        kind = ""

    # Is VMEM "small" (64 MiB class, e.g. v7x) or "big" (128 MiB class)?
    if vmem_bytes is not None:
        small_vmem = vmem_bytes < (100 * 1024 * 1024)
    elif ("v7" in kind) or ("7x" in kind):
        small_vmem = True
    elif any(s in kind for s in ("v5 lite", "v5e", "v6")):
        small_vmem = False
    else:
        small_vmem = None  # unknown -> conservative

    # Single TensorCore chips don't benefit from forcing >=2 N blocks.
    single_core = any(s in kind for s in ("v5 lite", "v5e", "v6"))

    if small_vmem is False:
        # v5e / v6e: 128 MiB VMEM.  16 MiB weight tiles, 3-deep buffered.
        return dict(tk_cap=4096, tn_cap=2048, weight_buffers=3,
                    vmem_limit=100 * 1024 * 1024,
                    min_n_blocks=1 if single_core else 2)
    if small_vmem is True:
        # v7x: 64 MiB VMEM, 2 TensorCores.  8 MiB weight tiles, 3-deep = 24 MiB.
        return dict(tk_cap=2048, tn_cap=2048, weight_buffers=3,
                    vmem_limit=48 * 1024 * 1024, min_n_blocks=2)
    # Unknown chip: settings that are safe everywhere.
    return dict(tk_cap=2048, tn_cap=1024, weight_buffers=3,
                vmem_limit=48 * 1024 * 1024, min_n_blocks=2)


_CFG = _chip_config()


def _pick_tile(dim, cap):
    """Largest multiple-of-128 tile <= cap that divides dim.

    Falls back to the full extent when dim is not a multiple of 128 (a block
    equal to the full array dim is always legal), avoiding the degenerate
    tile-size-0 case flagged in the review.
    """
    if dim <= cap:
        return dim
    if dim % 128 != 0:
        return dim
    t = cap - (cap % 128)
    while t >= 128 and dim % t != 0:
        t -= 128
    return t if t >= 128 else dim


def _pick_tn(n, cap, min_blocks):
    """Output tile: as large as possible, optionally forcing >=min_blocks."""
    if min_blocks > 1 and n > 128:
        cap = min(cap, max(128, n // min_blocks))
    return _pick_tile(n, cap)


# ---------------------------------------------------------------------------
# Fused Linear (+ bias + activation) kernel: y = act(x @ W + b)
# grid = (N // tn, K // tk); K axis is the (arbitrary) reduction axis.
# ---------------------------------------------------------------------------
def _linear_kernel(x_ref, w_ref, b_ref, o_ref, acc_ref, *, activation):
    k = pl.program_id(1)

    @pl.when(k == 0)
    def _():
        acc_ref[...] = jnp.zeros_like(acc_ref)

    acc_ref[...] += jnp.dot(
        x_ref[...].astype(jnp.bfloat16), w_ref[...],
        preferred_element_type=jnp.float32)

    @pl.when(k == pl.num_programs(1) - 1)
    def _():
        y = acc_ref[...] + b_ref[...]  # (M, tn) + (1, tn) broadcast, f32
        if activation == "relu":
            y = jnp.maximum(y, 0.0)
        elif activation == "sigmoid":
            # sigmoid(y) = 0.5*(tanh(0.5*y)+1): tanh uses the EUP slot and the
            # result is exactly within [0, 1].
            y = 0.5 * (jnp.tanh(0.5 * y) + 1.0)
        o_ref[...] = y.astype(o_ref.dtype)


def linear(x, w, b2d, activation=None, *, out_dtype=jnp.float32):
    """y = act(x @ w + b) with x:(M,K), w:(K,N) bf16-streamed, b2d:(1,N) f32."""
    M, K = x.shape
    K2, N = w.shape
    assert K == K2 and b2d.shape == (1, N)

    tn = _pick_tn(N, _CFG["tn_cap"], _CFG["min_n_blocks"])
    tk = _pick_tile(K, _CFG["tk_cap"])
    assert N % tn == 0 and K % tk == 0

    if w.dtype != jnp.bfloat16:
        w = w.astype(jnp.bfloat16)

    # 3-deep weight buffering only when the layer actually has that many
    # weight blocks (also keeps the tiny test shapes on the default path).
    n_weight_blocks = (N // tn) * (K // tk)
    if _CFG["weight_buffers"] > 2 and n_weight_blocks >= _CFG["weight_buffers"]:
        w_spec = pl.BlockSpec((tk, tn), lambda j, k: (k, j),
                              pipeline_mode=pl.Buffered(_CFG["weight_buffers"]))
    else:
        w_spec = pl.BlockSpec((tk, tn), lambda j, k: (k, j))

    cost = pl.CostEstimate(
        flops=2 * M * N * K,
        transcendentals=(M * N if activation == "sigmoid" else 0),
        bytes_accessed=(M * K * x.dtype.itemsize + K * N * 2 + N * 4
                        + M * N * jnp.dtype(out_dtype).itemsize),
    )

    kernel = functools.partial(_linear_kernel, activation=activation)
    return pl.pallas_call(
        kernel,
        out_shape=jax.ShapeDtypeStruct((M, N), out_dtype),
        grid_spec=pltpu.PrefetchScalarGridSpec(
            num_scalar_prefetch=0,
            grid=(N // tn, K // tk),
            in_specs=[
                pl.BlockSpec((M, tk), lambda j, k: (0, k)),
                w_spec,
                pl.BlockSpec((1, tn), lambda j, k: (0, j)),
            ],
            out_specs=pl.BlockSpec((M, tn), lambda j, k: (0, j)),
            scratch_shapes=[pltpu.VMEM((M, tn), jnp.float32)],
        ),
        compiler_params=pltpu.CompilerParams(
            dimension_semantics=("parallel", "arbitrary"),
            vmem_limit_bytes=_CFG["vmem_limit"],
        ),
        cost_estimate=cost,
    )(x, w, b2d)


# ---------------------------------------------------------------------------
# Fused latent head + first decoder layer, single kernel:
#   zp     = h @ Wz + bz            (Wz is the fused (K, 2L) mu|logvar weight)
#   mu, lv = zp[:, :L], zp[:, L:]
#   z      = mu + eps * exp(0.5*lv)
#   h3     = relu(z @ Wd0 + bd0)    (first decoder Linear, weight resident)
# grid = (K // tk,) reduction only; outputs (h3, mu, logvar).
# ---------------------------------------------------------------------------
def _latent_dec0_kernel(h_ref, wz_ref, bz_ref, eps_ref, wd_ref, bd_ref,
                        h3_ref, mu_ref, lv_ref, acc_ref, *, latent_dim):
    k = pl.program_id(0)

    @pl.when(k == 0)
    def _():
        acc_ref[...] = jnp.zeros_like(acc_ref)

    acc_ref[...] += jnp.dot(
        h_ref[...].astype(jnp.bfloat16), wz_ref[...],
        preferred_element_type=jnp.float32)

    @pl.when(k == pl.num_programs(0) - 1)
    def _():
        zp = acc_ref[...] + bz_ref[...]
        mu = zp[:, :latent_dim]          # static slice at a 128-lane boundary
        logvar = zp[:, latent_dim:]
        z = mu + eps_ref[...] * jnp.exp(0.5 * logvar)
        mu_ref[...] = mu.astype(mu_ref.dtype)
        lv_ref[...] = logvar.astype(lv_ref.dtype)
        h3 = jnp.dot(z.astype(jnp.bfloat16), wd_ref[...],
                     preferred_element_type=jnp.float32) + bd_ref[...]
        h3_ref[...] = jnp.maximum(h3, 0.0).astype(h3_ref.dtype)


def latent_and_decode0(h, wz, bz, eps, wd0, bd0, *, out_dtype=jnp.bfloat16):
    M, K = h.shape
    K2, L2 = wz.shape
    L = L2 // 2
    Ld, N3 = wd0.shape
    assert K == K2 and Ld == L and eps.shape == (M, L)
    assert bz.shape == (1, L2) and bd0.shape == (1, N3)

    tk = _pick_tile(K, _CFG["tk_cap"])
    assert K % tk == 0

    if wz.dtype != jnp.bfloat16:
        wz = wz.astype(jnp.bfloat16)
    if wd0.dtype != jnp.bfloat16:
        wd0 = wd0.astype(jnp.bfloat16)
    eps = eps.astype(jnp.float32)

    cost = pl.CostEstimate(
        flops=2 * M * L2 * K + 2 * M * L * N3,
        transcendentals=M * L,
        bytes_accessed=(M * K * h.dtype.itemsize + K * L2 * 2 + L * N3 * 2
                        + (L2 + N3) * 4 + M * L * 4
                        + M * N3 * jnp.dtype(out_dtype).itemsize
                        + 2 * M * L * 4),
    )

    kernel = functools.partial(_latent_dec0_kernel, latent_dim=L)
    out_shape = (
        jax.ShapeDtypeStruct((M, N3), out_dtype),    # h3 (decoder hidden 0)
        jax.ShapeDtypeStruct((M, L), jnp.float32),   # mu
        jax.ShapeDtypeStruct((M, L), jnp.float32),   # logvar
    )
    return pl.pallas_call(
        kernel,
        out_shape=out_shape,
        grid_spec=pltpu.PrefetchScalarGridSpec(
            num_scalar_prefetch=0,
            grid=(K // tk,),
            in_specs=[
                pl.BlockSpec((M, tk), lambda k: (0, k)),
                pl.BlockSpec((tk, L2), lambda k: (k, 0)),
                pl.BlockSpec((1, L2), lambda k: (0, 0)),
                pl.BlockSpec((M, L), lambda k: (0, 0)),
                pl.BlockSpec((L, N3), lambda k: (0, 0)),   # resident (tiny)
                pl.BlockSpec((1, N3), lambda k: (0, 0)),
            ],
            out_specs=[
                pl.BlockSpec((M, N3), lambda k: (0, 0)),
                pl.BlockSpec((M, L), lambda k: (0, 0)),
                pl.BlockSpec((M, L), lambda k: (0, 0)),
            ],
            scratch_shapes=[pltpu.VMEM((M, L2), jnp.float32)],
        ),
        compiler_params=pltpu.CompilerParams(
            dimension_semantics=("arbitrary",),
            vmem_limit_bytes=_CFG["vmem_limit"],
        ),
        cost_estimate=cost,
    )(h, wz, bz, eps, wd0, bd0)


# ---------------------------------------------------------------------------
# VAE parameters + forward
# ---------------------------------------------------------------------------
def init_vae_params(key, input_dim, h1, h2, latent_dim):
    """Weights stored (in, out) in bf16 for streaming; biases (1, out) f32."""

    def make(k, din, dout):
        scale = 1.0 / jnp.sqrt(jnp.float32(din))
        w = jax.random.normal(k, (din, dout), jnp.float32) * scale
        return w.astype(jnp.bfloat16), jnp.zeros((1, dout), jnp.float32)

    keys = jax.random.split(key, 6)
    enc = [make(keys[0], input_dim, h1), make(keys[1], h1, h2)]
    # Third encoder Linear(h2, 2*latent): kept fused; columns [:L] are mu and
    # [L:] are logvar, exactly matching the PyTorch slicing of its output.
    latent = make(keys[2], h2, 2 * latent_dim)
    dec = [make(keys[3], latent_dim, h2), make(keys[4], h2, h1),
           make(keys[5], h1, input_dim)]
    return {"encoder": enc, "latent": latent, "decoder": dec}


def vae_forward(params, x, eps):
    # Encoder: Linear -> ReLU -> Linear -> ReLU   (bf16 activations emitted)
    (w0, b0), (w1, b1) = params["encoder"]
    h = linear(x, w0, b0, activation="relu", out_dtype=jnp.bfloat16)
    h = linear(h, w1, b1, activation="relu", out_dtype=jnp.bfloat16)

    # Encoder Linear(h2, 2L) + reparameterize + first decoder Linear+ReLU,
    # all in one kernel.
    wz, bz = params["latent"]
    (wd0, bd0), (w4, b4), (w5, b5) = params["decoder"]
    h, mu, logvar = latent_and_decode0(h, wz, bz, eps, wd0, bd0,
                                       out_dtype=jnp.bfloat16)

    # Remaining decoder: Linear -> ReLU -> Linear -> Sigmoid
    h = linear(h, w4, b4, activation="relu", out_dtype=jnp.bfloat16)
    recon = linear(h, w5, b5, activation="sigmoid", out_dtype=jnp.float32)
    return recon, mu, logvar


if __name__ == "__main__":
    # Small shapes consistent with the module's MLP structure
    # (original: input_dim=20480, 4096, 1024, latent_dim=512).
    BATCH = 8
    INPUT_DIM = 1024
    H1 = 512
    H2 = 256
    LATENT_DIM = 128

    key = jax.random.PRNGKey(0)
    k_params, k_x, k_eps = jax.random.split(key, 3)

    params = init_vae_params(k_params, INPUT_DIM, H1, H2, LATENT_DIM)
    x = jax.random.normal(k_x, (BATCH, INPUT_DIM), jnp.float32)
    # eps ~ randn_like(std): sampled in plain JAX (deterministic key); the
    # elementwise reparameterization runs fused inside the latent kernel.
    eps = jax.random.normal(k_eps, (BATCH, LATENT_DIM), jnp.float32)

    fwd = jax.jit(vae_forward)
    recon, mu, logvar = fwd(params, x, eps)
    jax.block_until_ready((recon, mu, logvar))

    assert recon.shape == (BATCH, INPUT_DIM) and recon.dtype == jnp.float32
    assert mu.shape == (BATCH, LATENT_DIM)
    assert logvar.shape == (BATCH, LATENT_DIM)
    assert bool(jnp.all(jnp.isfinite(recon)))
    assert bool(jnp.all((recon >= 0.0) & (recon <= 1.0)))
    assert bool(jnp.all(jnp.isfinite(mu))) and bool(jnp.all(jnp.isfinite(logvar)))

    print("KERNEL_OK")
</pallas_src>

<mosaic_0001>
module attributes {stable_mosaic.version = 11 : i64} {
  func.func @_linear_kernel(%arg0: i32, %arg1: i32, %arg2: memref<8x1024xf32, #tpu.memory_space<vmem>>, %arg3: memref<1024x256xbf16, #tpu.memory_space<vmem>>, %arg4: memref<1x256xf32, #tpu.memory_space<vmem>>, %arg5: memref<8x256xbf16, #tpu.memory_space<vmem>>, %arg6: memref<8x256xf32, #tpu.memory_space<vmem>>) attributes {dimension_semantics = [#tpu.dimension_semantics<parallel>, #tpu.dimension_semantics<arbitrary>], iteration_bounds = array<i64: 2, 1>, scalar_prefetch = 0 : i64, scratch_operands = 1 : i64, tpu.core_type = #tpu.core_type<tc>, window_params = [{transform_indices = @transform_0, window_bounds = array<i64: 8, 1024>}, {transform_indices = @transform_1, window_bounds = array<i64: 1024, 256>}, {transform_indices = @transform_2, window_bounds = array<i64: 1, 256>}, {transform_indices = @transform_3, window_bounds = array<i64: 8, 256>}]} {
    %c0_i32 = arith.constant 0 : i32
    %0 = arith.cmpi eq, %arg1, %c0_i32 : i32
    %1 = arith.extui %0 : i1 to i32
    %c0_i32_0 = arith.constant 0 : i32
    %2 = arith.cmpi ne, %1, %c0_i32_0 : i32
    scf.if %2 {
      %cst_10 = arith.constant 0.000000e+00 : f32
      %13 = vector.broadcast %cst_10 : f32 to vector<8x256xf32>
      %c0_11 = arith.constant 0 : index
      %c0_12 = arith.constant 0 : index
      %14 = vector.load %arg6[%c0_11, %c0_12] : memref<8x256xf32, #tpu.memory_space<vmem>>, vector<8x256xf32>
      tpu.vector_store %arg6[%c0_11, %c0_12], %13 {strides = array<i32>} : memref<8x256xf32, #tpu.memory_space<vmem>>, vector<8x256xf32>,
    } else {
    }
    %c0 = arith.constant 0 : index
    %c0_1 = arith.constant 0 : index
    %3 = vector.load %arg6[%c0, %c0_1] : memref<8x256xf32, #tpu.memory_space<vmem>>, vector<8x256xf32>
    %c0_2 = arith.constant 0 : index
    %c0_3 = arith.constant 0 : index
    %4 = vector.load %arg2[%c0_2, %c0_3] : memref<8x1024xf32, #tpu.memory_space<vmem>>, vector<8x1024xf32>
    %5 = arith.truncf %4 : vector<8x1024xf32> to vector<8x1024xbf16>
    %c0_4 = arith.constant 0 : index
    %c0_5 = arith.constant 0 : index
    %6 = vector.load %arg3[%c0_4, %c0_5] : memref<1024x256xbf16, #tpu.memory_space<vmem>>, vector<1024x256xbf16>
    %cst = arith.constant dense<0.000000e+00> : vector<8x256xf32>
    %7 = tpu.matmul %5, %6, %cst {dimension_numbers = #tpu.dot_dimension_numbers<[1], [0], [0], [1], [0, 0, 1, 1], [], []>} : vector<8x1024xbf16>, vector<1024x256xbf16>, vector<8x256xf32> -> vector<8x256xf32>
    %8 = arith.addf %3, %7 : vector<8x256xf32>
    %c0_6 = arith.constant 0 : index
    %c0_7 = arith.constant 0 : index
    %9 = vector.load %arg6[%c0_6, %c0_7] : memref<8x256xf32, #tpu.memory_space<vmem>>, vector<8x256xf32>
    tpu.vector_store %arg6[%c0_6, %c0_7], %8 {strides = array<i32>} : memref<8x256xf32, #tpu.memory_space<vmem>>, vector<8x256xf32>,
    %c0_i32_8 = arith.constant 0 : i32
    %10 = arith.cmpi eq, %arg1, %c0_i32_8 : i32
    %11 = arith.extui %10 : i1 to i32
    %c0_i32_9 = arith.constant 0 : i32
    %12 = arith.cmpi ne, %11, %c0_i32_9 : i32
    scf.if %12 {
      %c0_10 = arith.constant 0 : index
      %c0_11 = arith.constant 0 : index
      %13 = vector.load %arg6[%c0_10, %c0_11] : memref<8x256xf32, #tpu.memory_space<vmem>>, vector<8x256xf32>
      %c0_12 = arith.constant 0 : index
      %c0_13 = arith.constant 0 : index
      %14 = vector.load %arg4[%c0_12, %c0_13] : memref<1x256xf32, #tpu.memory_space<vmem>>, vector<1x256xf32>
      %15 = vector.broadcast %14 : vector<1x256xf32> to vector<8x256xf32>
      %16 = arith.addf %13, %15 : vector<8x256xf32>
      %cst_14 = arith.constant 0.000000e+00 : f32
      %17 = vector.broadcast %cst_14 : f32 to vector<8x256xf32>
      %18 = arith.maximumf %16, %17 : vector<8x256xf32>
      %19 = arith.truncf %18 : vector<8x256xf32> to vector<8x256xbf16>
      %c0_15 = arith.constant 0 : index
      %c0_16 = arith.constant 0 : index
      %20 = vector.load %arg5[%c0_15, %c0_16] : memref<8x256xbf16, #tpu.memory_space<vmem>>, vector<8x256xbf16>
      tpu.vector_store %arg5[%c0_15, %c0_16], %19 {strides = array<i32>} : memref<8x256xbf16, #tpu.memory_space<vmem>>, vector<8x256xbf16>,
    } else {
    }
    return
  }
  func.func @transform_0(%arg0: i32, %arg1: i32) -> (i32, i32) {
    %c0_i32 = arith.constant 0 : i32
    %c0_i32_0 = arith.constant 0 : i32
    return %c0_i32, %arg1 : i32, i32
  }
  func.func @transform_1(%arg0: i32, %arg1: i32) -> (i32, i32) {
    %c0_i32 = arith.constant 0 : i32
    return %arg1, %arg0 : i32, i32
  }
  func.func @transform_2(%arg0: i32, %arg1: i32) -> (i32, i32) {
    %c0_i32 = arith.constant 0 : i32
    %c0_i32_0 = arith.constant 0 : i32
    return %c0_i32, %arg0 : i32, i32
  }
  func.func @transform_3(%arg0: i32, %arg1: i32) -> (i32, i32) {
    %c0_i32 = arith.constant 0 : i32
    %c0_i32_0 = arith.constant 0 : i32
    return %c0_i32, %arg0 : i32, i32
  }
}

module attributes {stable_mosaic.version = 11 : i64} {
  func.func @_latent_dec0_kernel(%arg0: i32, %arg1: memref<8x256xbf16, #tpu.memory_space<vmem>>, %arg2: memref<256x256xbf16, #tpu.memory_space<vmem>>, %arg3: memref<1x256xf32, #tpu.memory_space<vmem>>, %arg4: memref<8x128xf32, #tpu.memory_space<vmem>>, %arg5: memref<128x256xbf16, #tpu.memory_space<vmem>>, %arg6: memref<1x256xf32, #tpu.memory_space<vmem>>, %arg7: memref<8x256xbf16, #tpu.memory_space<vmem>>, %arg8: memref<8x128xf32, #tpu.memory_space<vmem>>, %arg9: memref<8x128xf32, #tpu.memory_space<vmem>>, %arg10: memref<8x256xf32, #tpu.memory_space<vmem>>) attributes {dimension_semantics = [#tpu.dimension_semantics<arbitrary>], iteration_bounds = array<i64: 1>, scalar_prefetch = 0 : i64, scratch_operands = 1 : i64, tpu.core_type = #tpu.core_type<tc>, window_params = [{transform_indices = @transform_0, window_bounds = array<i64: 8, 256>}, {transform_indices = @transform_1, window_bounds = array<i64: 256, 256>}, {pipeline_mode = #tpu.pipeline_mode<synchronous>, transform_indices = @transform_2, window_bounds = array<i64: 1, 256>}, {pipeline_mode = #tpu.pipeline_mode<synchronous>, transform_indices = @transform_3, window_bounds = array<i64: 8, 128>}, {pipeline_mode = #tpu.pipeline_mode<synchronous>, transform_indices = @transform_4, window_bounds = array<i64: 128, 256>}, {pipeline_mode = #tpu.pipeline_mode<synchronous>, transform_indices = @transform_5, window_bounds = array<i64: 1, 256>}, {pipeline_mode = #tpu.pipeline_mode<synchronous>, transform_indices = @transform_6, window_bounds = array<i64: 8, 256>}, {pipeline_mode = #tpu.pipeline_mode<synchronous>, transform_indices = @transform_7, window_bounds = array<i64: 8, 128>}, {pipeline_mode = #tpu.pipeline_mode<synchronous>, transform_indices = @transform_8, window_bounds = array<i64: 8, 128>}]} {
    %c0_i32 = arith.constant 0 : i32
    %0 = arith.cmpi eq, %arg0, %c0_i32 : i32
    %1 = arith.extui %0 : i1 to i32
    %c0_i32_0 = arith.constant 0 : i32
    %2 = arith.cmpi ne, %1, %c0_i32_0 : i32
    scf.if %2 {
      %cst_10 = arith.constant 0.000000e+00 : f32
      %12 = vector.broadcast %cst_10 : f32 to vector<8x256xf32>
      %c0_11 = arith.constant 0 : index
      %c0_12 = arith.constant 0 : index
      %13 = vector.load %arg10[%c0_11, %c0_12] : memref<8x256xf32, #tpu.memory_space<vmem>>, vector<8x256xf32>
      tpu.vector_store %arg10[%c0_11, %c0_12], %12 {strides = array<i32>} : memref<8x256xf32, #tpu.memory_space<vmem>>, vector<8x256xf32>,
    } else {
    }
    %c0 = arith.constant 0 : index
    %c0_1 = arith.constant 0 : index
    %3 = vector.load %arg10[%c0, %c0_1] : memref<8x256xf32, #tpu.memory_space<vmem>>, vector<8x256xf32>
    %c0_2 = arith.constant 0 : index
    %c0_3 = arith.constant 0 : index
    %4 = vector.load %arg1[%c0_2, %c0_3] : memref<8x256xbf16, #tpu.memory_space<vmem>>, vector<8x256xbf16>
    %c0_4 = arith.constant 0 : index
    %c0_5 = arith.constant 0 : index
    %5 = vector.load %arg2[%c0_4, %c0_5] : memref<256x256xbf16, #tpu.memory_space<vmem>>, vector<256x256xbf16>
    %cst = arith.constant dense<0.000000e+00> : vector<8x256xf32>
    %6 = tpu.matmul %4, %5, %cst {dimension_numbers = #tpu.dot_dimension_numbers<[1], [0], [0], [1], [0, 0, 1, 1], [], []>} : vector<8x256xbf16>, vector<256x256xbf16>, vector<8x256xf32> -> vector<8x256xf32>
    %7 = arith.addf %3, %6 : vector<8x256xf32>
    %c0_6 = arith.constant 0 : index
    %c0_7 = arith.constant 0 : index
    %8 = vector.load %arg10[%c0_6, %c0_7] : memref<8x256xf32, #tpu.memory_space<vmem>>, vector<8x256xf32>
    tpu.vector_store %arg10[%c0_6, %c0_7], %7 {strides = array<i32>} : memref<8x256xf32, #tpu.memory_space<vmem>>, vector<8x256xf32>,
    %c0_i32_8 = arith.constant 0 : i32
    %9 = arith.cmpi eq, %arg0, %c0_i32_8 : i32
    %10 = arith.extui %9 : i1 to i32
    %c0_i32_9 = arith.constant 0 : i32
    %11 = arith.cmpi ne, %10, %c0_i32_9 : i32
    scf.if %11 {
      %c0_10 = arith.constant 0 : index
      %c0_11 = arith.constant 0 : index
      %12 = vector.load %arg10[%c0_10, %c0_11] : memref<8x256xf32, #tpu.memory_space<vmem>>, vector<8x256xf32>
      %c0_12 = arith.constant 0 : index
      %c0_13 = arith.constant 0 : index
      %13 = vector.load %arg3[%c0_12, %c0_13] : memref<1x256xf32, #tpu.memory_space<vmem>>, vector<1x256xf32>
      %14 = vector.broadcast %13 : vector<1x256xf32> to vector<8x256xf32>
      %15 = arith.addf %12, %14 : vector<8x256xf32>
      %16 = vector.extract_strided_slice %15 {offsets = [0, 0], sizes = [8, 128], strides = [1, 1]} : vector<8x256xf32> to vector<8x128xf32>
      %17 = vector.extract_strided_slice %15 {offsets = [0, 128], sizes = [8, 128], strides = [1, 1]} : vector<8x256xf32> to vector<8x128xf32>
      %c0_14 = arith.constant 0 : index
      %c0_15 = arith.constant 0 : index
      %18 = vector.load %arg4[%c0_14, %c0_15] : memref<8x128xf32, #tpu.memory_space<vmem>>, vector<8x128xf32>
      %cst_16 = arith.constant 5.000000e-01 : f32
      %19 = vector.broadcast %cst_16 : f32 to vector<8x128xf32>
      %20 = arith.mulf %19, %17 : vector<8x128xf32>
      %21 = math.exp %20 : vector<8x128xf32>
      %22 = arith.mulf %18, %21 : vector<8x128xf32>
      %23 = arith.addf %16, %22 : vector<8x128xf32>
      %c0_17 = arith.constant 0 : index
      %c0_18 = arith.constant 0 : index
      %24 = vector.load %arg8[%c0_17, %c0_18] : memref<8x128xf32, #tpu.memory_space<vmem>>, vector<8x128xf32>
      tpu.vector_store %arg8[%c0_17, %c0_18], %16 {strides = array<i32>} : memref<8x128xf32, #tpu.memory_space<vmem>>, vector<8x128xf32>,
      %c0_19 = arith.constant 0 : index
      %c0_20 = arith.constant 0 : index
      %25 = vector.load %arg9[%c0_19, %c0_20] : memref<8x128xf32, #tpu.memory_space<vmem>>, vector<8x128xf32>
      tpu.vector_store %arg9[%c0_19, %c0_20], %17 {strides = array<i32>} : memref<8x128xf32, #tpu.memory_space<vmem>>, vector<8x128xf32>,
      %26 = arith.truncf %23 : vector<8x128xf32> to vector<8x128xbf16>
      %c0_21 = arith.constant 0 : index
      %c0_22 = arith.constant 0 : index
      %27 = vector.load %arg5[%c0_21, %c0_22] : memref<128x256xbf16, #tpu.memory_space<vmem>>, vector<128x256xbf16>
      %cst_23 = arith.constant dense<0.000000e+00> : vector<8x256xf32>
      %28 = tpu.matmul %26, %27, %cst_23 {dimension_numbers = #tpu.dot_dimension_numbers<[1], [0], [0], [1], [0, 0, 1, 1], [], []>} : vector<8x128xbf16>, vector<128x256xbf16>, vector<8x256xf32> -> vector<8x256xf32>
      %c0_24 = arith.constant 0 : index
      %c0_25 = arith.constant 0 : index
      %29 = vector.load %arg6[%c0_24, %c0_25] : memref<1x256xf32, #tpu.memory_space<vmem>>, vector<1x256xf32>
      %30 = vector.broadcast %29 : vector<1x256xf32> to vector<8x256xf32>
      %31 = arith.addf %28, %30 : vector<8x256xf32>
      %cst_26 = arith.constant 0.000000e+00 : f32
      %32 = vector.broadcast %cst_26 : f32 to vector<8x256xf32>
      %33 = arith.maximumf %31, %32 : vector<8x256xf32>
      %34 = arith.truncf %33 : vector<8x256xf32> to vector<8x256xbf16>
      %c0_27 = arith.constant 0 : index
      %c0_28 = arith.constant 0 : index
      %35 = vector.load %arg7[%c0_27, %c0_28] : memref<8x256xbf16, #tpu.memory_space<vmem>>, vector<8x256xbf16>
      tpu.vector_store %arg7[%c0_27, %c0_28], %34 {strides = array<i32>} : memref<8x256xbf16, #tpu.memory_space<vmem>>, vector<8x256xbf16>,
    } else {
    }
    return
  }
  func.func @transform_0(%arg0: i32) -> (i32, i32) {
    %c0_i32 = arith.constant 0 : i32
    %c0_i32_0 = arith.constant 0 : i32
    return %c0_i32, %arg0 : i32, i32
  }
  func.func @transform_1(%arg0: i32) -> (i32, i32) {
    %c0_i32 = arith.constant 0 : i32
    %c0_i32_0 = arith.constant 0 : i32
    return %arg0, %c0_i32 : i32, i32
  }
  func.func @transform_2(%arg0: i32) -> (i32, i32) {
    %c0_i32 = arith.constant 0 : i32
    %c0_i32_0 = arith.constant 0 : i32
    %c0_i32_1 = arith.constant 0 : i32
    return %c0_i32, %c0_i32_0 : i32, i32
  }
  func.func @transform_3(%arg0: i32) -> (i32, i32) {
    %c0_i32 = arith.constant 0 : i32
    %c0_i32_0 = arith.constant 0 : i32
    %c0_i32_1 = arith.constant 0 : i32
    return %c0_i32, %c0_i32_0 : i32, i32
  }
  func.func @transform_4(%arg0: i32) -> (i32, i32) {
    %c0_i32 = arith.constant 0 : i32
    %c0_i32_0 = arith.constant 0 : i32
    %c0_i32_1 = arith.constant 0 : i32
    return %c0_i32, %c0_i32_0 : i32, i32
  }
  func.func @transform_5(%arg0: i32) -> (i32, i32) {
    %c0_i32 = arith.constant 0 : i32
    %c0_i32_0 = arith.constant 0 : i32
    %c0_i32_1 = arith.constant 0 : i32
    return %c0_i32, %c0_i32_0 : i32, i32
  }
  func.func @transform_6(%arg0: i32) -> (i32, i32) {
    %c0_i32 = arith.constant 0 : i32
    %c0_i32_0 = arith.constant 0 : i32
    %c0_i32_1 = arith.constant 0 : i32
    return %c0_i32, %c0_i32_0 : i32, i32
  }
  func.func @transform_7(%arg0: i32) -> (i32, i32) {
    %c0_i32 = arith.constant 0 : i32
    %c0_i32_0 = arith.constant 0 : i32
    %c0_i32_1 = arith.constant 0 : i32
    return %c0_i32, %c0_i32_0 : i32, i32
  }
  func.func @transform_8(%arg0: i32) -> (i32, i32) {
    %c0_i32 = arith.constant 0 : i32
    %c0_i32_0 = arith.constant 0 : i32
    %c0_i32_1 = arith.constant 0 : i32
    return %c0_i32, %c0_i32_0 : i32, i32
  }
}

module attributes {stable_mosaic.version = 11 : i64} {
  func.func @_linear_kernel(%arg0: i32, %arg1: i32, %arg2: memref<8x256xbf16, #tpu.memory_space<vmem>>, %arg3: memref<256x256xbf16, #tpu.memory_space<vmem>>, %arg4: memref<1x256xf32, #tpu.memory_space<vmem>>, %arg5: memref<8x256xbf16, #tpu.memory_space<vmem>>, %arg6: memref<8x256xf32, #tpu.memory_space<vmem>>) attributes {dimension_semantics = [#tpu.dimension_semantics<parallel>, #tpu.dimension_semantics<arbitrary>], iteration_bounds = array<i64: 2, 1>, scalar_prefetch = 0 : i64, scratch_operands = 1 : i64, tpu.core_type = #tpu.core_type<tc>, window_params = [{transform_indices = @transform_0, window_bounds = array<i64: 8, 256>}, {transform_indices = @transform_1, window_bounds = array<i64: 256, 256>}, {transform_indices = @transform_2, window_bounds = array<i64: 1, 256>}, {transform_indices = @transform_3, window_bounds = array<i64: 8, 256>}]} {
    %c0_i32 = arith.constant 0 : i32
    %0 = arith.cmpi eq, %arg1, %c0_i32 : i32
    %1 = arith.extui %0 : i1 to i32
    %c0_i32_0 = arith.constant 0 : i32
    %2 = arith.cmpi ne, %1, %c0_i32_0 : i32
    scf.if %2 {
      %cst_10 = arith.constant 0.000000e+00 : f32
      %12 = vector.broadcast %cst_10 : f32 to vector<8x256xf32>
      %c0_11 = arith.constant 0 : index
      %c0_12 = arith.constant 0 : index
      %13 = vector.load %arg6[%c0_11, %c0_12] : memref<8x256xf32, #tpu.memory_space<vmem>>, vector<8x256xf32>
      tpu.vector_store %arg6[%c0_11, %c0_12], %12 {strides = array<i32>} : memref<8x256xf32, #tpu.memory_space<vmem>>, vector<8x256xf32>,
    } else {
    }
    %c0 = arith.constant 0 : index
    %c0_1 = arith.constant 0 : index
    %3 = vector.load %arg6[%c0, %c0_1] : memref<8x256xf32, #tpu.memory_space<vmem>>, vector<8x256xf32>
    %c0_2 = arith.constant 0 : index
    %c0_3 = arith.constant 0 : index
    %4 = vector.load %arg2[%c0_2, %c0_3] : memref<8x256xbf16, #tpu.memory_space<vmem>>, vector<8x256xbf16>
    %c0_4 = arith.constant 0 : index
    %c0_5 = arith.constant 0 : index
    %5 = vector.load %arg3[%c0_4, %c0_5] : memref<256x256xbf16, #tpu.memory_space<vmem>>, vector<256x256xbf16>
    %cst = arith.constant dense<0.000000e+00> : vector<8x256xf32>
    %6 = tpu.matmul %4, %5, %cst {dimension_numbers = #tpu.dot_dimension_numbers<[1], [0], [0], [1], [0, 0, 1, 1], [], []>} : vector<8x256xbf16>, vector<256x256xbf16>, vector<8x256xf32> -> vector<8x256xf32>
    %7 = arith.addf %3, %6 : vector<8x256xf32>
    %c0_6 = arith.constant 0 : index
    %c0_7 = arith.constant 0 : index
    %8 = vector.load %arg6[%c0_6, %c0_7] : memref<8x256xf32, #tpu.memory_space<vmem>>, vector<8x256xf32>
    tpu.vector_store %arg6[%c0_6, %c0_7], %7 {strides = array<i32>} : memref<8x256xf32, #tpu.memory_space<vmem>>, vector<8x256xf32>,
    %c0_i32_8 = arith.constant 0 : i32
    %9 = arith.cmpi eq, %arg1, %c0_i32_8 : i32
    %10 = arith.extui %9 : i1 to i32
    %c0_i32_9 = arith.constant 0 : i32
    %11 = arith.cmpi ne, %10, %c0_i32_9 : i32
    scf.if %11 {
      %c0_10 = arith.constant 0 : index
      %c0_11 = arith.constant 0 : index
      %12 = vector.load %arg6[%c0_10, %c0_11] : memref<8x256xf32, #tpu.memory_space<vmem>>, vector<8x256xf32>
      %c0_12 = arith.constant 0 : index
      %c0_13 = arith.constant 0 : index
      %13 = vector.load %arg4[%c0_12, %c0_13] : memref<1x256xf32, #tpu.memory_space<vmem>>, vector<1x256xf32>
      %14 = vector.broadcast %13 : vector<1x256xf32> to vector<8x256xf32>
      %15 = arith.addf %12, %14 : vector<8x256xf32>
      %cst_14 = arith.constant 0.000000e+00 : f32
      %16 = vector.broadcast %cst_14 : f32 to vector<8x256xf32>
      %17 = arith.maximumf %15, %16 : vector<8x256xf32>
      %18 = arith.truncf %17 : vector<8x256xf32> to vector<8x256xbf16>
      %c0_15 = arith.constant 0 : index
      %c0_16 = arith.constant 0 : index
      %19 = vector.load %arg5[%c0_15, %c0_16] : memref<8x256xbf16, #tpu.memory_space<vmem>>, vector<8x256xbf16>
      tpu.vector_store %arg5[%c0_15, %c0_16], %18 {strides = array<i32>} : memref<8x256xbf16, #tpu.memory_space<vmem>>, vector<8x256xbf16>,
    } else {
    }
    return
  }
  func.func @transform_0(%arg0: i32, %arg1: i32) -> (i32, i32) {
    %c0_i32 = arith.constant 0 : i32
    %c0_i32_0 = arith.constant 0 : i32
    return %c0_i32, %arg1 : i32, i32
  }
  func.func @transform_1(%arg0: i32, %arg1: i32) -> (i32, i32) {
    %c0_i32 = arith.constant 0 : i32
    return %arg1, %arg0 : i32, i32
  }
  func.func @transform_2(%arg0: i32, %arg1: i32) -> (i32, i32) {
    %c0_i32 = arith.constant 0 : i32
    %c0_i32_0 = arith.constant 0 : i32
    return %c0_i32, %arg0 : i32, i32
  }
  func.func @transform_3(%arg0: i32, %arg1: i32) -> (i32, i32) {
    %c0_i32 = arith.constant 0 : i32
    %c0_i32_0 = arith.constant 0 : i32
    return %c0_i32, %arg0 : i32, i32
  }
}

module attributes {stable_mosaic.version = 11 : i64} {
  func.func @_linear_kernel(%arg0: i32, %arg1: i32, %arg2: memref<8x512xbf16, #tpu.memory_space<vmem>>, %arg3: memref<512x128xbf16, #tpu.memory_space<vmem>>, %arg4: memref<1x128xf32, #tpu.memory_space<vmem>>, %arg5: memref<8x128xbf16, #tpu.memory_space<vmem>>, %arg6: memref<8x128xf32, #tpu.memory_space<vmem>>) attributes {dimension_semantics = [#tpu.dimension_semantics<parallel>, #tpu.dimension_semantics<arbitrary>], iteration_bounds = array<i64: 2, 1>, scalar_prefetch = 0 : i64, scratch_operands = 1 : i64, tpu.core_type = #tpu.core_type<tc>, window_params = [{transform_indices = @transform_0, window_bounds = array<i64: 8, 512>}, {transform_indices = @transform_1, window_bounds = array<i64: 512, 128>}, {transform_indices = @transform_2, window_bounds = array<i64: 1, 128>}, {transform_indices = @transform_3, window_bounds = array<i64: 8, 128>}]} {
    %c0_i32 = arith.constant 0 : i32
    %0 = arith.cmpi eq, %arg1, %c0_i32 : i32
    %1 = arith.extui %0 : i1 to i32
    %c0_i32_0 = arith.constant 0 : i32
    %2 = arith.cmpi ne, %1, %c0_i32_0 : i32
    scf.if %2 {
      %cst_10 = arith.constant 0.000000e+00 : f32
      %12 = vector.broadcast %cst_10 : f32 to vector<8x128xf32>
      %c0_11 = arith.constant 0 : index
      %c0_12 = arith.constant 0 : index
      %13 = vector.load %arg6[%c0_11, %c0_12] : memref<8x128xf32, #tpu.memory_space<vmem>>, vector<8x128xf32>
      tpu.vector_store %arg6[%c0_11, %c0_12], %12 {strides = array<i32>} : memref<8x128xf32, #tpu.memory_space<vmem>>, vector<8x128xf32>,
    } else {
    }
    %c0 = arith.constant 0 : index
    %c0_1 = arith.constant 0 : index
    %3 = vector.load %arg6[%c0, %c0_1] : memref<8x128xf32, #tpu.memory_space<vmem>>, vector<8x128xf32>
    %c0_2 = arith.constant 0 : index
    %c0_3 = arith.constant 0 : index
    %4 = vector.load %arg2[%c0_2, %c0_3] : memref<8x512xbf16, #tpu.memory_space<vmem>>, vector<8x512xbf16>
    %c0_4 = arith.constant 0 : index
    %c0_5 = arith.constant 0 : index
    %5 = vector.load %arg3[%c0_4, %c0_5] : memref<512x128xbf16, #tpu.memory_space<vmem>>, vector<512x128xbf16>
    %cst = arith.constant dense<0.000000e+00> : vector<8x128xf32>
    %6 = tpu.matmul %4, %5, %cst {dimension_numbers = #tpu.dot_dimension_numbers<[1], [0], [0], [1], [0, 0, 1, 1], [], []>} : vector<8x512xbf16>, vector<512x128xbf16>, vector<8x128xf32> -> vector<8x128xf32>
    %7 = arith.addf %3, %6 : vector<8x128xf32>
    %c0_6 = arith.constant 0 : index
    %c0_7 = arith.constant 0 : index
    %8 = vector.load %arg6[%c0_6, %c0_7] : memref<8x128xf32, #tpu.memory_space<vmem>>, vector<8x128xf32>
    tpu.vector_store %arg6[%c0_6, %c0_7], %7 {strides = array<i32>} : memref<8x128xf32, #tpu.memory_space<vmem>>, vector<8x128xf32>,
    %c0_i32_8 = arith.constant 0 : i32
    %9 = arith.cmpi eq, %arg1, %c0_i32_8 : i32
    %10 = arith.extui %9 : i1 to i32
    %c0_i32_9 = arith.constant 0 : i32
    %11 = arith.cmpi ne, %10, %c0_i32_9 : i32
    scf.if %11 {
      %c0_10 = arith.constant 0 : index
      %c0_11 = arith.constant 0 : index
      %12 = vector.load %arg6[%c0_10, %c0_11] : memref<8x128xf32, #tpu.memory_space<vmem>>, vector<8x128xf32>
      %c0_12 = arith.constant 0 : index
      %c0_13 = arith.constant 0 : index
      %13 = vector.load %arg4[%c0_12, %c0_13] : memref<1x128xf32, #tpu.memory_space<vmem>>, vector<1x128xf32>
      %14 = vector.broadcast %13 : vector<1x128xf32> to vector<8x128xf32>
      %15 = arith.addf %12, %14 : vector<8x128xf32>
      %cst_14 = arith.constant 0.000000e+00 : f32
      %16 = vector.broadcast %cst_14 : f32 to vector<8x128xf32>
      %17 = arith.maximumf %15, %16 : vector<8x128xf32>
      %18 = arith.truncf %17 : vector<8x128xf32> to vector<8x128xbf16>
      %c0_15 = arith.constant 0 : index
      %c0_16 = arith.constant 0 : index
      %19 = vector.load %arg5[%c0_15, %c0_16] : memref<8x128xbf16, #tpu.memory_space<vmem>>, vector<8x128xbf16>
      tpu.vector_store %arg5[%c0_15, %c0_16], %18 {strides = array<i32>} : memref<8x128xbf16, #tpu.memory_space<vmem>>, vector<8x128xbf16>,
    } else {
    }
    return
  }
  func.func @transform_0(%arg0: i32, %arg1: i32) -> (i32, i32) {
    %c0_i32 = arith.constant 0 : i32
    %c0_i32_0 = arith.constant 0 : i32
    return %c0_i32, %arg1 : i32, i32
  }
  func.func @transform_1(%arg0: i32, %arg1: i32) -> (i32, i32) {
    %c0_i32 = arith.constant 0 : i32
    return %arg1, %arg0 : i32, i32
  }
  func.func @transform_2(%arg0: i32, %arg1: i32) -> (i32, i32) {
    %c0_i32 = arith.constant 0 : i32
    %c0_i32_0 = arith.constant 0 : i32
    return %c0_i32, %arg0 : i32, i32
  }
  func.func @transform_3(%arg0: i32, %arg1: i32) -> (i32, i32) {
    %c0_i32 = arith.constant 0 : i32
    %c0_i32_0 = arith.constant 0 : i32
    return %c0_i32, %arg0 : i32, i32
  }
}

module attributes {stable_mosaic.version = 11 : i64} {
  func.func @_linear_kernel(%arg0: i32, %arg1: i32, %arg2: memref<8x512xbf16, #tpu.memory_space<vmem>>, %arg3: memref<512x512xbf16, #tpu.memory_space<vmem>>, %arg4: memref<1x512xf32, #tpu.memory_space<vmem>>, %arg5: memref<8x512xf32, #tpu.memory_space<vmem>>, %arg6: memref<8x512xf32, #tpu.memory_space<vmem>>) attributes {dimension_semantics = [#tpu.dimension_semantics<parallel>, #tpu.dimension_semantics<arbitrary>], iteration_bounds = array<i64: 2, 1>, scalar_prefetch = 0 : i64, scratch_operands = 1 : i64, tpu.core_type = #tpu.core_type<tc>, window_params = [{transform_indices = @transform_0, window_bounds = array<i64: 8, 512>}, {transform_indices = @transform_1, window_bounds = array<i64: 512, 512>}, {transform_indices = @transform_2, window_bounds = array<i64: 1, 512>}, {transform_indices = @transform_3, window_bounds = array<i64: 8, 512>}]} {
    %c0_i32 = arith.constant 0 : i32
    %0 = arith.cmpi eq, %arg1, %c0_i32 : i32
    %1 = arith.extui %0 : i1 to i32
    %c0_i32_0 = arith.constant 0 : i32
    %2 = arith.cmpi ne, %1, %c0_i32_0 : i32
    scf.if %2 {
      %cst_10 = arith.constant 0.000000e+00 : f32
      %12 = vector.broadcast %cst_10 : f32 to vector<8x512xf32>
      %c0_11 = arith.constant 0 : index
      %c0_12 = arith.constant 0 : index
      %13 = vector.load %arg6[%c0_11, %c0_12] : memref<8x512xf32, #tpu.memory_space<vmem>>, vector<8x512xf32>
      tpu.vector_store %arg6[%c0_11, %c0_12], %12 {strides = array<i32>} : memref<8x512xf32, #tpu.memory_space<vmem>>, vector<8x512xf32>,
    } else {
    }
    %c0 = arith.constant 0 : index
    %c0_1 = arith.constant 0 : index
    %3 = vector.load %arg6[%c0, %c0_1] : memref<8x512xf32, #tpu.memory_space<vmem>>, vector<8x512xf32>
    %c0_2 = arith.constant 0 : index
    %c0_3 = arith.constant 0 : index
    %4 = vector.load %arg2[%c0_2, %c0_3] : memref<8x512xbf16, #tpu.memory_space<vmem>>, vector<8x512xbf16>
    %c0_4 = arith.constant 0 : index
    %c0_5 = arith.constant 0 : index
    %5 = vector.load %arg3[%c0_4, %c0_5] : memref<512x512xbf16, #tpu.memory_space<vmem>>, vector<512x512xbf16>
    %cst = arith.constant dense<0.000000e+00> : vector<8x512xf32>
    %6 = tpu.matmul %4, %5, %cst {dimension_numbers = #tpu.dot_dimension_numbers<[1], [0], [0], [1], [0, 0, 1, 1], [], []>} : vector<8x512xbf16>, vector<512x512xbf16>, vector<8x512xf32> -> vector<8x512xf32>
    %7 = arith.addf %3, %6 : vector<8x512xf32>
    %c0_6 = arith.constant 0 : index
    %c0_7 = arith.constant 0 : index
    %8 = vector.load %arg6[%c0_6, %c0_7] : memref<8x512xf32, #tpu.memory_space<vmem>>, vector<8x512xf32>
    tpu.vector_store %arg6[%c0_6, %c0_7], %7 {strides = array<i32>} : memref<8x512xf32, #tpu.memory_space<vmem>>, vector<8x512xf32>,
    %c0_i32_8 = arith.constant 0 : i32
    %9 = arith.cmpi eq, %arg1, %c0_i32_8 : i32
    %10 = arith.extui %9 : i1 to i32
    %c0_i32_9 = arith.constant 0 : i32
    %11 = arith.cmpi ne, %10, %c0_i32_9 : i32
    scf.if %11 {
      %c0_10 = arith.constant 0 : index
      %c0_11 = arith.constant 0 : index
      %12 = vector.load %arg6[%c0_10, %c0_11] : memref<8x512xf32, #tpu.memory_space<vmem>>, vector<8x512xf32>
      %c0_12 = arith.constant 0 : index
      %c0_13 = arith.constant 0 : index
      %13 = vector.load %arg4[%c0_12, %c0_13] : memref<1x512xf32, #tpu.memory_space<vmem>>, vector<1x512xf32>
      %14 = vector.broadcast %13 : vector<1x512xf32> to vector<8x512xf32>
      %15 = arith.addf %12, %14 : vector<8x512xf32>
      %cst_14 = arith.constant 5.000000e-01 : f32
      %16 = vector.broadcast %cst_14 : f32 to vector<8x512xf32>
      %17 = arith.mulf %16, %15 : vector<8x512xf32>
      %18 = math.tanh %17 : vector<8x512xf32>
      %cst_15 = arith.constant 1.000000e+00 : f32
      %19 = vector.broadcast %cst_15 : f32 to vector<8x512xf32>
      %20 = arith.addf %18, %19 : vector<8x512xf32>
      %cst_16 = arith.constant 5.000000e-01 : f32
      %21 = vector.broadcast %cst_16 : f32 to vector<8x512xf32>
      %22 = arith.mulf %21, %20 : vector<8x512xf32>
      %c0_17 = arith.constant 0 : index
      %c0_18 = arith.constant 0 : index
      %23 = vector.load %arg5[%c0_17, %c0_18] : memref<8x512xf32, #tpu.memory_space<vmem>>, vector<8x512xf32>
      tpu.vector_store %arg5[%c0_17, %c0_18], %22 {strides = array<i32>} : memref<8x512xf32, #tpu.memory_space<vmem>>, vector<8x512xf32>,
    } else {
    }
    return
  }
  func.func @transform_0(%arg0: i32, %arg1: i32) -> (i32, i32) {
    %c0_i32 = arith.constant 0 : i32
    %c0_i32_0 = arith.constant 0 : i32
    return %c0_i32, %arg1 : i32, i32
  }
  func.func @transform_1(%arg0: i32, %arg1: i32) -> (i32, i32) {
    %c0_i32 = arith.constant 0 : i32
    return %arg1, %arg0 : i32, i32
  }
  func.func @transform_2(%arg0: i32, %arg1: i32) -> (i32, i32) {
    %c0_i32 = arith.constant 0 : i32
    %c0_i32_0 = arith.constant 0 : i32
    return %c0_i32, %arg0 : i32, i32
  }
  func.func @transform_3(%arg0: i32, %arg1: i32) -> (i32, i32) {
    %c0_i32 = arith.constant 0 : i32
    %c0_i32_0 = arith.constant 0 : i32
    return %c0_i32, %arg0 : i32, i32
  }
}

</mosaic_0001>

<llo_original>
// kernel: vae_forward.7
$region0: #{vae_forward.7}
  #allocation0 [shape = 'u32[]', space=smem, size = 0x4, offset = 0x4, fixed_abs, tag = 'smem constant byte address 0x4 - core index']
  #allocation1 [shape = 'u32[144,128]{1,0:T(1,128)}', space=vmem, size = 0x12000, scoped, tag = 'internal scratch']
  #allocation2 [shape = 'f32[8,256]{1,0:T(8,128)}', space=vmem, size = 0x2000, scoped, tag = 'scratch operand']
  %s0 = inlined_call_operand.vmem [shape: bf16[8,256], index: 0, kind: input, shape index: {}]
  %s1 = inlined_call_operand.hbm [shape: bf16[256,256], index: 1, kind: input, shape index: {}]
  %s2 = inlined_call_operand.vmem [shape: f32[1,256], index: 2, kind: input, shape index: {}]
  %s3 = inlined_call_operand.vmem [shape: f32[8,128], index: 3, kind: input, shape index: {}]
  %s4 = inlined_call_operand.hbm [shape: bf16[128,256], index: 4, kind: input, shape index: {}]
  %s5 = inlined_call_operand.vmem [shape: f32[1,256], index: 5, kind: input, shape index: {}]
  %s6 = inlined_call_operand.vmem [shape: bf16[8,256], index: 6, kind: output, shape index: {0}]
  %s7 = inlined_call_operand.hbm [shape: f32[8,128], index: 7, kind: output, shape index: {1}]
  %s8 = inlined_call_operand.hbm [shape: f32[8,128], index: 8, kind: output, shape index: {2}]
  %9 = xla_tuple %s6, %s7, %s8
  %s10 = sld [smem:[#allocation0]]
  $region66: #{vae_forward.7} parent=0
    _
  %s12 = ssub.s32 1, %s10
  %s13 = scalar_select 0, %s12, %s10
  $region1: #{vae_forward.7} parent=0
    #allocation3 [shape = 'u8[131072]{0}', space=vmem, size = 0x20000, scoped, tag = 'input window, operand 1, single buffered']
    #allocation4 [shape = 's32[1]{0}', space=sflag, size = 0x4, scoped, tag = 'scoped memory for vae_forward.7']
    #allocation5 [shape = 's32[1]{0}', space=sflag, size = 0x4, scoped, tag = 'scoped memory for vae_forward.7']
    #allocation6 [shape = 'u8[65536]{0}', space=vmem, size = 0x10000, scoped, tag = 'input window, operand 4, single buffered']
    #allocation7 [shape = 's32[1]{0}', space=sflag, size = 0x4, scoped, tag = 'scoped memory for vae_forward.7']
    #allocation8 [shape = 'u8[4096]{0}', space=vmem, size = 0x1000, scoped, tag = 'output window, operand 1, single buffered']
    #allocation9 [shape = 'u8[4096]{0}', space=vmem, size = 0x1000, scoped, tag = 'output window, operand 2, single buffered']
    #allocation10 [shape = 's32[1]{0}', space=sflag, size = 0x4, scoped, tag = 'scoped memory for vae_forward.7']
    %14 = vsyncpa [#allocation4], 0
    %15 = vsyncpa [#allocation7], 0
    %16 = vsyncpa [#allocation5], 0
    %17 = vsyncpa [#allocation10], 0
    // Predicated region
    $region2: #{vae_forward.7} parent=1 // pred_check
      _
    $region3: #{vae_forward.7} parent=1 // pred_check_branch
      %19 = sbr.rel (0) target = $region5
    $region4: #{vae_forward.7} parent=1 // pred_region
      _
    $region5: #{vae_forward.7} parent=1 // pred_fallthru
      _
    // Predicated region
    $region6: #{vae_forward.7} parent=1 // pred_check
      _
    $region7: #{vae_forward.7} parent=1 // pred_check_branch
      %21 = sbr.rel (0) target = $region9
    $region8: #{vae_forward.7} parent=1 // pred_region
      %s23 = ssub.s32 4096, 4096
      %24 = vsyncadd [#allocation4], %s23
      %s25 = sshll.u32 [#allocation3], 4
      %s26 = int_to_ptr.vmem [resolvable:$true] %s25
      %31 = dma.hbm_to_vmem [thread:$0]  %s1, 4096, %s26, [#allocation4], 128, 128, 8
    $region9: #{vae_forward.7} parent=1 // pred_fallthru
      _
    // Predicated region
    $region10: #{vae_forward.7} parent=1 // pred_check
      _
    $region11: #{vae_forward.7} parent=1 // pred_check_branch
      %33 = sbr.rel (0) target = $region13
    $region12: #{vae_forward.7} parent=1 // pred_region
      _
    $region13: #{vae_forward.7} parent=1 // pred_fallthru
      _
    // Predicated region
    $region14: #{vae_forward.7} parent=1 // pred_check
      _
    $region15: #{vae_forward.7} parent=1 // pred_check_branch
      %35 = sbr.rel (0) target = $region17
    $region16: #{vae_forward.7} parent=1 // pred_region
      _
    $region17: #{vae_forward.7} parent=1 // pred_fallthru
      _
    // Predicated region
    $region18: #{vae_forward.7} parent=1 // pred_check
      _
    $region19: #{vae_forward.7} parent=1 // pred_check_branch
      %37 = sbr.rel (0) target = $region21
    $region20: #{vae_forward.7} parent=1 // pred_region
      %s39 = ssub.s32 2048, 2048
      %40 = vsyncadd [#allocation7], %s39
      %s41 = sshll.u32 [#allocation6], 4
      %s42 = int_to_ptr.vmem [resolvable:$true] %s41
      %47 = dma.hbm_to_vmem [thread:$0]  %s4, 2048, %s42, [#allocation7], 128, 128, 8
    $region21: #{vae_forward.7} parent=1 // pred_fallthru
      _
    // Predicated region
    $region22: #{vae_forward.7} parent=1 // pred_check
      _
    $region23: #{vae_forward.7} parent=1 // pred_check_branch
      %49 = sbr.rel (0) target = $region25
    $region24: #{vae_forward.7} parent=1 // pred_region
      _
    $region25: #{vae_forward.7} parent=1 // pred_fallthru
      _
    // Predicated region
    $region26: #{vae_forward.7} parent=1 // pred_check
      _
    $region27: #{vae_forward.7} parent=1 // pred_check_branch
      %51 = sbr.rel (0) target = $region29
    $region28: #{vae_forward.7} parent=1 // pred_region
      %52 = dma.done [#allocation4], 4096
    $region29: #{vae_forward.7} parent=1 // pred_fallthru
      _
    // Predicated region
    $region30: #{vae_forward.7} parent=1 // pred_check
      _
    $region31: #{vae_forward.7} parent=1 // pred_check_branch
      %54 = sbr.rel (0) target = $region33
    $region32: #{vae_forward.7} parent=1 // pred_region
      %55 = dma.done [#allocation7], 2048
    $region33: #{vae_forward.7} parent=1 // pred_fallthru
      _
    %p57 = scmp.eq.s32.totalorder 0, 0
    // Predicated region
    $region34: #{vae_forward.7} parent=1 // pred_check
      %p58 = pneg %p57
    $region35: #{vae_forward.7} parent=1 // pred_check_branch
      %60 = sbr.rel (%p58) target = $region37
    $region36: #{vae_forward.7} parent=1 // pred_region
      %61 = vst [vmem:[#allocation2] sm:$0xff] 0.0
      %62 = vst [vmem:[#allocation2 + $0x8] sm:$0xff] 0.0
    $region37: #{vae_forward.7} parent=1 // pred_fallthru
      _
    %v63 = vld [vmem:[#allocation2] sm:$0xff]
    %v64 = vld [vmem:[#allocation2 + $0x8] sm:$0xff]
    %v65 = vld [vmem:[%s0] sm:$0xff]
    %v66 = vld [vmem:[#allocation3] sm:$0xff]
    %v67 = vld [vmem:[#allocation3 + $0x8] sm:$0xff]
    %v68 = vld [vmem:[#allocation3 + $0x10] sm:$0xff]
    %v69 = vld [vmem:[#allocation3 + $0x18] sm:$0xff]
    %v70 = vld [vmem:[#allocation3 + $0x20] sm:$0xff]
    %v71 = vld [vmem:[#allocation3 + $0x28] sm:$0xff]
    %v72 = vld [vmem:[#allocation3 + $0x30] sm:$0xff]
    %v73 = vld [vmem:[#allocation3 + $0x38] sm:$0xff]
    %v74 = vld [vmem:[#allocation3 + $0x40] sm:$0xff]
    %v75 = vld [vmem:[#allocation3 + $0x48] sm:$0xff]
    %v76 = vld [vmem:[#allocation3 + $0x50] sm:$0xff]
    %v77 = vld [vmem:[#allocation3 + $0x58] sm:$0xff]
    %v78 = vld [vmem:[#allocation3 + $0x60] sm:$0xff]
    %v79 = vld [vmem:[#allocation3 + $0x68] sm:$0xff]
    %v80 = vld [vmem:[#allocation3 + $0x70] sm:$0xff]
    %v81 = vld [vmem:[#allocation3 + $0x78] sm:$0xff]
    %v82 = vld [vmem:[#allocation3 + $0x80] sm:$0xff]
    %v83 = vld [vmem:[#allocation3 + $0x88] sm:$0xff]
    %v84 = vld [vmem:[#allocation3 + $0x90] sm:$0xff]
    %v85 = vld [vmem:[#allocation3 + $0x98] sm:$0xff]
    %v86 = vld [vmem:[#allocation3 + $0xa0] sm:$0xff]
    %v87 = vld [vmem:[#allocation3 + $0xa8] sm:$0xff]
    %v88 = vld [vmem:[#allocation3 + $0xb0] sm:$0xff]
    %v89 = vld [vmem:[#allocation3 + $0xb8] sm:$0xff]
    %v90 = vld [vmem:[#allocation3 + $0xc0] sm:$0xff]
    %v91 = vld [vmem:[#allocation3 + $0xc8] sm:$0xff]
    %v92 = vld [vmem:[#allocation3 + $0xd0] sm:$0xff]
    %v93 = vld [vmem:[#allocation3 + $0xd8] sm:$0xff]
    %v94 = vld [vmem:[#allocation3 + $0xe0] sm:$0xff]
    %v95 = vld [vmem:[#allocation3 + $0xe8] sm:$0xff]
    %v96 = vld [vmem:[#allocation3 + $0xf0] sm:$0xff]
    %v97 = vld [vmem:[#allocation3 + $0xf8] sm:$0xff]
    %v99 = vunpack.c.l.b16 %v65
    %v100 = vunpack.c.h.b16 %v65
    %v101 = vpack.c.b16 %v99, %v99
    %v102 = vpack.c.b16 %v100, %v100
    %v137 = vunpack.c.l.b16 %v66
    %v138 = vunpack.c.h.b16 %v66
    %v139 = vunpack.c.l.b16 %v67
    %v140 = vunpack.c.h.b16 %v67
    %v141 = vunpack.c.l.b16 %v68
    %v142 = vunpack.c.h.b16 %v68
    %v143 = vunpack.c.l.b16 %v69
    %v144 = vunpack.c.h.b16 %v69
    %v145 = vunpack.c.l.b16 %v70
    %v146 = vunpack.c.h.b16 %v70
    %v147 = vunpack.c.l.b16 %v71
    %v148 = vunpack.c.h.b16 %v71
    %v149 = vunpack.c.l.b16 %v72
    %v150 = vunpack.c.h.b16 %v72
    %v151 = vunpack.c.l.b16 %v73
    %v152 = vunpack.c.h.b16 %v73
    %v153 = vunpack.c.l.b16 %v74
    %v154 = vunpack.c.h.b16 %v74
    %v155 = vunpack.c.l.b16 %v75
    %v156 = vunpack.c.h.b16 %v75
    %v157 = vunpack.c.l.b16 %v76
    %v158 = vunpack.c.h.b16 %v76
    %v159 = vunpack.c.l.b16 %v77
    %v160 = vunpack.c.h.b16 %v77
    %v161 = vunpack.c.l.b16 %v78
    %v162 = vunpack.c.h.b16 %v78
    %v163 = vunpack.c.l.b16 %v79
    %v164 = vunpack.c.h.b16 %v79
    %v165 = vunpack.c.l.b16 %v80
    %v166 = vunpack.c.h.b16 %v80
    %v167 = vunpack.c.l.b16 %v81
    %v168 = vunpack.c.h.b16 %v81
    %v169 = vunpack.c.l.b16 %v82
    %v170 = vunpack.c.h.b16 %v82
    %v171 = vunpack.c.l.b16 %v83
    %v172 = vunpack.c.h.b16 %v83
    %v173 = vunpack.c.l.b16 %v84
    %v174 = vunpack.c.h.b16 %v84
    %v175 = vunpack.c.l.b16 %v85
    %v176 = vunpack.c.h.b16 %v85
    %v177 = vunpack.c.l.b16 %v86
    %v178 = vunpack.c.h.b16 %v86
    %v179 = vunpack.c.l.b16 %v87
    %v180 = vunpack.c.h.b16 %v87
    %v181 = vunpack.c.l.b16 %v88
    %v182 = vunpack.c.h.b16 %v88
    %v183 = vunpack.c.l.b16 %v89
    %v184 = vunpack.c.h.b16 %v89
    %v185 = vunpack.c.l.b16 %v90
    %v186 = vunpack.c.h.b16 %v90
    %v187 = vunpack.c.l.b16 %v91
    %v188 = vunpack.c.h.b16 %v91
    %v189 = vunpack.c.l.b16 %v92
    %v190 = vunpack.c.h.b16 %v92
    %v191 = vunpack.c.l.b16 %v93
    %v192 = vunpack.c.h.b16 %v93
    %v193 = vunpack.c.l.b16 %v94
    %v194 = vunpack.c.h.b16 %v94
    %v195 = vunpack.c.l.b16 %v95
    %v196 = vunpack.c.h.b16 %v95
    %v197 = vunpack.c.l.b16 %v96
    %v198 = vunpack.c.h.b16 %v96
    %v199 = vunpack.c.l.b16 %v97
    %v200 = vunpack.c.h.b16 %v97
    %v201 = vpack.c.b16 %v139, %v137
    %v202 = vpack.c.b16 %v140, %v138
    %v203 = vpack.c.b16 %v143, %v141
    %v204 = vpack.c.b16 %v144, %v142
    %v205 = vpack.c.b16 %v147, %v145
    %v206 = vpack.c.b16 %v148, %v146
    %v207 = vpack.c.b16 %v151, %v149
    %v208 = vpack.c.b16 %v152, %v150
    %v209 = vpack.c.b16 %v155, %v153
    %v210 = vpack.c.b16 %v156, %v154
    %v211 = vpack.c.b16 %v159, %v157
    %v212 = vpack.c.b16 %v160, %v158
    %v213 = vpack.c.b16 %v163, %v161
    %v214 = vpack.c.b16 %v164, %v162
    %v215 = vpack.c.b16 %v167, %v165
    %v216 = vpack.c.b16 %v168, %v166
    %v217 = vpack.c.b16 %v171, %v169
    %v218 = vpack.c.b16 %v172, %v170
    %v219 = vpack.c.b16 %v175, %v173
    %v220 = vpack.c.b16 %v176, %v174
    %v221 = vpack.c.b16 %v179, %v177
    %v222 = vpack.c.b16 %v180, %v178
    %v223 = vpack.c.b16 %v183, %v181
    %v224 = vpack.c.b16 %v184, %v182
    %v225 = vpack.c.b16 %v187, %v185
    %v226 = vpack.c.b16 %v188, %v186
    %v227 = vpack.c.b16 %v191, %v189
    %v228 = vpack.c.b16 %v192, %v190
    %v229 = vpack.c.b16 %v195, %v193
    %v230 = vpack.c.b16 %v196, %v194
    %v231 = vpack.c.b16 %v199, %v197
    %v232 = vpack.c.b16 %v200, %v198
    %265 = vmatprep.subr.bf16.mxu0 %v202
    %266 = vmatpush1.bf16.msra.mxu0 %v201
    %267 = vmatprep.subr.bf16.mxu0 %v204
    %268 = vmatpush1.bf16.msra.mxu0 %v203
    %269 = vmatprep.subr.bf16.mxu0 %v206
    %270 = vmatpush1.bf16.msra.mxu0 %v205
    %271 = vmatprep.subr.bf16.mxu0 %v208
    %272 = vmatpush1.bf16.msra.mxu0 %v207
    %273 = vmatprep.subr.bf16.mxu0 %v210
    %274 = vmatpush1.bf16.msra.mxu0 %v209
    %275 = vmatprep.subr.bf16.mxu0 %v212
    %276 = vmatpush1.bf16.msra.mxu0 %v211
    %277 = vmatprep.subr.bf16.mxu0 %v214
    %278 = vmatpush1.bf16.msra.mxu0 %v213
    %279 = vmatprep.subr.bf16.mxu0 %v216
    %280 = vmatpush1.bf16.msra.mxu0 %v215
    %281 = vmatprep.subr.bf16.mxu0 %v218
    %282 = vmatpush1.bf16.msra.mxu0 %v217
    %283 = vmatprep.subr.bf16.mxu0 %v220
    %284 = vmatpush1.bf16.msra.mxu0 %v219
    %285 = vmatprep.subr.bf16.mxu0 %v222
    %286 = vmatpush1.bf16.msra.mxu0 %v221
    %287 = vmatprep.subr.bf16.mxu0 %v224
    %288 = vmatpush1.bf16.msra.mxu0 %v223
    %289 = vmatprep.subr.bf16.mxu0 %v226
    %290 = vmatpush1.bf16.msra.mxu0 %v225
    %291 = vmatprep.subr.bf16.mxu0 %v228
    %292 = vmatpush1.bf16.msra.mxu0 %v227
    %293 = vmatprep.subr.bf16.mxu0 %v230
    %294 = vmatpush1.bf16.msra.mxu0 %v229
    %295 = vmatprep.subr.bf16.mxu0 %v232
    %296 = vmatpush1.bf16.msra.mxu0 %v231
    %297 = vmatprep.mubr.bf16.mxu0 %v102
    %298 = vmatmul.mubr.bf16.gmra.mrb[0].mxu0 %v101
    %v299 = vpop.f32.mrb[0].mxu0
    %v300 = vadd.f32 0.0, %v299
    %v301 = vpop.f32.mrb[0].mxu0
    %v302 = vadd.f32 0.0, %v301
    %v303 = vpop.f32.mrb[0].mxu0
    %v304 = vpop.f32.mrb[0].mxu0
    %305 = vdwg.mxu0
    %v306 = vadd.f32 %v63, %v300
    %v307 = vadd.f32 %v64, %v302
    %308 = vst [vmem:[#allocation2] sm:$0xff] %v306
    %309 = vst [vmem:[#allocation2 + $0x8] sm:$0xff] %v307
    // Predicated region
    $region38: #{vae_forward.7} parent=1 // pred_check
      %p310 = pneg %p57
    $region39: #{vae_forward.7} parent=1 // pred_check_branch
      %312 = sbr.rel (%p310) target = $region41
    $region40: #{vae_forward.7} parent=1 // pred_region
      %v313 = vld [vmem:[#allocation2] sm:$0xff]
      %v314 = vld [vmem:[#allocation2 + $0x8] sm:$0xff]
      %v315 = vld [vmem:[%s2] sm:$0x3]
      %v317 = vlaneseq
      %v318 = vshrl.u32 %v317, 7
      %v319 = vsub.s32 0, %v318
      %v320 = vrot.slane %v315, %v319
      %v321 = vlaneseq
      %v322 = vshrl.u32 %v321, 7
      %v323 = vsub.s32 1, %v322
      %v324 = vrot.slane %v315, %v323
      %v327 = vadd.f32 %v313, %v320
      %v328 = vadd.f32 %v314, %v324
      %v329 = vld [vmem:[%s3] sm:$0xff]
      %v330 = vmul.f32 %v328, 0.5
      %v331 = vmul.f32 %v330, 1.442695
      %v332 = vpow.pop %v331
      %v333 = vmul.f32 %v329, %v332
      %v334 = vadd.f32 %v327, %v333
      %335 = vst [vmem:[#allocation8] sm:$0xff] %v327
      %336 = vst [vmem:[#allocation9] sm:$0xff] %v328
      %v337 = vpack.c.bf16 %v334, %v334
      %v338 = vld [vmem:[#allocation6] sm:$0xff]
      %v339 = vld [vmem:[#allocation6 + $0x8] sm:$0xff]
      %v340 = vld [vmem:[#allocation6 + $0x10] sm:$0xff]
      %v341 = vld [vmem:[#allocation6 + $0x18] sm:$0xff]
      %v342 = vld [vmem:[#allocation6 + $0x20] sm:$0xff]
      %v343 = vld [vmem:[#allocation6 + $0x28] sm:$0xff]
      %v344 = vld [vmem:[#allocation6 + $0x30] sm:$0xff]
      %v345 = vld [vmem:[#allocation6 + $0x38] sm:$0xff]
      %v346 = vld [vmem:[#allocation6 + $0x40] sm:$0xff]
      %v347 = vld [vmem:[#allocation6 + $0x48] sm:$0xff]
      %v348 = vld [vmem:[#allocation6 + $0x50] sm:$0xff]
      %v349 = vld [vmem:[#allocation6 + $0x58] sm:$0xff]
      %v350 = vld [vmem:[#allocation6 + $0x60] sm:$0xff]
      %v351 = vld [vmem:[#allocation6 + $0x68] sm:$0xff]
      %v352 = vld [vmem:[#allocation6 + $0x70] sm:$0xff]
      %v353 = vld [vmem:[#allocation6 + $0x78] sm:$0xff]
      %v354 = vld [vmem:[%s5] sm:$0x3]
      %v356 = vlaneseq
      %v357 = vshrl.u32 %v356, 7
      %v358 = vsub.s32 0, %v357
      %v359 = vrot.slane %v354, %v358
      %v360 = vlaneseq
      %v361 = vshrl.u32 %v360, 7
      %v362 = vsub.s32 1, %v361
      %v363 = vrot.slane %v354, %v362
      %v382 = vunpack.c.l.b16 %v338
      %v383 = vunpack.c.h.b16 %v338
      %v384 = vunpack.c.l.b16 %v339
      %v385 = vunpack.c.h.b16 %v339
      %v386 = vunpack.c.l.b16 %v340
      %v387 = vunpack.c.h.b16 %v340
      %v388 = vunpack.c.l.b16 %v341
      %v389 = vunpack.c.h.b16 %v341
      %v390 = vunpack.c.l.b16 %v342
      %v391 = vunpack.c.h.b16 %v342
      %v392 = vunpack.c.l.b16 %v343
      %v393 = vunpack.c.h.b16 %v343
      %v394 = vunpack.c.l.b16 %v344
      %v395 = vunpack.c.h.b16 %v344
      %v396 = vunpack.c.l.b16 %v345
      %v397 = vunpack.c.h.b16 %v345
      %v398 = vunpack.c.l.b16 %v346
      %v399 = vunpack.c.h.b16 %v346
      %v400 = vunpack.c.l.b16 %v347
      %v401 = vunpack.c.h.b16 %v347
      %v402 = vunpack.c.l.b16 %v348
      %v403 = vunpack.c.h.b16 %v348
      %v404 = vunpack.c.l.b16 %v349
      %v405 = vunpack.c.h.b16 %v349
      %v406 = vunpack.c.l.b16 %v350
      %v407 = vunpack.c.h.b16 %v350
      %v408 = vunpack.c.l.b16 %v351
      %v409 = vunpack.c.h.b16 %v351
      %v410 = vunpack.c.l.b16 %v352
      %v411 = vunpack.c.h.b16 %v352
      %v412 = vunpack.c.l.b16 %v353
      %v413 = vunpack.c.h.b16 %v353
      %v414 = vpack.c.b16 %v384, %v382
      %v415 = vpack.c.b16 %v385, %v383
      %v416 = vpack.c.b16 %v388, %v386
      %v417 = vpack.c.b16 %v389, %v387
      %v418 = vpack.c.b16 %v392, %v390
      %v419 = vpack.c.b16 %v393, %v391
      %v420 = vpack.c.b16 %v396, %v394
      %v421 = vpack.c.b16 %v397, %v395
      %v422 = vpack.c.b16 %v400, %v398
      %v423 = vpack.c.b16 %v401, %v399
      %v424 = vpack.c.b16 %v404, %v402
      %v425 = vpack.c.b16 %v405, %v403
      %v426 = vpack.c.b16 %v408, %v406
      %v427 = vpack.c.b16 %v409, %v407
      %v428 = vpack.c.b16 %v412, %v410
      %v429 = vpack.c.b16 %v413, %v411
      %446 = vmatprep.subr.bf16.mxu0 %v415
      %447 = vmatpush1.bf16.msra.mxu0 %v414
      %448 = vmatprep.subr.bf16.mxu0 %v417
      %449 = vmatpush1.bf16.msra.mxu0 %v416
      %450 = vmatprep.subr.bf16.mxu0 %v419
      %451 = vmatpush1.bf16.msra.mxu0 %v418
      %452 = vmatprep.subr.bf16.mxu0 %v421
      %453 = vmatpush1.bf16.msra.mxu0 %v420
      %454 = vmatprep.subr.bf16.mxu0 %v423
      %455 = vmatpush1.bf16.msra.mxu0 %v422
      %456 = vmatprep.subr.bf16.mxu0 %v425
      %457 = vmatpush1.bf16.msra.mxu0 %v424
      %458 = vmatprep.subr.bf16.mxu0 %v427
      %459 = vmatpush1.bf16.msra.mxu0 %v426
      %460 = vmatprep.subr.bf16.mxu0 %v429
      %461 = vmatpush1.bf16.msra.mxu0 %v428
      %462 = vmatprep.subr.bf16.mxu0 0
      %463 = vmatpush1.bf16.msra.mxu0 0
      %464 = vmatprep.subr.bf16.mxu0 0
      %465 = vmatpush1.bf16.msra.mxu0 0
      %466 = vmatprep.subr.bf16.mxu0 0
      %467 = vmatpush1.bf16.msra.mxu0 0
      %468 = vmatprep.subr.bf16.mxu0 0
      %469 = vmatpush1.bf16.msra.mxu0 0
      %470 = vmatprep.subr.bf16.mxu0 0
      %471 = vmatpush1.bf16.msra.mxu0 0
      %472 = vmatprep.subr.bf16.mxu0 0
      %473 = vmatpush1.bf16.msra.mxu0 0
      %474 = vmatprep.subr.bf16.mxu0 0
      %475 = vmatpush1.bf16.msra.mxu0 0
      %476 = vmatprep.subr.bf16.mxu0 0
      %477 = vmatpush1.bf16.msra.mxu0 0
      %478 = vmatprep.mubr.bf16.mxu0 0
      %479 = vmatmul.mubr.bf16.gmra.mrb[0].mxu0 %v337
      %v480 = vpop.f32.mrb[0].mxu0
      %v481 = vadd.f32 %v359, %v480
      %v482 = vpop.f32.mrb[0].mxu0
      %v483 = vadd.f32 %v363, %v482
      %v484 = vpop.f32.mrb[0].mxu0
      %v485 = vpop.f32.mrb[0].mxu0
      %486 = vdwg.mxu0
      %v487 = vmax.f32 %v481, 0.0
      %v488 = vmax.f32 %v483, 0.0
      %v489 = vpack.c.bf16 %v487, %v487
      %v490 = vpack.c.bf16 %v488, %v488
      %v493 = vunpack.c.l.b16 %v489
      %v494 = vunpack.c.l.b16 %v490
      %v495 = vpack.c.b16 %v494, %v493
      %497 = vst [vmem:[%s6] sm:$0xff] %v495
    $region41: #{vae_forward.7} parent=1 // pred_fallthru
      _
    // Predicated region
    $region42: #{vae_forward.7} parent=1 // pred_check
      _
    $region43: #{vae_forward.7} parent=1 // pred_check_branch
      %499 = sbr.rel (0) target = $region45
    $region44: #{vae_forward.7} parent=1 // pred_region
      _
    $region45: #{vae_forward.7} parent=1 // pred_fallthru
      _
    // Predicated region
    $region46: #{vae_forward.7} parent=1 // pred_check
      _
    $region47: #{vae_forward.7} parent=1 // pred_check_branch
      %501 = sbr.rel (0) target = $region49
    $region48: #{vae_forward.7} parent=1 // pred_region
      %s503 = ssub.s32 128, 128
      %504 = vsyncadd [#allocation5], %s503
      %s506 = sshll.u32 [#allocation8], 4
      %s507 = int_to_ptr.vmem [resolvable:$true] %s506
      %509 = dma.vmem_to_hbm [thread:$0]  %s507, 128, %s7, [#allocation5]
    $region49: #{vae_forward.7} parent=1 // pred_fallthru
      _
    // Predicated region
    $region50: #{vae_forward.7} parent=1 // pred_check
      _
    $region51: #{vae_forward.7} parent=1 // pred_check_branch
      %511 = sbr.rel (0) target = $region53
    $region52: #{vae_forward.7} parent=1 // pred_region
      %s513 = ssub.s32 128, 128
      %514 = vsyncadd [#allocation10], %s513
      %s516 = sshll.u32 [#allocation9], 4
      %s517 = int_to_ptr.vmem [resolvable:$true] %s516
      %519 = dma.vmem_to_hbm [thread:$0]  %s517, 128, %s8, [#allocation10]
    $region53: #{vae_forward.7} parent=1 // pred_fallthru
      _
    // Predicated region
    $region54: #{vae_forward.7} parent=1 // pred_check
      _
    $region55: #{vae_forward.7} parent=1 // pred_check_branch
      %521 = sbr.rel (0) target = $region57
    $region56: #{vae_forward.7} parent=1 // pred_region
      _
    $region57: #{vae_forward.7} parent=1 // pred_fallthru
      _
    // Predicated region
    $region58: #{vae_forward.7} parent=1 // pred_check
      _
    $region59: #{vae_forward.7} parent=1 // pred_check_branch
      %523 = sbr.rel (0) target = $region61
    $region60: #{vae_forward.7} parent=1 // pred_region
      %524 = dma.done [#allocation5], 128
    $region61: #{vae_forward.7} parent=1 // pred_fallthru
      _
    // Predicated region
    $region62: #{vae_forward.7} parent=1 // pred_check
      _
    $region63: #{vae_forward.7} parent=1 // pred_check_branch
      %526 = sbr.rel (0) target = $region65
    $region64: #{vae_forward.7} parent=1 // pred_region
      %527 = dma.done [#allocation10], 128
    $region65: #{vae_forward.7} parent=1 // pred_fallthru
      _
    %528 = vsyncpa [#allocation4], 1
    %529 = vsyncpa [#allocation7], 1
    %530 = vsyncpa [#allocation5], 1
    %531 = vsyncpa [#allocation10], 1

// kernel: vae_forward.8
$region0: #{vae_forward.8}
  #allocation0 [shape = 'u32[]', space=smem, size = 0x4, offset = 0x4, fixed_abs, tag = 'smem constant byte address 0x4 - core index']
  #allocation1 [shape = 'u32[144,128]{1,0:T(1,128)}', space=vmem, size = 0x12000, scoped, tag = 'internal scratch']
  #allocation2 [shape = 'f32[8,256]{1,0:T(8,128)}', space=vmem, size = 0x2000, scoped, tag = 'scratch operand']
  %s0 = inlined_call_operand.vmem [shape: bf16[8,256], index: 0, kind: input, shape index: {}]
  %s1 = inlined_call_operand.vmem [shape: bf16[256,512], index: 1, kind: input, shape index: {}]
  %s2 = inlined_call_operand.vmem [shape: f32[1,512], index: 2, kind: input, shape index: {}]
  %s3 = inlined_call_operand.vmem [shape: bf16[8,512], index: 3, kind: output, shape index: {}]
  %s4 = sld [smem:[#allocation0]]
  $region91: #{vae_forward.8} parent=0
    _
  %s6 = ssub.s32 1, %s4
  %s7 = scalar_select 0, %s6, %s4
  $region1: #{vae_forward.8} parent=0
    #allocation3 [shape = 'u8[262144]{0}', space=vmem, size = 0x40000, scoped, tag = 'input window, operand 1']
    loop: start=0, step=1, limit=4
    $region2: #{vae_forward.8} parent=1 // loop_pre_header
      _
    $region3: #{vae_forward.8} parent=1 // loop_header
      %s9 = sphi 0, %s13
      %p10 = scmp.ge.s32.totalorder %s9, 4
      %s16 = sphi 0, %s28
      %s17 = sphi 0, %s24
      %s18 = sphi 0, %s16
      %s19 = sphi 0, %s17
      %s20 = sphi 0, %s18
      %s21 = sphi 0, %s19
      %s31 = sphi 0, %s33
      %s34 = sphi 0, %s31
      %s35 = sphi 0, %s34
      %s51 = sphi 0, %s35
      %s59 = sphi 0, %s61
      %s62 = sphi 0, %s59
      %s63 = sphi 0, %s62
      %s79 = sphi 0, %s63
      %s85 = sphi 0, %s87
      %s88 = sphi 0, %s85
      %s89 = sphi 0, %s88
      %s105 = sphi 0, %s89
      %s111 = sphi 0, %s113
      %s114 = sphi 0, %s111
      %s115 = sphi 0, %s114
      %s131 = sphi 0, %s115
    $region4: #{vae_forward.8} parent=1 // loop_header_branch
      %12 = sbr.rel (%p10) target = $region8
    $region5: #{vae_forward.8} parent=1 // loop_body
      %s14 = ssub.s32 %s9, 1
      %s15 = ssub.s32 %s9, 2
      %s22 = sadd.s32 1, %s17
      %p23 = scmp.ge.s32.totalorder %s22, 1
      %s24 = scalar_select %p23, 0, %s22
      %s25 = sadd.s32 1, %s16
      %s26 = scalar_select %p23, %s25, %s16
      %p27 = scmp.ge.s32.totalorder %s26, 2
      %s28 = scalar_select %p27, 0, %s26
      %s29 = ssub.s32 %s17, %s24
      %p30 = scmp.eq.s32.totalorder %s29, 0
      %s32 = sadd.s32 %s31, 1
      %s33 = scalar_select %p30, %s31, %s32
      %p36 = pneg %p30
      %p37 = scmp.eq.s32.totalorder %s9, 1
      %p38 = por %p36, %p37
      %p39 = scmp.ne.s32.totalorder %s31, %s34
      %p40 = scmp.eq.s32.totalorder %s9, 0
      %p41 = por %p39, %p40
      %p42 = scmp.ne.s32.totalorder %s31, %s34
      %p43 = scmp.eq.s32.totalorder %s14, 1
      %p44 = por %p42, %p43
      %p45 = scmp.ne.s32.totalorder %s34, %s35
      %p46 = scmp.eq.s32.totalorder %s14, 0
      %p47 = por %p45, %p46
      %p48 = scmp.ne.s32.totalorder %s34, %s35
      %p49 = scmp.eq.s32.totalorder %s15, 1
      %p50 = por %p48, %p49
      %p52 = scmp.ne.s32.totalorder %s35, %s51
      %p53 = scmp.eq.s32.totalorder %s15, 0
      %p54 = por %p52, %p53
      %s55 = ssub.s32 %s17, %s24
      %s56 = ssub.s32 %s16, %s28
      %s57 = sor.u32 %s55, %s56
      %p58 = scmp.eq.s32.totalorder %s57, 0
      %s60 = sadd.s32 %s59, 1
      %s61 = scalar_select %p58, %s59, %s60
      %p64 = pneg %p58
      %p65 = scmp.eq.s32.totalorder %s9, 1
      %p66 = por %p64, %p65
      %p67 = scmp.ne.s32.totalorder %s59, %s62
      %p68 = scmp.eq.s32.totalorder %s9, 0
      %p69 = por %p67, %p68
      %p70 = scmp.ne.s32.totalorder %s59, %s62
      %p71 = scmp.eq.s32.totalorder %s14, 1
      %p72 = por %p70, %p71
      %p73 = scmp.ne.s32.totalorder %s62, %s63
      %p74 = scmp.eq.s32.totalorder %s14, 0
      %p75 = por %p73, %p74
      %p76 = scmp.ne.s32.totalorder %s62, %s63
      %p77 = scmp.eq.s32.totalorder %s15, 1
      %p78 = por %p76, %p77
      %p80 = scmp.ne.s32.totalorder %s63, %s79
      %p81 = scmp.eq.s32.totalorder %s15, 0
      %p82 = por %p80, %p81
      %s83 = ssub.s32 %s16, %s28
      %p84 = scmp.eq.s32.totalorder %s83, 0
      %s86 = sadd.s32 %s85, 1
      %s87 = scalar_select %p84, %s85, %s86
      %p90 = pneg %p84
      %p91 = scmp.eq.s32.totalorder %s9, 1
      %p92 = por %p90, %p91
      %p93 = scmp.ne.s32.totalorder %s85, %s88
      %p94 = scmp.eq.s32.totalorder %s9, 0
      %p95 = por %p93, %p94
      %p96 = scmp.ne.s32.totalorder %s85, %s88
      %p97 = scmp.eq.s32.totalorder %s14, 1
      %p98 = por %p96, %p97
      %p99 = scmp.ne.s32.totalorder %s88, %s89
      %p100 = scmp.eq.s32.totalorder %s14, 0
      %p101 = por %p99, %p100
      %p102 = scmp.ne.s32.totalorder %s88, %s89
      %p103 = scmp.eq.s32.totalorder %s15, 1
      %p104 = por %p102, %p103
      %p106 = scmp.ne.s32.totalorder %s89, %s105
      %p107 = scmp.eq.s32.totalorder %s15, 0
      %p108 = por %p106, %p107
      %s109 = ssub.s32 %s16, %s28
      %p110 = scmp.eq.s32.totalorder %s109, 0
      %s112 = sadd.s32 %s111, 1
      %s113 = scalar_select %p110, %s111, %s112
      %p116 = pneg %p110
      %p117 = scmp.eq.s32.totalorder %s9, 1
      %p118 = por %p116, %p117
      %p119 = scmp.ne.s32.totalorder %s111, %s114
      %p120 = scmp.eq.s32.totalorder %s9, 0
      %p121 = por %p119, %p120
      %p122 = scmp.ne.s32.totalorder %s111, %s114
      %p123 = scmp.eq.s32.totalorder %s14, 1
      %p124 = por %p122, %p123
      %p125 = scmp.ne.s32.totalorder %s114, %s115
      %p126 = scmp.eq.s32.totalorder %s14, 0
      %p127 = por %p125, %p126
      %p128 = scmp.ne.s32.totalorder %s114, %s115
      %p129 = scmp.eq.s32.totalorder %s15, 1
      %p130 = por %p128, %p129
      %p132 = scmp.ne.s32.totalorder %s115, %s131
      %p133 = scmp.eq.s32.totalorder %s15, 0
      %p134 = por %p132, %p133
      %p135 = scmp.le.s32.totalorder 1, %s9
      %p136 = scmp.lt.s32.totalorder %s9, 3
      %p137 = pnand %p135, %p136
      %p138 = pneg %p137
      // Predicated region
      $region9: #{vae_forward.8} parent=5 // pred_check
        _
      $region10: #{vae_forward.8} parent=5 // pred_check_branch
        %140 = sbr.rel (%p137) target = $region12
      $region11: #{vae_forward.8} parent=5 // pred_region
        %s141 = ssub.s32 %s9, 1
        // Predicated region
        $region13: #{vae_forward.8} parent=11 // pred_check
          %p142 = pneg %p47
        $region14: #{vae_forward.8} parent=11 // pred_check_branch
          %144 = sbr.rel (%p142) target = $region16
        $region15: #{vae_forward.8} parent=11 // pred_region
          %s145 = smul.u32 2, %s19
          %p146 = scmp.lt.s32.totalorder %s145, 1
          %s147 = scalar_select %p146, %s145, 1
          %s148 = smul.addr %s147, 4
          %s149 = scalar_lea.vmem %s0, %s148
          %s150 = smul.u32 2, %s19
        $region16: #{vae_forward.8} parent=11 // pred_fallthru
          _
      $region12: #{vae_forward.8} parent=5 // pred_fallthru
        _
      %p151 = scmp.lt.s32.totalorder %s9, 2
      // Predicated region
      $region17: #{vae_forward.8} parent=5 // pred_check
        %p152 = pneg %p151
      $region18: #{vae_forward.8} parent=5 // pred_check_branch
        %154 = sbr.rel (%p152) target = $region20
      $region19: #{vae_forward.8} parent=5 // pred_region
        // Predicated region
        $region21: #{vae_forward.8} parent=19 // pred_check
          %p155 = pneg %p69
        $region22: #{vae_forward.8} parent=19 // pred_check_branch
          %157 = sbr.rel (%p155) target = $region24
        $region23: #{vae_forward.8} parent=19 // pred_region
          %s158 = sand.u32 %s59, 1
          %s159 = sand.u32 %s59, 1
          %s160 = smul.addr %s159, 256
          %s161 = scalar_lea.vmem [#allocation3], %s160
          %s162 = smul.u32 32, %s17
          %s163 = smul.u32 2, %s16
          %s164 = smul.addr %s162, 4
          %s165 = sadd.s32 %s163, %s164
          %s166 = smul.addr %s165, 4
          %s167 = scalar_lea.vmem %s1, %s166
          // Predicated region
          $region25: #{vae_forward.8} parent=23 // pred_check
            _
          $region26: #{vae_forward.8} parent=23 // pred_check_branch
            %169 = sbr.rel (0) target = $region28
          $region27: #{vae_forward.8} parent=23 // pred_region
            // Predicated region
            $region29: #{vae_forward.8} parent=27 // pred_check
              _
            $region30: #{vae_forward.8} parent=27 // pred_check_branch
              %171 = sbr.rel (0) target = $region32
            $region31: #{vae_forward.8} parent=27 // pred_region
              // Predicated region
              $region44: #{vae_forward.8} parent=31 // pred_check
                _
              $region45: #{vae_forward.8} parent=31 // pred_check_branch
                %248 = sbr.rel (0) target = $region47
              $region46: #{vae_forward.8} parent=31 // pred_region
                loop: start=0, step=1, limit=1
                $region48: #{vae_forward.8} parent=46 // loop_pre_header
                  _
                $region49: #{vae_forward.8} parent=46 // loop_header
                  %s250 = sphi 0, %s254
                  %p251 = scmp.ge.s32.totalorder %s250, 1
                  %s255 = sphi %s167, %s167
                  %s256 = sphi %s161, %s161
                $region50: #{vae_forward.8} parent=46 // loop_header_branch
                  %253 = sbr.rel (%p251) target = $region54
                $region51: #{vae_forward.8} parent=46 // loop_body
                  %v257 = vld [vmem:[%s255] sm:$0xff]
                  %258 = vst [vmem:[%s256] sm:$0xff] %v257
                  %v259 = vld [vmem:[%s255 + $0x10] sm:$0xff]
                  %260 = vst [vmem:[%s256 + $0x8] sm:$0xff] %v259
                  %v261 = vld [vmem:[%s255 + $0x20] sm:$0xff]
                  %262 = vst [vmem:[%s256 + $0x10] sm:$0xff] %v261
                  %v263 = vld [vmem:[%s255 + $0x30] sm:$0xff]
                  %264 = vst [vmem:[%s256 + $0x18] sm:$0xff] %v263
                  %v265 = vld [vmem:[%s255 + $0x40] sm:$0xff]
                  %266 = vst [vmem:[%s256 + $0x20] sm:$0xff] %v265
                  %v267 = vld [vmem:[%s255 + $0x50] sm:$0xff]
                  %268 = vst [vmem:[%s256 + $0x28] sm:$0xff] %v267
                  %v269 = vld [vmem:[%s255 + $0x60] sm:$0xff]
                  %270 = vst [vmem:[%s256 + $0x30] sm:$0xff] %v269
                  %v271 = vld [vmem:[%s255 + $0x70] sm:$0xff]
                  %272 = vst [vmem:[%s256 + $0x38] sm:$0xff] %v271
                  %v273 = vld [vmem:[%s255 + $0x80] sm:$0xff]
                  %274 = vst [vmem:[%s256 + $0x40] sm:$0xff] %v273
                  %v275 = vld [vmem:[%s255 + $0x90] sm:$0xff]
                  %276 = vst [vmem:[%s256 + $0x48] sm:$0xff] %v275
                  %v277 = vld [vmem:[%s255 + $0xa0] sm:$0xff]
                  %278 = vst [vmem:[%s256 + $0x50] sm:$0xff] %v277
                  %v279 = vld [vmem:[%s255 + $0xb0] sm:$0xff]
                  %280 = vst [vmem:[%s256 + $0x58] sm:$0xff] %v279
                  %v281 = vld [vmem:[%s255 + $0xc0] sm:$0xff]
                  %282 = vst [vmem:[%s256 + $0x60] sm:$0xff] %v281
                  %v283 = vld [vmem:[%s255 + $0xd0] sm:$0xff]
                  %284 = vst [vmem:[%s256 + $0x68] sm:$0xff] %v283
                  %v285 = vld [vmem:[%s255 + $0xe0] sm:$0xff]
                  %286 = vst [vmem:[%s256 + $0x70] sm:$0xff] %v285
                  %v287 = vld [vmem:[%s255 + $0xf0] sm:$0xff]
                  %288 = vst [vmem:[%s256 + $0x78] sm:$0xff] %v287
                  %v289 = vld [vmem:[%s255 + $0x100] sm:$0xff]
                  %290 = vst [vmem:[%s256 + $0x80] sm:$0xff] %v289
                  %v291 = vld [vmem:[%s255 + $0x110] sm:$0xff]
                  %292 = vst [vmem:[%s256 + $0x88] sm:$0xff] %v291
                  %v293 = vld [vmem:[%s255 + $0x120] sm:$0xff]
                  %294 = vst [vmem:[%s256 + $0x90] sm:$0xff] %v293
                  %v295 = vld [vmem:[%s255 + $0x130] sm:$0xff]
                  %296 = vst [vmem:[%s256 + $0x98] sm:$0xff] %v295
                  %v297 = vld [vmem:[%s255 + $0x140] sm:$0xff]
                  %298 = vst [vmem:[%s256 + $0xa0] sm:$0xff] %v297
                  %v299 = vld [vmem:[%s255 + $0x150] sm:$0xff]
                  %300 = vst [vmem:[%s256 + $0xa8] sm:$0xff] %v299
                  %v301 = vld [vmem:[%s255 + $0x160] sm:$0xff]
                  %302 = vst [vmem:[%s256 + $0xb0] sm:$0xff] %v301
                  %v303 = vld [vmem:[%s255 + $0x170] sm:$0xff]
                  %304 = vst [vmem:[%s256 + $0xb8] sm:$0xff] %v303
                  %v305 = vld [vmem:[%s255 + $0x180] sm:$0xff]
                  %306 = vst [vmem:[%s256 + $0xc0] sm:$0xff] %v305
                  %v307 = vld [vmem:[%s255 + $0x190] sm:$0xff]
                  %308 = vst [vmem:[%s256 + $0xc8] sm:$0xff] %v307
                  %v309 = vld [vmem:[%s255 + $0x1a0] sm:$0xff]
                  %310 = vst [vmem:[%s256 + $0xd0] sm:$0xff] %v309
                  %v311 = vld [vmem:[%s255 + $0x1b0] sm:$0xff]
                  %312 = vst [vmem:[%s256 + $0xd8] sm:$0xff] %v311
                  %v313 = vld [vmem:[%s255 + $0x1c0] sm:$0xff]
                  %314 = vst [vmem:[%s256 + $0xe0] sm:$0xff] %v313
                  %v315 = vld [vmem:[%s255 + $0x1d0] sm:$0xff]
                  %316 = vst [vmem:[%s256 + $0xe8] sm:$0xff] %v315
                  %v317 = vld [vmem:[%s255 + $0x1e0] sm:$0xff]
                  %318 = vst [vmem:[%s256 + $0xf0] sm:$0xff] %v317
                  %v319 = vld [vmem:[%s255 + $0x1f0] sm:$0xff]
                  %320 = vst [vmem:[%s256 + $0xf8] sm:$0xff] %v319
                $region52: #{vae_forward.8} parent=46 // loop_footer
                  %s254 = sadd.s32 1, %s250
                $region53: #{vae_forward.8} parent=46 // loop_footer_branch
                  %249 = sbr.rel target = $region49
                $region54: #{vae_forward.8} parent=46 // loop_exit
                  _
              $region47: #{vae_forward.8} parent=31 // pred_fallthru
                _
              // Predicated region
              $region55: #{vae_forward.8} parent=31 // pred_check
                _
              $region56: #{vae_forward.8} parent=31 // pred_check_branch
                %322 = sbr.rel target = $region58
              $region57: #{vae_forward.8} parent=31 // pred_region
                _
              $region58: #{vae_forward.8} parent=31 // pred_fallthru
                _
            $region32: #{vae_forward.8} parent=27 // pred_fallthru
              _
            // Predicated region
            $region33: #{vae_forward.8} parent=27 // pred_check
              _
            $region34: #{vae_forward.8} parent=27 // pred_check_branch
              %173 = sbr.rel target = $region36
            $region35: #{vae_forward.8} parent=27 // pred_region
              loop: start=0, step=1, limit=1
              $region37: #{vae_forward.8} parent=35 // loop_pre_header
                _
              $region38: #{vae_forward.8} parent=35 // loop_header
                %s176 = sphi 0, %s180
                %p177 = scmp.ge.s32.totalorder %s176, 1
                %s181 = sphi %s167, %s167
                %s182 = sphi %s161, %s161
              $region39: #{vae_forward.8} parent=35 // loop_header_branch
                %179 = sbr.rel (%p177) target = $region43
              $region40: #{vae_forward.8} parent=35 // loop_body
                %v183 = vld [vmem:[%s181] sm:$0xff]
                %184 = vst [vmem:[%s182] sm:$0xff] %v183
                %v185 = vld [vmem:[%s181 + $0x10] sm:$0xff]
                %186 = vst [vmem:[%s182 + $0x8] sm:$0xff] %v185
                %v187 = vld [vmem:[%s181 + $0x20] sm:$0xff]
                %188 = vst [vmem:[%s182 + $0x10] sm:$0xff] %v187
                %v189 = vld [vmem:[%s181 + $0x30] sm:$0xff]
                %190 = vst [vmem:[%s182 + $0x18] sm:$0xff] %v189
                %v191 = vld [vmem:[%s181 + $0x40] sm:$0xff]
                %192 = vst [vmem:[%s182 + $0x20] sm:$0xff] %v191
                %v193 = vld [vmem:[%s181 + $0x50] sm:$0xff]
                %194 = vst [vmem:[%s182 + $0x28] sm:$0xff] %v193
                %v195 = vld [vmem:[%s181 + $0x60] sm:$0xff]
                %196 = vst [vmem:[%s182 + $0x30] sm:$0xff] %v195
                %v197 = vld [vmem:[%s181 + $0x70] sm:$0xff]
                %198 = vst [vmem:[%s182 + $0x38] sm:$0xff] %v197
                %v199 = vld [vmem:[%s181 + $0x80] sm:$0xff]
                %200 = vst [vmem:[%s182 + $0x40] sm:$0xff] %v199
                %v201 = vld [vmem:[%s181 + $0x90] sm:$0xff]
                %202 = vst [vmem:[%s182 + $0x48] sm:$0xff] %v201
                %v203 = vld [vmem:[%s181 + $0xa0] sm:$0xff]
                %204 = vst [vmem:[%s182 + $0x50] sm:$0xff] %v203
                %v205 = vld [vmem:[%s181 + $0xb0] sm:$0xff]
                %206 = vst [vmem:[%s182 + $0x58] sm:$0xff] %v205
                %v207 = vld [vmem:[%s181 + $0xc0] sm:$0xff]
                %208 = vst [vmem:[%s182 + $0x60] sm:$0xff] %v207
                %v209 = vld [vmem:[%s181 + $0xd0] sm:$0xff]
                %210 = vst [vmem:[%s182 + $0x68] sm:$0xff] %v209
                %v211 = vld [vmem:[%s181 + $0xe0] sm:$0xff]
                %212 = vst [vmem:[%s182 + $0x70] sm:$0xff] %v211
                %v213 = vld [vmem:[%s181 + $0xf0] sm:$0xff]
                %214 = vst [vmem:[%s182 + $0x78] sm:$0xff] %v213
                %v215 = vld [vmem:[%s181 + $0x100] sm:$0xff]
                %216 = vst [vmem:[%s182 + $0x80] sm:$0xff] %v215
                %v217 = vld [vmem:[%s181 + $0x110] sm:$0xff]
                %218 = vst [vmem:[%s182 + $0x88] sm:$0xff] %v217
                %v219 = vld [vmem:[%s181 + $0x120] sm:$0xff]
                %220 = vst [vmem:[%s182 + $0x90] sm:$0xff] %v219
                %v221 = vld [vmem:[%s181 + $0x130] sm:$0xff]
                %222 = vst [vmem:[%s182 + $0x98] sm:$0xff] %v221
                %v223 = vld [vmem:[%s181 + $0x140] sm:$0xff]
                %224 = vst [vmem:[%s182 + $0xa0] sm:$0xff] %v223
                %v225 = vld [vmem:[%s181 + $0x150] sm:$0xff]
                %226 = vst [vmem:[%s182 + $0xa8] sm:$0xff] %v225
                %v227 = vld [vmem:[%s181 + $0x160] sm:$0xff]
                %228 = vst [vmem:[%s182 + $0xb0] sm:$0xff] %v227
                %v229 = vld [vmem:[%s181 + $0x170] sm:$0xff]
                %230 = vst [vmem:[%s182 + $0xb8] sm:$0xff] %v229
                %v231 = vld [vmem:[%s181 + $0x180] sm:$0xff]
                %232 = vst [vmem:[%s182 + $0xc0] sm:$0xff] %v231
                %v233 = vld [vmem:[%s181 + $0x190] sm:$0xff]
                %234 = vst [vmem:[%s182 + $0xc8] sm:$0xff] %v233
                %v235 = vld [vmem:[%s181 + $0x1a0] sm:$0xff]
                %236 = vst [vmem:[%s182 + $0xd0] sm:$0xff] %v235
                %v237 = vld [vmem:[%s181 + $0x1b0] sm:$0xff]
                %238 = vst [vmem:[%s182 + $0xd8] sm:$0xff] %v237
                %v239 = vld [vmem:[%s181 + $0x1c0] sm:$0xff]
                %240 = vst [vmem:[%s182 + $0xe0] sm:$0xff] %v239
                %v241 = vld [vmem:[%s181 + $0x1d0] sm:$0xff]
                %242 = vst [vmem:[%s182 + $0xe8] sm:$0xff] %v241
                %v243 = vld [vmem:[%s181 + $0x1e0] sm:$0xff]
                %244 = vst [vmem:[%s182 + $0xf0] sm:$0xff] %v243
                %v245 = vld [vmem:[%s181 + $0x1f0] sm:$0xff]
                %246 = vst [vmem:[%s182 + $0xf8] sm:$0xff] %v245
              $region41: #{vae_forward.8} parent=35 // loop_footer
                %s180 = sadd.s32 1, %s176
              $region42: #{vae_forward.8} parent=35 // loop_footer_branch
                %175 = sbr.rel target = $region38
              $region43: #{vae_forward.8} parent=35 // loop_exit
                _
            $region36: #{vae_forward.8} parent=27 // pred_fallthru
              _
          $region28: #{vae_forward.8} parent=23 // pred_fallthru
            _
          %323 = vnop
        $region24: #{vae_forward.8} parent=19 // pred_fallthru
          _
        // Predicated region
        $region59: #{vae_forward.8} parent=19 // pred_check
          %p324 = pneg %p95
        $region60: #{vae_forward.8} parent=19 // pred_check_branch
          %326 = sbr.rel (%p324) target = $region62
        $region61: #{vae_forward.8} parent=19 // pred_region
          %s327 = smul.u32 2, %s16
          %p328 = scmp.lt.s32.totalorder %s327, 3
          %s329 = scalar_select %p328, %s327, 3
          %s330 = scalar_lea.vmem %s2, %s329
          %s331 = smul.u32 2, %s16
        $region62: #{vae_forward.8} parent=19 // pred_fallthru
          _
      $region20: #{vae_forward.8} parent=5 // pred_fallthru
        _
      %p332 = scmp.le.s32.totalorder 1, %s9
      %p333 = scmp.lt.s32.totalorder %s9, 3
      %p334 = pnand %p332, %p333
      %p335 = pneg %p334
      // Predicated region
      $region63: #{vae_forward.8} parent=5 // pred_check
        _
      $region64: #{vae_forward.8} parent=5 // pred_check_branch
        %337 = sbr.rel (%p334) target = $region66
      $region65: #{vae_forward.8} parent=5 // pred_region
        %s338 = ssub.s32 %s9, 1
        %s339 = sand.u32 %s62, 1
        %s340 = sand.u32 %s62, 1
        %s341 = smul.addr %s340, 256
        %s342 = scalar_lea.vmem [#allocation3], %s341
        // Predicated region
        $region67: #{vae_forward.8} parent=65 // pred_check
          %p343 = pneg %p75
        $region68: #{vae_forward.8} parent=65 // pred_check_branch
          %345 = sbr.rel (%p343) target = $region70
        $region69: #{vae_forward.8} parent=65 // pred_region
          _
        $region70: #{vae_forward.8} parent=65 // pred_fallthru
          _
        %s346 = smul.u32 2, %s19
        %p347 = scmp.lt.s32.totalorder %s346, 1
        %s348 = scalar_select %p347, %s346, 1
        %s349 = smul.addr %s348, 4
        %s350 = scalar_lea.vmem %s0, %s349
        %p351 = pneg %p47
        %p352 = pneg %p44
        %s353 = sand.u32 %s62, 1
        %s354 = sand.u32 %s62, 1
        %s355 = smul.addr %s354, 256
        %s356 = scalar_lea.vmem [#allocation3], %s355
        %p357 = pneg %p75
        %p358 = pneg %p72
        %s359 = smul.u32 2, %s18
        %p360 = scmp.lt.s32.totalorder %s359, 3
        %s361 = scalar_select %p360, %s359, 3
        %s362 = scalar_lea.vmem %s2, %s361
        %p363 = pneg %p101
        %p364 = pneg %p98
        %p365 = pneg %p127
        %p366 = pneg %p124
        %s367 = smul.u32 2, %s18
        %p368 = scmp.lt.s32.totalorder %s367, 3
        %s369 = scalar_select %p368, %s367, 3
        %s370 = smul.addr %s369, 4
        %s371 = scalar_lea.vmem %s3, %s370
        %s372 = smul.u32 2, %s19
        %p373 = scmp.lt.s32.totalorder %s372, 1
        %s374 = scalar_select %p373, %s372, 1
        %s375 = smul.addr %s374, 4
        %s376 = scalar_lea.vmem %s0, %s375
        %s377 = smul.u32 2, %s19
        %s378 = smul.u32 32, %s19
        %s379 = smul.u32 2, %s18
        %s380 = smul.u32 2, %s18
        %p381 = scmp.lt.s32.totalorder %s380, 3
        %s382 = scalar_select %p381, %s380, 3
        %s383 = scalar_lea.vmem %s2, %s382
        %s384 = smul.u32 2, %s18
        %s385 = smul.u32 2, %s18
        %p386 = scmp.lt.s32.totalorder %s385, 3
        %s387 = scalar_select %p386, %s385, 3
        %s388 = smul.addr %s387, 4
        %s389 = scalar_lea.vmem %s3, %s388
        %s390 = smul.u32 2, %s18
        %p391 = scmp.eq.s32.totalorder %s19, 0
        // Predicated region
        $region71: #{vae_forward.8} parent=65 // pred_check
          %p392 = pneg %p391
        $region72: #{vae_forward.8} parent=65 // pred_check_branch
          %394 = sbr.rel (%p392) target = $region74
        $region73: #{vae_forward.8} parent=65 // pred_region
          %395 = vst [vmem:[#allocation2] sm:$0xff] 0.0
          %396 = vst [vmem:[#allocation2 + $0x8] sm:$0xff] 0.0
        $region74: #{vae_forward.8} parent=65 // pred_fallthru
          _
        %v397 = vld [vmem:[#allocation2] sm:$0xff]
        %v398 = vld [vmem:[#allocation2 + $0x8] sm:$0xff]
        %v399 = vld [vmem:[%s376] sm:$0xff]
        %v400 = vld [vmem:[%s342] sm:$0xff]
        %v401 = vld [vmem:[%s342 + $0x8] sm:$0xff]
        %v402 = vld [vmem:[%s342 + $0x10] sm:$0xff]
        %v403 = vld [vmem:[%s342 + $0x18] sm:$0xff]
        %v404 = vld [vmem:[%s342 + $0x20] sm:$0xff]
        %v405 = vld [vmem:[%s342 + $0x28] sm:$0xff]
        %v406 = vld [vmem:[%s342 + $0x30] sm:$0xff]
        %v407 = vld [vmem:[%s342 + $0x38] sm:$0xff]
        %v408 = vld [vmem:[%s342 + $0x40] sm:$0xff]
        %v409 = vld [vmem:[%s342 + $0x48] sm:$0xff]
        %v410 = vld [vmem:[%s342 + $0x50] sm:$0xff]
        %v411 = vld [vmem:[%s342 + $0x58] sm:$0xff]
        %v412 = vld [vmem:[%s342 + $0x60] sm:$0xff]
        %v413 = vld [vmem:[%s342 + $0x68] sm:$0xff]
        %v414 = vld [vmem:[%s342 + $0x70] sm:$0xff]
        %v415 = vld [vmem:[%s342 + $0x78] sm:$0xff]
        %v416 = vld [vmem:[%s342 + $0x80] sm:$0xff]
        %v417 = vld [vmem:[%s342 + $0x88] sm:$0xff]
        %v418 = vld [vmem:[%s342 + $0x90] sm:$0xff]
        %v419 = vld [vmem:[%s342 + $0x98] sm:$0xff]
        %v420 = vld [vmem:[%s342 + $0xa0] sm:$0xff]
        %v421 = vld [vmem:[%s342 + $0xa8] sm:$0xff]
        %v422 = vld [vmem:[%s342 + $0xb0] sm:$0xff]
        %v423 = vld [vmem:[%s342 + $0xb8] sm:$0xff]
        %v424 = vld [vmem:[%s342 + $0xc0] sm:$0xff]
        %v425 = vld [vmem:[%s342 + $0xc8] sm:$0xff]
        %v426 = vld [vmem:[%s342 + $0xd0] sm:$0xff]
        %v427 = vld [vmem:[%s342 + $0xd8] sm:$0xff]
        %v428 = vld [vmem:[%s342 + $0xe0] sm:$0xff]
        %v429 = vld [vmem:[%s342 + $0xe8] sm:$0xff]
        %v430 = vld [vmem:[%s342 + $0xf0] sm:$0xff]
        %v431 = vld [vmem:[%s342 + $0xf8] sm:$0xff]
        %v433 = vunpack.c.l.b16 %v399
        %v434 = vunpack.c.h.b16 %v399
        %v435 = vpack.c.b16 %v433, %v433
        %v436 = vpack.c.b16 %v434, %v434
        %v471 = vunpack.c.l.b16 %v400
        %v472 = vunpack.c.h.b16 %v400
        %v473 = vunpack.c.l.b16 %v401
        %v474 = vunpack.c.h.b16 %v401
        %v475 = vunpack.c.l.b16 %v402
        %v476 = vunpack.c.h.b16 %v402
        %v477 = vunpack.c.l.b16 %v403
        %v478 = vunpack.c.h.b16 %v403
        %v479 = vunpack.c.l.b16 %v404
        %v480 = vunpack.c.h.b16 %v404
        %v481 = vunpack.c.l.b16 %v405
        %v482 = vunpack.c.h.b16 %v405
        %v483 = vunpack.c.l.b16 %v406
        %v484 = vunpack.c.h.b16 %v406
        %v485 = vunpack.c.l.b16 %v407
        %v486 = vunpack.c.h.b16 %v407
        %v487 = vunpack.c.l.b16 %v408
        %v488 = vunpack.c.h.b16 %v408
        %v489 = vunpack.c.l.b16 %v409
        %v490 = vunpack.c.h.b16 %v409
        %v491 = vunpack.c.l.b16 %v410
        %v492 = vunpack.c.h.b16 %v410
        %v493 = vunpack.c.l.b16 %v411
        %v494 = vunpack.c.h.b16 %v411
        %v495 = vunpack.c.l.b16 %v412
        %v496 = vunpack.c.h.b16 %v412
        %v497 = vunpack.c.l.b16 %v413
        %v498 = vunpack.c.h.b16 %v413
        %v499 = vunpack.c.l.b16 %v414
        %v500 = vunpack.c.h.b16 %v414
        %v501 = vunpack.c.l.b16 %v415
        %v502 = vunpack.c.h.b16 %v415
        %v503 = vunpack.c.l.b16 %v416
        %v504 = vunpack.c.h.b16 %v416
        %v505 = vunpack.c.l.b16 %v417
        %v506 = vunpack.c.h.b16 %v417
        %v507 = vunpack.c.l.b16 %v418
        %v508 = vunpack.c.h.b16 %v418
        %v509 = vunpack.c.l.b16 %v419
        %v510 = vunpack.c.h.b16 %v419
        %v511 = vunpack.c.l.b16 %v420
        %v512 = vunpack.c.h.b16 %v420
        %v513 = vunpack.c.l.b16 %v421
        %v514 = vunpack.c.h.b16 %v421
        %v515 = vunpack.c.l.b16 %v422
        %v516 = vunpack.c.h.b16 %v422
        %v517 = vunpack.c.l.b16 %v423
        %v518 = vunpack.c.h.b16 %v423
        %v519 = vunpack.c.l.b16 %v424
        %v520 = vunpack.c.h.b16 %v424
        %v521 = vunpack.c.l.b16 %v425
        %v522 = vunpack.c.h.b16 %v425
        %v523 = vunpack.c.l.b16 %v426
        %v524 = vunpack.c.h.b16 %v426
        %v525 = vunpack.c.l.b16 %v427
        %v526 = vunpack.c.h.b16 %v427
        %v527 = vunpack.c.l.b16 %v428
        %v528 = vunpack.c.h.b16 %v428
        %v529 = vunpack.c.l.b16 %v429
        %v530 = vunpack.c.h.b16 %v429
        %v531 = vunpack.c.l.b16 %v430
        %v532 = vunpack.c.h.b16 %v430
        %v533 = vunpack.c.l.b16 %v431
        %v534 = vunpack.c.h.b16 %v431
        %v535 = vpack.c.b16 %v473, %v471
        %v536 = vpack.c.b16 %v474, %v472
        %v537 = vpack.c.b16 %v477, %v475
        %v538 = vpack.c.b16 %v478, %v476
        %v539 = vpack.c.b16 %v481, %v479
        %v540 = vpack.c.b16 %v482, %v480
        %v541 = vpack.c.b16 %v485, %v483
        %v542 = vpack.c.b16 %v486, %v484
        %v543 = vpack.c.b16 %v489, %v487
        %v544 = vpack.c.b16 %v490, %v488
        %v545 = vpack.c.b16 %v493, %v491
        %v546 = vpack.c.b16 %v494, %v492
        %v547 = vpack.c.b16 %v497, %v495
        %v548 = vpack.c.b16 %v498, %v496
        %v549 = vpack.c.b16 %v501, %v499
        %v550 = vpack.c.b16 %v502, %v500
        %v551 = vpack.c.b16 %v505, %v503
        %v552 = vpack.c.b16 %v506, %v504
        %v553 = vpack.c.b16 %v509, %v507
        %v554 = vpack.c.b16 %v510, %v508
        %v555 = vpack.c.b16 %v513, %v511
        %v556 = vpack.c.b16 %v514, %v512
        %v557 = vpack.c.b16 %v517, %v515
        %v558 = vpack.c.b16 %v518, %v516
        %v559 = vpack.c.b16 %v521, %v519
        %v560 = vpack.c.b16 %v522, %v520
        %v561 = vpack.c.b16 %v525, %v523
        %v562 = vpack.c.b16 %v526, %v524
        %v563 = vpack.c.b16 %v529, %v527
        %v564 = vpack.c.b16 %v530, %v528
        %v565 = vpack.c.b16 %v533, %v531
        %v566 = vpack.c.b16 %v534, %v532
        %599 = vmatprep.subr.bf16.mxu0 %v536
        %600 = vmatpush1.bf16.msra.mxu0 %v535
        %601 = vmatprep.subr.bf16.mxu0 %v538
        %602 = vmatpush1.bf16.msra.mxu0 %v537
        %603 = vmatprep.subr.bf16.mxu0 %v540
        %604 = vmatpush1.bf16.msra.mxu0 %v539
        %605 = vmatprep.subr.bf16.mxu0 %v542
        %606 = vmatpush1.bf16.msra.mxu0 %v541
        %607 = vmatprep.subr.bf16.mxu0 %v544
        %608 = vmatpush1.bf16.msra.mxu0 %v543
        %609 = vmatprep.subr.bf16.mxu0 %v546
        %610 = vmatpush1.bf16.msra.mxu0 %v545
        %611 = vmatprep.subr.bf16.mxu0 %v548
        %612 = vmatpush1.bf16.msra.mxu0 %v547
        %613 = vmatprep.subr.bf16.mxu0 %v550
        %614 = vmatpush1.bf16.msra.mxu0 %v549
        %615 = vmatprep.subr.bf16.mxu0 %v552
        %616 = vmatpush1.bf16.msra.mxu0 %v551
        %617 = vmatprep.subr.bf16.mxu0 %v554
        %618 = vmatpush1.bf16.msra.mxu0 %v553
        %619 = vmatprep.subr.bf16.mxu0 %v556
        %620 = vmatpush1.bf16.msra.mxu0 %v555
        %621 = vmatprep.subr.bf16.mxu0 %v558
        %622 = vmatpush1.bf16.msra.mxu0 %v557
        %623 = vmatprep.subr.bf16.mxu0 %v560
        %624 = vmatpush1.bf16.msra.mxu0 %v559
        %625 = vmatprep.subr.bf16.mxu0 %v562
        %626 = vmatpush1.bf16.msra.mxu0 %v561
        %627 = vmatprep.subr.bf16.mxu0 %v564
        %628 = vmatpush1.bf16.msra.mxu0 %v563
        %629 = vmatprep.subr.bf16.mxu0 %v566
        %630 = vmatpush1.bf16.msra.mxu0 %v565
        %631 = vmatprep.mubr.bf16.mxu0 %v436
        %632 = vmatmul.mubr.bf16.gmra.mrb[0].mxu0 %v435
        %v633 = vpop.f32.mrb[0].mxu0
        %v634 = vadd.f32 0.0, %v633
        %v635 = vpop.f32.mrb[0].mxu0
        %v636 = vadd.f32 0.0, %v635
        %v637 = vpop.f32.mrb[0].mxu0
        %v638 = vpop.f32.mrb[0].mxu0
        %639 = vdwg.mxu0
        %v640 = vadd.f32 %v397, %v634
        %v641 = vadd.f32 %v398, %v636
        %642 = vst [vmem:[#allocation2] sm:$0xff] %v640
        %643 = vst [vmem:[#allocation2 + $0x8] sm:$0xff] %v641
        // Predicated region
        $region75: #{vae_forward.8} parent=65 // pred_check
          %p644 = pneg %p391
        $region76: #{vae_forward.8} parent=65 // pred_check_branch
          %646 = sbr.rel (%p644) target = $region78
        $region77: #{vae_forward.8} parent=65 // pred_region
          %v647 = vld [vmem:[#allocation2] sm:$0xff]
          %v648 = vld [vmem:[#allocation2 + $0x8] sm:$0xff]
          %v649 = vld [vmem:[%s383] sm:$0x3]
          %v651 = vlaneseq
          %v652 = vshrl.u32 %v651, 7
          %v653 = vsub.s32 0, %v652
          %v654 = vrot.slane %v649, %v653
          %v655 = vlaneseq
          %v656 = vshrl.u32 %v655, 7
          %v657 = vsub.s32 1, %v656
          %v658 = vrot.slane %v649, %v657
          %v661 = vadd.f32 %v647, %v654
          %v662 = vadd.f32 %v648, %v658
          %v663 = vmax.f32 %v661, 0.0
          %v664 = vmax.f32 %v662, 0.0
          %v665 = vpack.c.bf16 %v663, %v663
          %v666 = vpack.c.bf16 %v664, %v664
          %v669 = vunpack.c.l.b16 %v665
          %v670 = vunpack.c.l.b16 %v666
          %v671 = vpack.c.b16 %v670, %v669
          %673 = vst [vmem:[%s389] sm:$0xff] %v671
        $region78: #{vae_forward.8} parent=65 // pred_fallthru
          _
        %s674 = smul.u32 2, %s18
        %p675 = scmp.lt.s32.totalorder %s674, 3
        %s676 = scalar_select %p675, %s674, 3
        %s677 = smul.addr %s676, 4
        %s678 = scalar_lea.vmem %s3, %s677
        // Predicated region
        $region79: #{vae_forward.8} parent=65 // pred_check
          %p679 = pneg %p124
        $region80: #{vae_forward.8} parent=65 // pred_check_branch
          %681 = sbr.rel (%p679) target = $region82
        $region81: #{vae_forward.8} parent=65 // pred_region
          %s682 = smul.u32 2, %s18
        $region82: #{vae_forward.8} parent=65 // pred_fallthru
          _
      $region66: #{vae_forward.8} parent=5 // pred_fallthru
        _
      %p683 = scmp.le.s32.totalorder 2, %s9
      // Predicated region
      $region83: #{vae_forward.8} parent=5 // pred_check
        %p684 = pneg %p683
      $region84: #{vae_forward.8} parent=5 // pred_check_branch
        %686 = sbr.rel (%p684) target = $region86
      $region85: #{vae_forward.8} parent=5 // pred_region
        %s687 = ssub.s32 %s9, 2
        // Predicated region
        $region87: #{vae_forward.8} parent=85 // pred_check
          %p688 = pneg %p130
        $region88: #{vae_forward.8} parent=85 // pred_check_branch
          %690 = sbr.rel (%p688) target = $region90
        $region89: #{vae_forward.8} parent=85 // pred_region
          %s691 = smul.u32 2, %s20
          %p692 = scmp.lt.s32.totalorder %s691, 3
          %s693 = scalar_select %p692, %s691, 3
          %s694 = smul.addr %s693, 4
          %s695 = scalar_lea.vmem %s3, %s694
        $region90: #{vae_forward.8} parent=85 // pred_fallthru
          _
      $region86: #{vae_forward.8} parent=5 // pred_fallthru
        _
    $region6: #{vae_forward.8} parent=1 // loop_footer
      %s13 = sadd.s32 1, %s9
    $region7: #{vae_forward.8} parent=1 // loop_footer_branch
      %8 = sbr.rel target = $region3
    $region8: #{vae_forward.8} parent=1 // loop_exit
      _

// kernel: vae_forward.6
$region0: #{vae_forward.6}
  #allocation0 [shape = 'u32[]', space=smem, size = 0x4, offset = 0x4, fixed_abs, tag = 'smem constant byte address 0x4 - core index']
  #allocation1 [shape = 'u32[144,128]{1,0:T(1,128)}', space=vmem, size = 0x12000, scoped, tag = 'internal scratch']
  #allocation2 [shape = 'f32[8,128]{1,0:T(8,128)}', space=vmem, size = 0x1000, scoped, tag = 'scratch operand']
  %s0 = inlined_call_operand.vmem [shape: bf16[8,512], index: 0, kind: input, shape index: {}]
  %s1 = inlined_call_operand.vmem [shape: bf16[512,256], index: 1, kind: input, shape index: {}]
  %s2 = inlined_call_operand.vmem [shape: f32[1,256], index: 2, kind: input, shape index: {}]
  %s3 = inlined_call_operand.vmem [shape: bf16[8,256], index: 3, kind: output, shape index: {}]
  %s4 = sld [smem:[#allocation0]]
  $region94: #{vae_forward.6} parent=0
    _
  %s6 = ssub.s32 1, %s4
  %s7 = scalar_select 0, %s6, %s4
  $region1: #{vae_forward.6} parent=0
    #allocation3 [shape = 'u8[262144]{0}', space=vmem, size = 0x40000, scoped, tag = 'input window, operand 1']
    loop: start=0, step=1, limit=4
    $region2: #{vae_forward.6} parent=1 // loop_pre_header
      _
    $region3: #{vae_forward.6} parent=1 // loop_header
      %s9 = sphi 0, %s13
      %p10 = scmp.ge.s32.totalorder %s9, 4
      %s16 = sphi 0, %s28
      %s17 = sphi 0, %s24
      %s18 = sphi 0, %s16
      %s19 = sphi 0, %s17
      %s20 = sphi 0, %s18
      %s21 = sphi 0, %s19
      %s31 = sphi 0, %s33
      %s34 = sphi 0, %s31
      %s35 = sphi 0, %s34
      %s51 = sphi 0, %s35
      %s59 = sphi 0, %s61
      %s62 = sphi 0, %s59
      %s63 = sphi 0, %s62
      %s79 = sphi 0, %s63
      %s85 = sphi 0, %s87
      %s88 = sphi 0, %s85
      %s89 = sphi 0, %s88
      %s105 = sphi 0, %s89
      %s111 = sphi 0, %s113
      %s114 = sphi 0, %s111
      %s115 = sphi 0, %s114
      %s131 = sphi 0, %s115
    $region4: #{vae_forward.6} parent=1 // loop_header_branch
      %12 = sbr.rel (%p10) target = $region8
    $region5: #{vae_forward.6} parent=1 // loop_body
      %s14 = ssub.s32 %s9, 1
      %s15 = ssub.s32 %s9, 2
      %s22 = sadd.s32 1, %s17
      %p23 = scmp.ge.s32.totalorder %s22, 1
      %s24 = scalar_select %p23, 0, %s22
      %s25 = sadd.s32 1, %s16
      %s26 = scalar_select %p23, %s25, %s16
      %p27 = scmp.ge.s32.totalorder %s26, 2
      %s28 = scalar_select %p27, 0, %s26
      %s29 = ssub.s32 %s17, %s24
      %p30 = scmp.eq.s32.totalorder %s29, 0
      %s32 = sadd.s32 %s31, 1
      %s33 = scalar_select %p30, %s31, %s32
      %p36 = pneg %p30
      %p37 = scmp.eq.s32.totalorder %s9, 1
      %p38 = por %p36, %p37
      %p39 = scmp.ne.s32.totalorder %s31, %s34
      %p40 = scmp.eq.s32.totalorder %s9, 0
      %p41 = por %p39, %p40
      %p42 = scmp.ne.s32.totalorder %s31, %s34
      %p43 = scmp.eq.s32.totalorder %s14, 1
      %p44 = por %p42, %p43
      %p45 = scmp.ne.s32.totalorder %s34, %s35
      %p46 = scmp.eq.s32.totalorder %s14, 0
      %p47 = por %p45, %p46
      %p48 = scmp.ne.s32.totalorder %s34, %s35
      %p49 = scmp.eq.s32.totalorder %s15, 1
      %p50 = por %p48, %p49
      %p52 = scmp.ne.s32.totalorder %s35, %s51
      %p53 = scmp.eq.s32.totalorder %s15, 0
      %p54 = por %p52, %p53
      %s55 = ssub.s32 %s17, %s24
      %s56 = ssub.s32 %s16, %s28
      %s57 = sor.u32 %s55, %s56
      %p58 = scmp.eq.s32.totalorder %s57, 0
      %s60 = sadd.s32 %s59, 1
      %s61 = scalar_select %p58, %s59, %s60
      %p64 = pneg %p58
      %p65 = scmp.eq.s32.totalorder %s9, 1
      %p66 = por %p64, %p65
      %p67 = scmp.ne.s32.totalorder %s59, %s62
      %p68 = scmp.eq.s32.totalorder %s9, 0
      %p69 = por %p67, %p68
      %p70 = scmp.ne.s32.totalorder %s59, %s62
      %p71 = scmp.eq.s32.totalorder %s14, 1
      %p72 = por %p70, %p71
      %p73 = scmp.ne.s32.totalorder %s62, %s63
      %p74 = scmp.eq.s32.totalorder %s14, 0
      %p75 = por %p73, %p74
      %p76 = scmp.ne.s32.totalorder %s62, %s63
      %p77 = scmp.eq.s32.totalorder %s15, 1
      %p78 = por %p76, %p77
      %p80 = scmp.ne.s32.totalorder %s63, %s79
      %p81 = scmp.eq.s32.totalorder %s15, 0
      %p82 = por %p80, %p81
      %s83 = ssub.s32 %s16, %s28
      %p84 = scmp.eq.s32.totalorder %s83, 0
      %s86 = sadd.s32 %s85, 1
      %s87 = scalar_select %p84, %s85, %s86
      %p90 = pneg %p84
      %p91 = scmp.eq.s32.totalorder %s9, 1
      %p92 = por %p90, %p91
      %p93 = scmp.ne.s32.totalorder %s85, %s88
      %p94 = scmp.eq.s32.totalorder %s9, 0
      %p95 = por %p93, %p94
      %p96 = scmp.ne.s32.totalorder %s85, %s88
      %p97 = scmp.eq.s32.totalorder %s14, 1
      %p98 = por %p96, %p97
      %p99 = scmp.ne.s32.totalorder %s88, %s89
      %p100 = scmp.eq.s32.totalorder %s14, 0
      %p101 = por %p99, %p100
      %p102 = scmp.ne.s32.totalorder %s88, %s89
      %p103 = scmp.eq.s32.totalorder %s15, 1
      %p104 = por %p102, %p103
      %p106 = scmp.ne.s32.totalorder %s89, %s105
      %p107 = scmp.eq.s32.totalorder %s15, 0
      %p108 = por %p106, %p107
      %s109 = ssub.s32 %s16, %s28
      %p110 = scmp.eq.s32.totalorder %s109, 0
      %s112 = sadd.s32 %s111, 1
      %s113 = scalar_select %p110, %s111, %s112
      %p116 = pneg %p110
      %p117 = scmp.eq.s32.totalorder %s9, 1
      %p118 = por %p116, %p117
      %p119 = scmp.ne.s32.totalorder %s111, %s114
      %p120 = scmp.eq.s32.totalorder %s9, 0
      %p121 = por %p119, %p120
      %p122 = scmp.ne.s32.totalorder %s111, %s114
      %p123 = scmp.eq.s32.totalorder %s14, 1
      %p124 = por %p122, %p123
      %p125 = scmp.ne.s32.totalorder %s114, %s115
      %p126 = scmp.eq.s32.totalorder %s14, 0
      %p127 = por %p125, %p126
      %p128 = scmp.ne.s32.totalorder %s114, %s115
      %p129 = scmp.eq.s32.totalorder %s15, 1
      %p130 = por %p128, %p129
      %p132 = scmp.ne.s32.totalorder %s115, %s131
      %p133 = scmp.eq.s32.totalorder %s15, 0
      %p134 = por %p132, %p133
      %p135 = scmp.le.s32.totalorder 1, %s9
      %p136 = scmp.lt.s32.totalorder %s9, 3
      %p137 = pnand %p135, %p136
      %p138 = pneg %p137
      // Predicated region
      $region9: #{vae_forward.6} parent=5 // pred_check
        _
      $region10: #{vae_forward.6} parent=5 // pred_check_branch
        %140 = sbr.rel (%p137) target = $region12
      $region11: #{vae_forward.6} parent=5 // pred_region
        %s141 = ssub.s32 %s9, 1
        // Predicated region
        $region13: #{vae_forward.6} parent=11 // pred_check
          %p142 = pneg %p47
        $region14: #{vae_forward.6} parent=11 // pred_check_branch
          %144 = sbr.rel (%p142) target = $region16
        $region15: #{vae_forward.6} parent=11 // pred_region
          %s145 = smul.u32 4, %s19
          %p146 = scmp.lt.s32.totalorder %s145, 3
          %s147 = scalar_select %p146, %s145, 3
          %s148 = smul.addr %s147, 4
          %s149 = scalar_lea.vmem %s0, %s148
          %s150 = smul.u32 4, %s19
        $region16: #{vae_forward.6} parent=11 // pred_fallthru
          _
      $region12: #{vae_forward.6} parent=5 // pred_fallthru
        _
      %p151 = scmp.lt.s32.totalorder %s9, 2
      // Predicated region
      $region17: #{vae_forward.6} parent=5 // pred_check
        %p152 = pneg %p151
      $region18: #{vae_forward.6} parent=5 // pred_check_branch
        %154 = sbr.rel (%p152) target = $region20
      $region19: #{vae_forward.6} parent=5 // pred_region
        // Predicated region
        $region21: #{vae_forward.6} parent=19 // pred_check
          %p155 = pneg %p69
        $region22: #{vae_forward.6} parent=19 // pred_check_branch
          %157 = sbr.rel (%p155) target = $region24
        $region23: #{vae_forward.6} parent=19 // pred_region
          %s158 = sand.u32 %s59, 1
          %s159 = sand.u32 %s59, 1
          %s160 = smul.addr %s159, 256
          %s161 = scalar_lea.vmem [#allocation3], %s160
          %s162 = smul.u32 64, %s17
          %s163 = smul.addr %s162, 2
          %s164 = sadd.s32 %s16, %s163
          %s165 = smul.addr %s164, 4
          %s166 = scalar_lea.vmem %s1, %s165
          // Predicated region
          $region25: #{vae_forward.6} parent=23 // pred_check
            _
          $region26: #{vae_forward.6} parent=23 // pred_check_branch
            %168 = sbr.rel (0) target = $region28
          $region27: #{vae_forward.6} parent=23 // pred_region
            // Predicated region
            $region29: #{vae_forward.6} parent=27 // pred_check
              _
            $region30: #{vae_forward.6} parent=27 // pred_check_branch
              %170 = sbr.rel target = $region32
            $region31: #{vae_forward.6} parent=27 // pred_region
              // Predicated region
              $region44: #{vae_forward.6} parent=31 // pred_check
                _
              $region45: #{vae_forward.6} parent=31 // pred_check_branch
                %311 = sbr.rel (0) target = $region47
              $region46: #{vae_forward.6} parent=31 // pred_region
                loop: start=0, step=1, limit=1
                $region48: #{vae_forward.6} parent=46 // loop_pre_header
                  _
                $region49: #{vae_forward.6} parent=46 // loop_header
                  %s313 = sphi 0, %s317
                  %p314 = scmp.ge.s32.totalorder %s313, 1
                  %s318 = sphi %s166, %s166
                  %s319 = sphi %s161, %s161
                $region50: #{vae_forward.6} parent=46 // loop_header_branch
                  %316 = sbr.rel (%p314) target = $region54
                $region51: #{vae_forward.6} parent=46 // loop_body
                  _
                $region52: #{vae_forward.6} parent=46 // loop_footer
                  %s317 = sadd.s32 1, %s313
                $region53: #{vae_forward.6} parent=46 // loop_footer_branch
                  %312 = sbr.rel target = $region49
                $region54: #{vae_forward.6} parent=46 // loop_exit
                  _
                loop: start=0, step=1, limit=1
                $region55: #{vae_forward.6} parent=46 // loop_pre_header
                  _
                $region56: #{vae_forward.6} parent=46 // loop_header
                  %s322 = sphi 0, %s326
                  %p323 = scmp.ge.s32.totalorder %s322, 1
                  %s327 = sphi %s166, %s166
                  %s328 = sphi %s161, %s161
                $region57: #{vae_forward.6} parent=46 // loop_header_branch
                  %325 = sbr.rel (%p323) target = $region61
                $region58: #{vae_forward.6} parent=46 // loop_body
                  %v329 = vld [vmem:[%s327] sm:$0xf]
                  %330 = vst [vmem:[%s328] sm:$0xf] %v329
                  %v331 = vld [vmem:[%s327 + $0x8] sm:$0xf]
                  %332 = vst [vmem:[%s328 + $0x4] sm:$0xf] %v331
                  %v333 = vld [vmem:[%s327 + $0x10] sm:$0xf]
                  %334 = vst [vmem:[%s328 + $0x8] sm:$0xf] %v333
                  %v335 = vld [vmem:[%s327 + $0x18] sm:$0xf]
                  %336 = vst [vmem:[%s328 + $0xc] sm:$0xf] %v335
                  %v337 = vld [vmem:[%s327 + $0x20] sm:$0xf]
                  %338 = vst [vmem:[%s328 + $0x10] sm:$0xf] %v337
                  %v339 = vld [vmem:[%s327 + $0x28] sm:$0xf]
                  %340 = vst [vmem:[%s328 + $0x14] sm:$0xf] %v339
                  %v341 = vld [vmem:[%s327 + $0x30] sm:$0xf]
                  %342 = vst [vmem:[%s328 + $0x18] sm:$0xf] %v341
                  %v343 = vld [vmem:[%s327 + $0x38] sm:$0xf]
                  %344 = vst [vmem:[%s328 + $0x1c] sm:$0xf] %v343
                  %v345 = vld [vmem:[%s327 + $0x40] sm:$0xf]
                  %346 = vst [vmem:[%s328 + $0x20] sm:$0xf] %v345
                  %v347 = vld [vmem:[%s327 + $0x48] sm:$0xf]
                  %348 = vst [vmem:[%s328 + $0x24] sm:$0xf] %v347
                  %v349 = vld [vmem:[%s327 + $0x50] sm:$0xf]
                  %350 = vst [vmem:[%s328 + $0x28] sm:$0xf] %v349
                  %v351 = vld [vmem:[%s327 + $0x58] sm:$0xf]
                  %352 = vst [vmem:[%s328 + $0x2c] sm:$0xf] %v351
                  %v353 = vld [vmem:[%s327 + $0x60] sm:$0xf]
                  %354 = vst [vmem:[%s328 + $0x30] sm:$0xf] %v353
                  %v355 = vld [vmem:[%s327 + $0x68] sm:$0xf]
                  %356 = vst [vmem:[%s328 + $0x34] sm:$0xf] %v355
                  %v357 = vld [vmem:[%s327 + $0x70] sm:$0xf]
                  %358 = vst [vmem:[%s328 + $0x38] sm:$0xf] %v357
                  %v359 = vld [vmem:[%s327 + $0x78] sm:$0xf]
                  %360 = vst [vmem:[%s328 + $0x3c] sm:$0xf] %v359
                  %v361 = vld [vmem:[%s327 + $0x80] sm:$0xf]
                  %362 = vst [vmem:[%s328 + $0x40] sm:$0xf] %v361
                  %v363 = vld [vmem:[%s327 + $0x88] sm:$0xf]
                  %364 = vst [vmem:[%s328 + $0x44] sm:$0xf] %v363
                  %v365 = vld [vmem:[%s327 + $0x90] sm:$0xf]
                  %366 = vst [vmem:[%s328 + $0x48] sm:$0xf] %v365
                  %v367 = vld [vmem:[%s327 + $0x98] sm:$0xf]
                  %368 = vst [vmem:[%s328 + $0x4c] sm:$0xf] %v367
                  %v369 = vld [vmem:[%s327 + $0xa0] sm:$0xf]
                  %370 = vst [vmem:[%s328 + $0x50] sm:$0xf] %v369
                  %v371 = vld [vmem:[%s327 + $0xa8] sm:$0xf]
                  %372 = vst [vmem:[%s328 + $0x54] sm:$0xf] %v371
                  %v373 = vld [vmem:[%s327 + $0xb0] sm:$0xf]
                  %374 = vst [vmem:[%s328 + $0x58] sm:$0xf] %v373
                  %v375 = vld [vmem:[%s327 + $0xb8] sm:$0xf]
                  %376 = vst [vmem:[%s328 + $0x5c] sm:$0xf] %v375
                  %v377 = vld [vmem:[%s327 + $0xc0] sm:$0xf]
                  %378 = vst [vmem:[%s328 + $0x60] sm:$0xf] %v377
                  %v379 = vld [vmem:[%s327 + $0xc8] sm:$0xf]
                  %380 = vst [vmem:[%s328 + $0x64] sm:$0xf] %v379
                  %v381 = vld [vmem:[%s327 + $0xd0] sm:$0xf]
                  %382 = vst [vmem:[%s328 + $0x68] sm:$0xf] %v381
                  %v383 = vld [vmem:[%s327 + $0xd8] sm:$0xf]
                  %384 = vst [vmem:[%s328 + $0x6c] sm:$0xf] %v383
                  %v385 = vld [vmem:[%s327 + $0xe0] sm:$0xf]
                  %386 = vst [vmem:[%s328 + $0x70] sm:$0xf] %v385
                  %v387 = vld [vmem:[%s327 + $0xe8] sm:$0xf]
                  %388 = vst [vmem:[%s328 + $0x74] sm:$0xf] %v387
                  %v389 = vld [vmem:[%s327 + $0xf0] sm:$0xf]
                  %390 = vst [vmem:[%s328 + $0x78] sm:$0xf] %v389
                  %v391 = vld [vmem:[%s327 + $0xf8] sm:$0xf]
                  %392 = vst [vmem:[%s328 + $0x7c] sm:$0xf] %v391
                  %v393 = vld [vmem:[%s327 + $0x100] sm:$0xf]
                  %394 = vst [vmem:[%s328 + $0x80] sm:$0xf] %v393
                  %v395 = vld [vmem:[%s327 + $0x108] sm:$0xf]
                  %396 = vst [vmem:[%s328 + $0x84] sm:$0xf] %v395
                  %v397 = vld [vmem:[%s327 + $0x110] sm:$0xf]
                  %398 = vst [vmem:[%s328 + $0x88] sm:$0xf] %v397
                  %v399 = vld [vmem:[%s327 + $0x118] sm:$0xf]
                  %400 = vst [vmem:[%s328 + $0x8c] sm:$0xf] %v399
                  %v401 = vld [vmem:[%s327 + $0x120] sm:$0xf]
                  %402 = vst [vmem:[%s328 + $0x90] sm:$0xf] %v401
                  %v403 = vld [vmem:[%s327 + $0x128] sm:$0xf]
                  %404 = vst [vmem:[%s328 + $0x94] sm:$0xf] %v403
                  %v405 = vld [vmem:[%s327 + $0x130] sm:$0xf]
                  %406 = vst [vmem:[%s328 + $0x98] sm:$0xf] %v405
                  %v407 = vld [vmem:[%s327 + $0x138] sm:$0xf]
                  %408 = vst [vmem:[%s328 + $0x9c] sm:$0xf] %v407
                  %v409 = vld [vmem:[%s327 + $0x140] sm:$0xf]
                  %410 = vst [vmem:[%s328 + $0xa0] sm:$0xf] %v409
                  %v411 = vld [vmem:[%s327 + $0x148] sm:$0xf]
                  %412 = vst [vmem:[%s328 + $0xa4] sm:$0xf] %v411
                  %v413 = vld [vmem:[%s327 + $0x150] sm:$0xf]
                  %414 = vst [vmem:[%s328 + $0xa8] sm:$0xf] %v413
                  %v415 = vld [vmem:[%s327 + $0x158] sm:$0xf]
                  %416 = vst [vmem:[%s328 + $0xac] sm:$0xf] %v415
                  %v417 = vld [vmem:[%s327 + $0x160] sm:$0xf]
                  %418 = vst [vmem:[%s328 + $0xb0] sm:$0xf] %v417
                  %v419 = vld [vmem:[%s327 + $0x168] sm:$0xf]
                  %420 = vst [vmem:[%s328 + $0xb4] sm:$0xf] %v419
                  %v421 = vld [vmem:[%s327 + $0x170] sm:$0xf]
                  %422 = vst [vmem:[%s328 + $0xb8] sm:$0xf] %v421
                  %v423 = vld [vmem:[%s327 + $0x178] sm:$0xf]
                  %424 = vst [vmem:[%s328 + $0xbc] sm:$0xf] %v423
                  %v425 = vld [vmem:[%s327 + $0x180] sm:$0xf]
                  %426 = vst [vmem:[%s328 + $0xc0] sm:$0xf] %v425
                  %v427 = vld [vmem:[%s327 + $0x188] sm:$0xf]
                  %428 = vst [vmem:[%s328 + $0xc4] sm:$0xf] %v427
                  %v429 = vld [vmem:[%s327 + $0x190] sm:$0xf]
                  %430 = vst [vmem:[%s328 + $0xc8] sm:$0xf] %v429
                  %v431 = vld [vmem:[%s327 + $0x198] sm:$0xf]
                  %432 = vst [vmem:[%s328 + $0xcc] sm:$0xf] %v431
                  %v433 = vld [vmem:[%s327 + $0x1a0] sm:$0xf]
                  %434 = vst [vmem:[%s328 + $0xd0] sm:$0xf] %v433
                  %v435 = vld [vmem:[%s327 + $0x1a8] sm:$0xf]
                  %436 = vst [vmem:[%s328 + $0xd4] sm:$0xf] %v435
                  %v437 = vld [vmem:[%s327 + $0x1b0] sm:$0xf]
                  %438 = vst [vmem:[%s328 + $0xd8] sm:$0xf] %v437
                  %v439 = vld [vmem:[%s327 + $0x1b8] sm:$0xf]
                  %440 = vst [vmem:[%s328 + $0xdc] sm:$0xf] %v439
                  %v441 = vld [vmem:[%s327 + $0x1c0] sm:$0xf]
                  %442 = vst [vmem:[%s328 + $0xe0] sm:$0xf] %v441
                  %v443 = vld [vmem:[%s327 + $0x1c8] sm:$0xf]
                  %444 = vst [vmem:[%s328 + $0xe4] sm:$0xf] %v443
                  %v445 = vld [vmem:[%s327 + $0x1d0] sm:$0xf]
                  %446 = vst [vmem:[%s328 + $0xe8] sm:$0xf] %v445
                  %v447 = vld [vmem:[%s327 + $0x1d8] sm:$0xf]
                  %448 = vst [vmem:[%s328 + $0xec] sm:$0xf] %v447
                  %v449 = vld [vmem:[%s327 + $0x1e0] sm:$0xf]
                  %450 = vst [vmem:[%s328 + $0xf0] sm:$0xf] %v449
                  %v451 = vld [vmem:[%s327 + $0x1e8] sm:$0xf]
                  %452 = vst [vmem:[%s328 + $0xf4] sm:$0xf] %v451
                  %v453 = vld [vmem:[%s327 + $0x1f0] sm:$0xf]
                  %454 = vst [vmem:[%s328 + $0xf8] sm:$0xf] %v453
                  %v455 = vld [vmem:[%s327 + $0x1f8] sm:$0xf]
                  %456 = vst [vmem:[%s328 + $0xfc] sm:$0xf] %v455
                $region59: #{vae_forward.6} parent=46 // loop_footer
                  %s326 = sadd.s32 1, %s322
                $region60: #{vae_forward.6} parent=46 // loop_footer_branch
                  %321 = sbr.rel target = $region56
                $region61: #{vae_forward.6} parent=46 // loop_exit
                  _
              $region47: #{vae_forward.6} parent=31 // pred_fallthru
                _
            $region32: #{vae_forward.6} parent=27 // pred_fallthru
              _
            // Predicated region
            $region33: #{vae_forward.6} parent=27 // pred_check
              _
            $region34: #{vae_forward.6} parent=27 // pred_check_branch
              %172 = sbr.rel (0) target = $region36
            $region35: #{vae_forward.6} parent=27 // pred_region
              loop: start=0, step=1, limit=1
              $region37: #{vae_forward.6} parent=35 // loop_pre_header
                _
              $region38: #{vae_forward.6} parent=35 // loop_header
                %s175 = sphi 0, %s179
                %p176 = scmp.ge.s32.totalorder %s175, 1
                %s180 = sphi %s166, %s166
                %s181 = sphi %s161, %s161
              $region39: #{vae_forward.6} parent=35 // loop_header_branch
                %178 = sbr.rel (%p176) target = $region43
              $region40: #{vae_forward.6} parent=35 // loop_body
                %v182 = vld [vmem:[%s180] sm:$0xf]
                %183 = vst [vmem:[%s181] sm:$0xf] %v182
                %v184 = vld [vmem:[%s180 + $0x8] sm:$0xf]
                %185 = vst [vmem:[%s181 + $0x4] sm:$0xf] %v184
                %v186 = vld [vmem:[%s180 + $0x10] sm:$0xf]
                %187 = vst [vmem:[%s181 + $0x8] sm:$0xf] %v186
                %v188 = vld [vmem:[%s180 + $0x18] sm:$0xf]
                %189 = vst [vmem:[%s181 + $0xc] sm:$0xf] %v188
                %v190 = vld [vmem:[%s180 + $0x20] sm:$0xf]
                %191 = vst [vmem:[%s181 + $0x10] sm:$0xf] %v190
                %v192 = vld [vmem:[%s180 + $0x28] sm:$0xf]
                %193 = vst [vmem:[%s181 + $0x14] sm:$0xf] %v192
                %v194 = vld [vmem:[%s180 + $0x30] sm:$0xf]
                %195 = vst [vmem:[%s181 + $0x18] sm:$0xf] %v194
                %v196 = vld [vmem:[%s180 + $0x38] sm:$0xf]
                %197 = vst [vmem:[%s181 + $0x1c] sm:$0xf] %v196
                %v198 = vld [vmem:[%s180 + $0x40] sm:$0xf]
                %199 = vst [vmem:[%s181 + $0x20] sm:$0xf] %v198
                %v200 = vld [vmem:[%s180 + $0x48] sm:$0xf]
                %201 = vst [vmem:[%s181 + $0x24] sm:$0xf] %v200
                %v202 = vld [vmem:[%s180 + $0x50] sm:$0xf]
                %203 = vst [vmem:[%s181 + $0x28] sm:$0xf] %v202
                %v204 = vld [vmem:[%s180 + $0x58] sm:$0xf]
                %205 = vst [vmem:[%s181 + $0x2c] sm:$0xf] %v204
                %v206 = vld [vmem:[%s180 + $0x60] sm:$0xf]
                %207 = vst [vmem:[%s181 + $0x30] sm:$0xf] %v206
                %v208 = vld [vmem:[%s180 + $0x68] sm:$0xf]
                %209 = vst [vmem:[%s181 + $0x34] sm:$0xf] %v208
                %v210 = vld [vmem:[%s180 + $0x70] sm:$0xf]
                %211 = vst [vmem:[%s181 + $0x38] sm:$0xf] %v210
                %v212 = vld [vmem:[%s180 + $0x78] sm:$0xf]
                %213 = vst [vmem:[%s181 + $0x3c] sm:$0xf] %v212
                %v214 = vld [vmem:[%s180 + $0x80] sm:$0xf]
                %215 = vst [vmem:[%s181 + $0x40] sm:$0xf] %v214
                %v216 = vld [vmem:[%s180 + $0x88] sm:$0xf]
                %217 = vst [vmem:[%s181 + $0x44] sm:$0xf] %v216
                %v218 = vld [vmem:[%s180 + $0x90] sm:$0xf]
                %219 = vst [vmem:[%s181 + $0x48] sm:$0xf] %v218
                %v220 = vld [vmem:[%s180 + $0x98] sm:$0xf]
                %221 = vst [vmem:[%s181 + $0x4c] sm:$0xf] %v220
                %v222 = vld [vmem:[%s180 + $0xa0] sm:$0xf]
                %223 = vst [vmem:[%s181 + $0x50] sm:$0xf] %v222
                %v224 = vld [vmem:[%s180 + $0xa8] sm:$0xf]
                %225 = vst [vmem:[%s181 + $0x54] sm:$0xf] %v224
                %v226 = vld [vmem:[%s180 + $0xb0] sm:$0xf]
                %227 = vst [vmem:[%s181 + $0x58] sm:$0xf] %v226
                %v228 = vld [vmem:[%s180 + $0xb8] sm:$0xf]
                %229 = vst [vmem:[%s181 + $0x5c] sm:$0xf] %v228
                %v230 = vld [vmem:[%s180 + $0xc0] sm:$0xf]
                %231 = vst [vmem:[%s181 + $0x60] sm:$0xf] %v230
                %v232 = vld [vmem:[%s180 + $0xc8] sm:$0xf]
                %233 = vst [vmem:[%s181 + $0x64] sm:$0xf] %v232
                %v234 = vld [vmem:[%s180 + $0xd0] sm:$0xf]
                %235 = vst [vmem:[%s181 + $0x68] sm:$0xf] %v234
                %v236 = vld [vmem:[%s180 + $0xd8] sm:$0xf]
                %237 = vst [vmem:[%s181 + $0x6c] sm:$0xf] %v236
                %v238 = vld [vmem:[%s180 + $0xe0] sm:$0xf]
                %239 = vst [vmem:[%s181 + $0x70] sm:$0xf] %v238
                %v240 = vld [vmem:[%s180 + $0xe8] sm:$0xf]
                %241 = vst [vmem:[%s181 + $0x74] sm:$0xf] %v240
                %v242 = vld [vmem:[%s180 + $0xf0] sm:$0xf]
                %243 = vst [vmem:[%s181 + $0x78] sm:$0xf] %v242
                %v244 = vld [vmem:[%s180 + $0xf8] sm:$0xf]
                %245 = vst [vmem:[%s181 + $0x7c] sm:$0xf] %v244
                %v246 = vld [vmem:[%s180 + $0x100] sm:$0xf]
                %247 = vst [vmem:[%s181 + $0x80] sm:$0xf] %v246
                %v248 = vld [vmem:[%s180 + $0x108] sm:$0xf]
                %249 = vst [vmem:[%s181 + $0x84] sm:$0xf] %v248
                %v250 = vld [vmem:[%s180 + $0x110] sm:$0xf]
                %251 = vst [vmem:[%s181 + $0x88] sm:$0xf] %v250
                %v252 = vld [vmem:[%s180 + $0x118] sm:$0xf]
                %253 = vst [vmem:[%s181 + $0x8c] sm:$0xf] %v252
                %v254 = vld [vmem:[%s180 + $0x120] sm:$0xf]
                %255 = vst [vmem:[%s181 + $0x90] sm:$0xf] %v254
                %v256 = vld [vmem:[%s180 + $0x128] sm:$0xf]
                %257 = vst [vmem:[%s181 + $0x94] sm:$0xf] %v256
                %v258 = vld [vmem:[%s180 + $0x130] sm:$0xf]
                %259 = vst [vmem:[%s181 + $0x98] sm:$0xf] %v258
                %v260 = vld [vmem:[%s180 + $0x138] sm:$0xf]
                %261 = vst [vmem:[%s181 + $0x9c] sm:$0xf] %v260
                %v262 = vld [vmem:[%s180 + $0x140] sm:$0xf]
                %263 = vst [vmem:[%s181 + $0xa0] sm:$0xf] %v262
                %v264 = vld [vmem:[%s180 + $0x148] sm:$0xf]
                %265 = vst [vmem:[%s181 + $0xa4] sm:$0xf] %v264
                %v266 = vld [vmem:[%s180 + $0x150] sm:$0xf]
                %267 = vst [vmem:[%s181 + $0xa8] sm:$0xf] %v266
                %v268 = vld [vmem:[%s180 + $0x158] sm:$0xf]
                %269 = vst [vmem:[%s181 + $0xac] sm:$0xf] %v268
                %v270 = vld [vmem:[%s180 + $0x160] sm:$0xf]
                %271 = vst [vmem:[%s181 + $0xb0] sm:$0xf] %v270
                %v272 = vld [vmem:[%s180 + $0x168] sm:$0xf]
                %273 = vst [vmem:[%s181 + $0xb4] sm:$0xf] %v272
                %v274 = vld [vmem:[%s180 + $0x170] sm:$0xf]
                %275 = vst [vmem:[%s181 + $0xb8] sm:$0xf] %v274
                %v276 = vld [vmem:[%s180 + $0x178] sm:$0xf]
                %277 = vst [vmem:[%s181 + $0xbc] sm:$0xf] %v276
                %v278 = vld [vmem:[%s180 + $0x180] sm:$0xf]
                %279 = vst [vmem:[%s181 + $0xc0] sm:$0xf] %v278
                %v280 = vld [vmem:[%s180 + $0x188] sm:$0xf]
                %281 = vst [vmem:[%s181 + $0xc4] sm:$0xf] %v280
                %v282 = vld [vmem:[%s180 + $0x190] sm:$0xf]
                %283 = vst [vmem:[%s181 + $0xc8] sm:$0xf] %v282
                %v284 = vld [vmem:[%s180 + $0x198] sm:$0xf]
                %285 = vst [vmem:[%s181 + $0xcc] sm:$0xf] %v284
                %v286 = vld [vmem:[%s180 + $0x1a0] sm:$0xf]
                %287 = vst [vmem:[%s181 + $0xd0] sm:$0xf] %v286
                %v288 = vld [vmem:[%s180 + $0x1a8] sm:$0xf]
                %289 = vst [vmem:[%s181 + $0xd4] sm:$0xf] %v288
                %v290 = vld [vmem:[%s180 + $0x1b0] sm:$0xf]
                %291 = vst [vmem:[%s181 + $0xd8] sm:$0xf] %v290
                %v292 = vld [vmem:[%s180 + $0x1b8] sm:$0xf]
                %293 = vst [vmem:[%s181 + $0xdc] sm:$0xf] %v292
                %v294 = vld [vmem:[%s180 + $0x1c0] sm:$0xf]
                %295 = vst [vmem:[%s181 + $0xe0] sm:$0xf] %v294
                %v296 = vld [vmem:[%s180 + $0x1c8] sm:$0xf]
                %297 = vst [vmem:[%s181 + $0xe4] sm:$0xf] %v296
                %v298 = vld [vmem:[%s180 + $0x1d0] sm:$0xf]
                %299 = vst [vmem:[%s181 + $0xe8] sm:$0xf] %v298
                %v300 = vld [vmem:[%s180 + $0x1d8] sm:$0xf]
                %301 = vst [vmem:[%s181 + $0xec] sm:$0xf] %v300
                %v302 = vld [vmem:[%s180 + $0x1e0] sm:$0xf]
                %303 = vst [vmem:[%s181 + $0xf0] sm:$0xf] %v302
                %v304 = vld [vmem:[%s180 + $0x1e8] sm:$0xf]
                %305 = vst [vmem:[%s181 + $0xf4] sm:$0xf] %v304
                %v306 = vld [vmem:[%s180 + $0x1f0] sm:$0xf]
                %307 = vst [vmem:[%s181 + $0xf8] sm:$0xf] %v306
                %v308 = vld [vmem:[%s180 + $0x1f8] sm:$0xf]
                %309 = vst [vmem:[%s181 + $0xfc] sm:$0xf] %v308
              $region41: #{vae_forward.6} parent=35 // loop_footer
                %s179 = sadd.s32 1, %s175
              $region42: #{vae_forward.6} parent=35 // loop_footer_branch
                %174 = sbr.rel target = $region38
              $region43: #{vae_forward.6} parent=35 // loop_exit
                _
            $region36: #{vae_forward.6} parent=27 // pred_fallthru
              _
          $region28: #{vae_forward.6} parent=23 // pred_fallthru
            _
          %457 = vnop
        $region24: #{vae_forward.6} parent=19 // pred_fallthru
          _
        // Predicated region
        $region62: #{vae_forward.6} parent=19 // pred_check
          %p458 = pneg %p95
        $region63: #{vae_forward.6} parent=19 // pred_check_branch
          %460 = sbr.rel (%p458) target = $region65
        $region64: #{vae_forward.6} parent=19 // pred_region
          %p461 = scmp.lt.s32.totalorder %s16, 1
          %s462 = scalar_select %p461, %s16, 1
          %s463 = scalar_lea.vmem %s2, %s462
        $region65: #{vae_forward.6} parent=19 // pred_fallthru
          _
      $region20: #{vae_forward.6} parent=5 // pred_fallthru
        _
      %p464 = scmp.le.s32.totalorder 1, %s9
      %p465 = scmp.lt.s32.totalorder %s9, 3
      %p466 = pnand %p464, %p465
      %p467 = pneg %p466
      // Predicated region
      $region66: #{vae_forward.6} parent=5 // pred_check
        _
      $region67: #{vae_forward.6} parent=5 // pred_check_branch
        %469 = sbr.rel (%p466) target = $region69
      $region68: #{vae_forward.6} parent=5 // pred_region
        %s470 = ssub.s32 %s9, 1
        %s471 = sand.u32 %s62, 1
        %s472 = sand.u32 %s62, 1
        %s473 = smul.addr %s472, 256
        %s474 = scalar_lea.vmem [#allocation3], %s473
        // Predicated region
        $region70: #{vae_forward.6} parent=68 // pred_check
          %p475 = pneg %p75
        $region71: #{vae_forward.6} parent=68 // pred_check_branch
          %477 = sbr.rel (%p475) target = $region73
        $region72: #{vae_forward.6} parent=68 // pred_region
          _
        $region73: #{vae_forward.6} parent=68 // pred_fallthru
          _
        %s478 = smul.u32 4, %s19
        %p479 = scmp.lt.s32.totalorder %s478, 3
        %s480 = scalar_select %p479, %s478, 3
        %s481 = smul.addr %s480, 4
        %s482 = scalar_lea.vmem %s0, %s481
        %p483 = pneg %p47
        %p484 = pneg %p44
        %s485 = sand.u32 %s62, 1
        %s486 = sand.u32 %s62, 1
        %s487 = smul.addr %s486, 256
        %s488 = scalar_lea.vmem [#allocation3], %s487
        %p489 = pneg %p75
        %p490 = pneg %p72
        %p491 = scmp.lt.s32.totalorder %s18, 1
        %s492 = scalar_select %p491, %s18, 1
        %s493 = scalar_lea.vmem %s2, %s492
        %p494 = pneg %p101
        %p495 = pneg %p98
        %p496 = pneg %p127
        %p497 = pneg %p124
        %p498 = scmp.lt.s32.totalorder %s18, 1
        %s499 = scalar_select %p498, %s18, 1
        %s500 = smul.addr %s499, 4
        %s501 = scalar_lea.vmem %s3, %s500
        %s502 = smul.u32 4, %s19
        %p503 = scmp.lt.s32.totalorder %s502, 3
        %s504 = scalar_select %p503, %s502, 3
        %s505 = smul.addr %s504, 4
        %s506 = scalar_lea.vmem %s0, %s505
        %s507 = smul.u32 4, %s19
        %s508 = smul.u32 64, %s19
        %p509 = scmp.lt.s32.totalorder %s18, 1
        %s510 = scalar_select %p509, %s18, 1
        %s511 = scalar_lea.vmem %s2, %s510
        %p512 = scmp.lt.s32.totalorder %s18, 1
        %s513 = scalar_select %p512, %s18, 1
        %s514 = smul.addr %s513, 4
        %s515 = scalar_lea.vmem %s3, %s514
        %p517 = scmp.eq.s32.totalorder %s19, 0
        // Predicated region
        $region74: #{vae_forward.6} parent=68 // pred_check
          %p518 = pneg %p517
        $region75: #{vae_forward.6} parent=68 // pred_check_branch
          %520 = sbr.rel (%p518) target = $region77
        $region76: #{vae_forward.6} parent=68 // pred_region
          %521 = vst [vmem:[#allocation2] sm:$0xff] 0.0
        $region77: #{vae_forward.6} parent=68 // pred_fallthru
          _
        %v522 = vld [vmem:[#allocation2] sm:$0xff]
        %v523 = vld [vmem:[%s506] sm:$0xff]
        %v524 = vld [vmem:[%s506 + $0x8] sm:$0xff]
        %v525 = vld [vmem:[%s474] sm:$0xf]
        %v526 = vld [vmem:[%s474 + $0x4] sm:$0xf]
        %v527 = vld [vmem:[%s474 + $0x8] sm:$0xf]
        %v528 = vld [vmem:[%s474 + $0xc] sm:$0xf]
        %v529 = vld [vmem:[%s474 + $0x10] sm:$0xf]
        %v530 = vld [vmem:[%s474 + $0x14] sm:$0xf]
        %v531 = vld [vmem:[%s474 + $0x18] sm:$0xf]
        %v532 = vld [vmem:[%s474 + $0x1c] sm:$0xf]
        %v533 = vld [vmem:[%s474 + $0x20] sm:$0xf]
        %v534 = vld [vmem:[%s474 + $0x24] sm:$0xf]
        %v535 = vld [vmem:[%s474 + $0x28] sm:$0xf]
        %v536 = vld [vmem:[%s474 + $0x2c] sm:$0xf]
        %v537 = vld [vmem:[%s474 + $0x30] sm:$0xf]
        %v538 = vld [vmem:[%s474 + $0x34] sm:$0xf]
        %v539 = vld [vmem:[%s474 + $0x38] sm:$0xf]
        %v540 = vld [vmem:[%s474 + $0x3c] sm:$0xf]
        %v541 = vld [vmem:[%s474 + $0x40] sm:$0xf]
        %v542 = vld [vmem:[%s474 + $0x44] sm:$0xf]
        %v543 = vld [vmem:[%s474 + $0x48] sm:$0xf]
        %v544 = vld [vmem:[%s474 + $0x4c] sm:$0xf]
        %v545 = vld [vmem:[%s474 + $0x50] sm:$0xf]
        %v546 = vld [vmem:[%s474 + $0x54] sm:$0xf]
        %v547 = vld [vmem:[%s474 + $0x58] sm:$0xf]
        %v548 = vld [vmem:[%s474 + $0x5c] sm:$0xf]
        %v549 = vld [vmem:[%s474 + $0x60] sm:$0xf]
        %v550 = vld [vmem:[%s474 + $0x64] sm:$0xf]
        %v551 = vld [vmem:[%s474 + $0x68] sm:$0xf]
        %v552 = vld [vmem:[%s474 + $0x6c] sm:$0xf]
        %v553 = vld [vmem:[%s474 + $0x70] sm:$0xf]
        %v554 = vld [vmem:[%s474 + $0x74] sm:$0xf]
        %v555 = vld [vmem:[%s474 + $0x78] sm:$0xf]
        %v556 = vld [vmem:[%s474 + $0x7c] sm:$0xf]
        %v557 = vld [vmem:[%s474 + $0x80] sm:$0xf]
        %v558 = vld [vmem:[%s474 + $0x84] sm:$0xf]
        %v559 = vld [vmem:[%s474 + $0x88] sm:$0xf]
        %v560 = vld [vmem:[%s474 + $0x8c] sm:$0xf]
        %v561 = vld [vmem:[%s474 + $0x90] sm:$0xf]
        %v562 = vld [vmem:[%s474 + $0x94] sm:$0xf]
        %v563 = vld [vmem:[%s474 + $0x98] sm:$0xf]
        %v564 = vld [vmem:[%s474 + $0x9c] sm:$0xf]
        %v565 = vld [vmem:[%s474 + $0xa0] sm:$0xf]
        %v566 = vld [vmem:[%s474 + $0xa4] sm:$0xf]
        %v567 = vld [vmem:[%s474 + $0xa8] sm:$0xf]
        %v568 = vld [vmem:[%s474 + $0xac] sm:$0xf]
        %v569 = vld [vmem:[%s474 + $0xb0] sm:$0xf]
        %v570 = vld [vmem:[%s474 + $0xb4] sm:$0xf]
        %v571 = vld [vmem:[%s474 + $0xb8] sm:$0xf]
        %v572 = vld [vmem:[%s474 + $0xbc] sm:$0xf]
        %v573 = vld [vmem:[%s474 + $0xc0] sm:$0xf]
        %v574 = vld [vmem:[%s474 + $0xc4] sm:$0xf]
        %v575 = vld [vmem:[%s474 + $0xc8] sm:$0xf]
        %v576 = vld [vmem:[%s474 + $0xcc] sm:$0xf]
        %v577 = vld [vmem:[%s474 + $0xd0] sm:$0xf]
        %v578 = vld [vmem:[%s474 + $0xd4] sm:$0xf]
        %v579 = vld [vmem:[%s474 + $0xd8] sm:$0xf]
        %v580 = vld [vmem:[%s474 + $0xdc] sm:$0xf]
        %v581 = vld [vmem:[%s474 + $0xe0] sm:$0xf]
        %v582 = vld [vmem:[%s474 + $0xe4] sm:$0xf]
        %v583 = vld [vmem:[%s474 + $0xe8] sm:$0xf]
        %v584 = vld [vmem:[%s474 + $0xec] sm:$0xf]
        %v585 = vld [vmem:[%s474 + $0xf0] sm:$0xf]
        %v586 = vld [vmem:[%s474 + $0xf4] sm:$0xf]
        %v587 = vld [vmem:[%s474 + $0xf8] sm:$0xf]
        %v588 = vld [vmem:[%s474 + $0xfc] sm:$0xf]
        %v591 = vunpack.c.l.b16 %v523
        %v592 = vunpack.c.h.b16 %v523
        %v593 = vunpack.c.l.b16 %v524
        %v594 = vunpack.c.h.b16 %v524
        %v595 = vpack.c.b16 %v591, %v591
        %v596 = vpack.c.b16 %v592, %v592
        %v597 = vpack.c.b16 %v593, %v593
        %v598 = vpack.c.b16 %v594, %v594
        %v667 = vunpack.c.l.b16 %v525
        %v668 = vunpack.c.l.b16 %v526
        %v669 = vunpack.c.l.b16 %v527
        %v670 = vunpack.c.l.b16 %v528
        %v671 = vunpack.c.l.b16 %v529
        %v672 = vunpack.c.l.b16 %v530
        %v673 = vunpack.c.l.b16 %v531
        %v674 = vunpack.c.l.b16 %v532
        %v675 = vunpack.c.l.b16 %v533
        %v676 = vunpack.c.l.b16 %v534
        %v677 = vunpack.c.l.b16 %v535
        %v678 = vunpack.c.l.b16 %v536
        %v679 = vunpack.c.l.b16 %v537
        %v680 = vunpack.c.l.b16 %v538
        %v681 = vunpack.c.l.b16 %v539
        %v682 = vunpack.c.l.b16 %v540
        %v683 = vunpack.c.l.b16 %v541
        %v684 = vunpack.c.l.b16 %v542
        %v685 = vunpack.c.l.b16 %v543
        %v686 = vunpack.c.l.b16 %v544
        %v687 = vunpack.c.l.b16 %v545
        %v688 = vunpack.c.l.b16 %v546
        %v689 = vunpack.c.l.b16 %v547
        %v690 = vunpack.c.l.b16 %v548
        %v691 = vunpack.c.l.b16 %v549
        %v692 = vunpack.c.l.b16 %v550
        %v693 = vunpack.c.l.b16 %v551
        %v694 = vunpack.c.l.b16 %v552
        %v695 = vunpack.c.l.b16 %v553
        %v696 = vunpack.c.l.b16 %v554
        %v697 = vunpack.c.l.b16 %v555
        %v698 = vunpack.c.l.b16 %v556
        %v699 = vunpack.c.l.b16 %v557
        %v700 = vunpack.c.l.b16 %v558
        %v701 = vunpack.c.l.b16 %v559
        %v702 = vunpack.c.l.b16 %v560
        %v703 = vunpack.c.l.b16 %v561
        %v704 = vunpack.c.l.b16 %v562
        %v705 = vunpack.c.l.b16 %v563
        %v706 = vunpack.c.l.b16 %v564
        %v707 = vunpack.c.l.b16 %v565
        %v708 = vunpack.c.l.b16 %v566
        %v709 = vunpack.c.l.b16 %v567
        %v710 = vunpack.c.l.b16 %v568
        %v711 = vunpack.c.l.b16 %v569
        %v712 = vunpack.c.l.b16 %v570
        %v713 = vunpack.c.l.b16 %v571
        %v714 = vunpack.c.l.b16 %v572
        %v715 = vunpack.c.l.b16 %v573
        %v716 = vunpack.c.l.b16 %v574
        %v717 = vunpack.c.l.b16 %v575
        %v718 = vunpack.c.l.b16 %v576
        %v719 = vunpack.c.l.b16 %v577
        %v720 = vunpack.c.l.b16 %v578
        %v721 = vunpack.c.l.b16 %v579
        %v722 = vunpack.c.l.b16 %v580
        %v723 = vunpack.c.l.b16 %v581
        %v724 = vunpack.c.l.b16 %v582
        %v725 = vunpack.c.l.b16 %v583
        %v726 = vunpack.c.l.b16 %v584
        %v727 = vunpack.c.l.b16 %v585
        %v728 = vunpack.c.l.b16 %v586
        %v729 = vunpack.c.l.b16 %v587
        %v730 = vunpack.c.l.b16 %v588
        %v731 = vpack.c.b16 %v668, %v667
        %v732 = vpack.c.b16 %v670, %v669
        %v733 = vpack.c.b16 %v672, %v671
        %v734 = vpack.c.b16 %v674, %v673
        %v735 = vpack.c.b16 %v676, %v675
        %v736 = vpack.c.b16 %v678, %v677
        %v737 = vpack.c.b16 %v680, %v679
        %v738 = vpack.c.b16 %v682, %v681
        %v739 = vpack.c.b16 %v684, %v683
        %v740 = vpack.c.b16 %v686, %v685
        %v741 = vpack.c.b16 %v688, %v687
        %v742 = vpack.c.b16 %v690, %v689
        %v743 = vpack.c.b16 %v692, %v691
        %v744 = vpack.c.b16 %v694, %v693
        %v745 = vpack.c.b16 %v696, %v695
        %v746 = vpack.c.b16 %v698, %v697
        %v747 = vpack.c.b16 %v700, %v699
        %v748 = vpack.c.b16 %v702, %v701
        %v749 = vpack.c.b16 %v704, %v703
        %v750 = vpack.c.b16 %v706, %v705
        %v751 = vpack.c.b16 %v708, %v707
        %v752 = vpack.c.b16 %v710, %v709
        %v753 = vpack.c.b16 %v712, %v711
        %v754 = vpack.c.b16 %v714, %v713
        %v755 = vpack.c.b16 %v716, %v715
        %v756 = vpack.c.b16 %v718, %v717
        %v757 = vpack.c.b16 %v720, %v719
        %v758 = vpack.c.b16 %v722, %v721
        %v759 = vpack.c.b16 %v724, %v723
        %v760 = vpack.c.b16 %v726, %v725
        %v761 = vpack.c.b16 %v728, %v727
        %v762 = vpack.c.b16 %v730, %v729
        %795 = vmatprep.subr.bf16.mxu0 0
        %796 = vmatpush1.bf16.msra.mxu0 %v731
        %797 = vmatprep.subr.bf16.mxu0 0
        %798 = vmatpush1.bf16.msra.mxu0 %v732
        %799 = vmatprep.subr.bf16.mxu0 0
        %800 = vmatpush1.bf16.msra.mxu0 %v733
        %801 = vmatprep.subr.bf16.mxu0 0
        %802 = vmatpush1.bf16.msra.mxu0 %v734
        %803 = vmatprep.subr.bf16.mxu0 0
        %804 = vmatpush1.bf16.msra.mxu0 %v735
        %805 = vmatprep.subr.bf16.mxu0 0
        %806 = vmatpush1.bf16.msra.mxu0 %v736
        %807 = vmatprep.subr.bf16.mxu0 0
        %808 = vmatpush1.bf16.msra.mxu0 %v737
        %809 = vmatprep.subr.bf16.mxu0 0
        %810 = vmatpush1.bf16.msra.mxu0 %v738
        %811 = vmatprep.subr.bf16.mxu0 0
        %812 = vmatpush1.bf16.msra.mxu0 %v739
        %813 = vmatprep.subr.bf16.mxu0 0
        %814 = vmatpush1.bf16.msra.mxu0 %v740
        %815 = vmatprep.subr.bf16.mxu0 0
        %816 = vmatpush1.bf16.msra.mxu0 %v741
        %817 = vmatprep.subr.bf16.mxu0 0
        %818 = vmatpush1.bf16.msra.mxu0 %v742
        %819 = vmatprep.subr.bf16.mxu0 0
        %820 = vmatpush1.bf16.msra.mxu0 %v743
        %821 = vmatprep.subr.bf16.mxu0 0
        %822 = vmatpush1.bf16.msra.mxu0 %v744
        %823 = vmatprep.subr.bf16.mxu0 0
        %824 = vmatpush1.bf16.msra.mxu0 %v745
        %825 = vmatprep.subr.bf16.mxu0 0
        %826 = vmatpush1.bf16.msra.mxu0 %v746
        %827 = vmatprep.mubr.bf16.mxu0 %v596
        %828 = vmatmul.mubr.bf16.gmra.mrb[0].mxu0 %v595
        %v829 = vpop.f32.mrb[0].mxu0
        %v830 = vadd.f32 0.0, %v829
        %v831 = vpop.f32.mrb[0].mxu0
        %v832 = vpop.f32.mrb[0].mxu0
        %v833 = vpop.f32.mrb[0].mxu0
        %834 = vdwg.mxu0
        %835 = vmatprep.subr.bf16.mxu0 0
        %836 = vmatpush1.bf16.msra.mxu0 %v747
        %837 = vmatprep.subr.bf16.mxu0 0
        %838 = vmatpush1.bf16.msra.mxu0 %v748
        %839 = vmatprep.subr.bf16.mxu0 0
        %840 = vmatpush1.bf16.msra.mxu0 %v749
        %841 = vmatprep.subr.bf16.mxu0 0
        %842 = vmatpush1.bf16.msra.mxu0 %v750
        %843 = vmatprep.subr.bf16.mxu0 0
        %844 = vmatpush1.bf16.msra.mxu0 %v751
        %845 = vmatprep.subr.bf16.mxu0 0
        %846 = vmatpush1.bf16.msra.mxu0 %v752
        %847 = vmatprep.subr.bf16.mxu0 0
        %848 = vmatpush1.bf16.msra.mxu0 %v753
        %849 = vmatprep.subr.bf16.mxu0 0
        %850 = vmatpush1.bf16.msra.mxu0 %v754
        %851 = vmatprep.subr.bf16.mxu0 0
        %852 = vmatpush1.bf16.msra.mxu0 %v755
        %853 = vmatprep.subr.bf16.mxu0 0
        %854 = vmatpush1.bf16.msra.mxu0 %v756
        %855 = vmatprep.subr.bf16.mxu0 0
        %856 = vmatpush1.bf16.msra.mxu0 %v757
        %857 = vmatprep.subr.bf16.mxu0 0
        %858 = vmatpush1.bf16.msra.mxu0 %v758
        %859 = vmatprep.subr.bf16.mxu0 0
        %860 = vmatpush1.bf16.msra.mxu0 %v759
        %861 = vmatprep.subr.bf16.mxu0 0
        %862 = vmatpush1.bf16.msra.mxu0 %v760
        %863 = vmatprep.subr.bf16.mxu0 0
        %864 = vmatpush1.bf16.msra.mxu0 %v761
        %865 = vmatprep.subr.bf16.mxu0 0
        %866 = vmatpush1.bf16.msra.mxu0 %v762
        %867 = vmatprep.mubr.bf16.mxu0 %v598
        %868 = vmatmul.mubr.bf16.gmra.mrb[0].mxu0 %v597
        %v869 = vpop.f32.mrb[0].mxu0
        %v870 = vadd.f32 %v830, %v869
        %v871 = vpop.f32.mrb[0].mxu0
        %v872 = vpop.f32.mrb[0].mxu0
        %v873 = vpop.f32.mrb[0].mxu0
        %874 = vdwg.mxu0
        %v875 = vadd.f32 %v522, %v870
        %876 = vst [vmem:[#allocation2] sm:$0xff] %v875
        // Predicated region
        $region78: #{vae_forward.6} parent=68 // pred_check
          %p877 = pneg %p517
        $region79: #{vae_forward.6} parent=68 // pred_check_branch
          %879 = sbr.rel (%p877) target = $region81
        $region80: #{vae_forward.6} parent=68 // pred_region
          %v880 = vld [vmem:[#allocation2] sm:$0xff]
          %v881 = vld [vmem:[%s511] sm:$0x1]
          %v883 = vlaneseq
          %v884 = vshrl.u32 %v883, 7
          %v885 = vsub.s32 0, %v884
          %v886 = vrot.slane %v881, %v885
          %v888 = vadd.f32 %v880, %v886
          %v889 = vmax.f32 %v888, 0.0
          %v890 = vpack.c.bf16 %v889, %v889
          %891 = vst [vmem:[%s515] sm:$0xf] %v890
        $region81: #{vae_forward.6} parent=68 // pred_fallthru
          _
        %p892 = scmp.lt.s32.totalorder %s18, 1
        %s893 = scalar_select %p892, %s18, 1
        %s894 = smul.addr %s893, 4
        %s895 = scalar_lea.vmem %s3, %s894
        // Predicated region
        $region82: #{vae_forward.6} parent=68 // pred_check
          %p896 = pneg %p124
        $region83: #{vae_forward.6} parent=68 // pred_check_branch
          %898 = sbr.rel (%p896) target = $region85
        $region84: #{vae_forward.6} parent=68 // pred_region
          _
        $region85: #{vae_forward.6} parent=68 // pred_fallthru
          _
      $region69: #{vae_forward.6} parent=5 // pred_fallthru
        _
      %p899 = scmp.le.s32.totalorder 2, %s9
      // Predicated region
      $region86: #{vae_forward.6} parent=5 // pred_check
        %p900 = pneg %p899
      $region87: #{vae_forward.6} parent=5 // pred_check_branch
        %902 = sbr.rel (%p900) target = $region89
      $region88: #{vae_forward.6} parent=5 // pred_region
        %s903 = ssub.s32 %s9, 2
        // Predicated region
        $region90: #{vae_forward.6} parent=88 // pred_check
          %p904 = pneg %p130
        $region91: #{vae_forward.6} parent=88 // pred_check_branch
          %906 = sbr.rel (%p904) target = $region93
        $region92: #{vae_forward.6} parent=88 // pred_region
          %p907 = scmp.lt.s32.totalorder %s20, 1
          %s908 = scalar_select %p907, %s20, 1
          %s909 = smul.addr %s908, 4
          %s910 = scalar_lea.vmem %s3, %s909
        $region93: #{vae_forward.6} parent=88 // pred_fallthru
          _
      $region89: #{vae_forward.6} parent=5 // pred_fallthru
        _
    $region6: #{vae_forward.6} parent=1 // loop_footer
      %s13 = sadd.s32 1, %s9
    $region7: #{vae_forward.6} parent=1 // loop_footer_branch
      %8 = sbr.rel target = $region3
    $region8: #{vae_forward.6} parent=1 // loop_exit
      _

// kernel: vae_forward.5
$region0: #{vae_forward.5}
  #allocation0 [shape = 'u32[]', space=smem, size = 0x4, offset = 0x4, fixed_abs, tag = 'smem constant byte address 0x4 - core index']
  #allocation1 [shape = 'u32[144,128]{1,0:T(1,128)}', space=vmem, size = 0x12000, scoped, tag = 'internal scratch']
  #allocation2 [shape = 'f32[8,256]{1,0:T(8,128)}', space=vmem, size = 0x2000, scoped, tag = 'scratch operand']
  %s0 = inlined_call_operand.hbm [shape: f32[8,1024], index: 0, kind: input, shape index: {}]
  %s1 = inlined_call_operand.hbm [shape: bf16[1024,512], index: 1, kind: input, shape index: {}]
  %s2 = inlined_call_operand.vmem [shape: f32[1,512], index: 2, kind: input, shape index: {}]
  %s3 = inlined_call_operand.vmem [shape: bf16[8,512], index: 3, kind: output, shape index: {}]
  %s4 = sld [smem:[#allocation0]]
  $region61: #{vae_forward.5} parent=0
    _
  %s6 = ssub.s32 1, %s4
  %s7 = scalar_select 0, %s6, %s4
  $region1: #{vae_forward.5} parent=0
    #allocation3 [shape = 'u8[32768]{0}', space=vmem, size = 0x8000, scoped, tag = 'input window, operand 0, single buffered']
    #allocation4 [shape = 's32[2]{0}', space=sflag, size = 0x8, scoped, tag = 'scoped memory for vae_forward.5']
    #allocation5 [shape = 'u8[1048576]{0}', space=vmem, size = 0x100000, scoped, tag = 'input window, operand 1']
    #allocation6 [shape = 's32[2]{0}', space=sflag, size = 0x8, scoped, tag = 'scoped memory for vae_forward.5']
    %8 = vsyncpa [#allocation4], 0
    %9 = vsyncpa [#allocation6], 0
    %s10 = scalar_lea.sflag [#allocation6], 1
    %11 = vsyncpa %s10, 0
    loop: start=0, step=1, limit=4
    $region2: #{vae_forward.5} parent=1 // loop_pre_header
      _
    $region3: #{vae_forward.5} parent=1 // loop_header
      %s13 = sphi 0, %s17
      %p14 = scmp.ge.s32.totalorder %s13, 4
      %s20 = sphi 0, %s32
      %s21 = sphi 0, %s28
      %s22 = sphi 0, %s20
      %s23 = sphi 0, %s21
      %s24 = sphi 0, %s22
      %s25 = sphi 0, %s23
      %s35 = sphi 0, %s37
      %s38 = sphi 0, %s35
      %s39 = sphi 0, %s38
      %s55 = sphi 0, %s39
      %s63 = sphi 0, %s65
      %s66 = sphi 0, %s63
      %s67 = sphi 0, %s66
      %s83 = sphi 0, %s67
      %s89 = sphi 0, %s91
      %s92 = sphi 0, %s89
      %s93 = sphi 0, %s92
      %s109 = sphi 0, %s93
      %s115 = sphi 0, %s117
      %s118 = sphi 0, %s115
      %s119 = sphi 0, %s118
      %s135 = sphi 0, %s119
    $region4: #{vae_forward.5} parent=1 // loop_header_branch
      %16 = sbr.rel (%p14) target = $region8
    $region5: #{vae_forward.5} parent=1 // loop_body
      %s18 = ssub.s32 %s13, 1
      %s19 = ssub.s32 %s13, 2
      %s26 = sadd.s32 1, %s21
      %p27 = scmp.ge.s32.totalorder %s26, 1
      %s28 = scalar_select %p27, 0, %s26
      %s29 = sadd.s32 1, %s20
      %s30 = scalar_select %p27, %s29, %s20
      %p31 = scmp.ge.s32.totalorder %s30, 2
      %s32 = scalar_select %p31, 0, %s30
      %s33 = ssub.s32 %s21, %s28
      %p34 = scmp.eq.s32.totalorder %s33, 0
      %s36 = sadd.s32 %s35, 1
      %s37 = scalar_select %p34, %s35, %s36
      %p40 = pneg %p34
      %p41 = scmp.eq.s32.totalorder %s13, 1
      %p42 = por %p40, %p41
      %p43 = scmp.ne.s32.totalorder %s35, %s38
      %p44 = scmp.eq.s32.totalorder %s13, 0
      %p45 = por %p43, %p44
      %p46 = scmp.ne.s32.totalorder %s35, %s38
      %p47 = scmp.eq.s32.totalorder %s18, 1
      %p48 = por %p46, %p47
      %p49 = scmp.ne.s32.totalorder %s38, %s39
      %p50 = scmp.eq.s32.totalorder %s18, 0
      %p51 = por %p49, %p50
      %p52 = scmp.ne.s32.totalorder %s38, %s39
      %p53 = scmp.eq.s32.totalorder %s19, 1
      %p54 = por %p52, %p53
      %p56 = scmp.ne.s32.totalorder %s39, %s55
      %p57 = scmp.eq.s32.totalorder %s19, 0
      %p58 = por %p56, %p57
      %s59 = ssub.s32 %s21, %s28
      %s60 = ssub.s32 %s20, %s32
      %s61 = sor.u32 %s59, %s60
      %p62 = scmp.eq.s32.totalorder %s61, 0
      %s64 = sadd.s32 %s63, 1
      %s65 = scalar_select %p62, %s63, %s64
      %p68 = pneg %p62
      %p69 = scmp.eq.s32.totalorder %s13, 1
      %p70 = por %p68, %p69
      %p71 = scmp.ne.s32.totalorder %s63, %s66
      %p72 = scmp.eq.s32.totalorder %s13, 0
      %p73 = por %p71, %p72
      %p74 = scmp.ne.s32.totalorder %s63, %s66
      %p75 = scmp.eq.s32.totalorder %s18, 1
      %p76 = por %p74, %p75
      %p77 = scmp.ne.s32.totalorder %s66, %s67
      %p78 = scmp.eq.s32.totalorder %s18, 0
      %p79 = por %p77, %p78
      %p80 = scmp.ne.s32.totalorder %s66, %s67
      %p81 = scmp.eq.s32.totalorder %s19, 1
      %p82 = por %p80, %p81
      %p84 = scmp.ne.s32.totalorder %s67, %s83
      %p85 = scmp.eq.s32.totalorder %s19, 0
      %p86 = por %p84, %p85
      %s87 = ssub.s32 %s20, %s32
      %p88 = scmp.eq.s32.totalorder %s87, 0
      %s90 = sadd.s32 %s89, 1
      %s91 = scalar_select %p88, %s89, %s90
      %p94 = pneg %p88
      %p95 = scmp.eq.s32.totalorder %s13, 1
      %p96 = por %p94, %p95
      %p97 = scmp.ne.s32.totalorder %s89, %s92
      %p98 = scmp.eq.s32.totalorder %s13, 0
      %p99 = por %p97, %p98
      %p100 = scmp.ne.s32.totalorder %s89, %s92
      %p101 = scmp.eq.s32.totalorder %s18, 1
      %p102 = por %p100, %p101
      %p103 = scmp.ne.s32.totalorder %s92, %s93
      %p104 = scmp.eq.s32.totalorder %s18, 0
      %p105 = por %p103, %p104
      %p106 = scmp.ne.s32.totalorder %s92, %s93
      %p107 = scmp.eq.s32.totalorder %s19, 1
      %p108 = por %p106, %p107
      %p110 = scmp.ne.s32.totalorder %s93, %s109
      %p111 = scmp.eq.s32.totalorder %s19, 0
      %p112 = por %p110, %p111
      %s113 = ssub.s32 %s20, %s32
      %p114 = scmp.eq.s32.totalorder %s113, 0
      %s116 = sadd.s32 %s115, 1
      %s117 = scalar_select %p114, %s115, %s116
      %p120 = pneg %p114
      %p121 = scmp.eq.s32.totalorder %s13, 1
      %p122 = por %p120, %p121
      %p123 = scmp.ne.s32.totalorder %s115, %s118
      %p124 = scmp.eq.s32.totalorder %s13, 0
      %p125 = por %p123, %p124
      %p126 = scmp.ne.s32.totalorder %s115, %s118
      %p127 = scmp.eq.s32.totalorder %s18, 1
      %p128 = por %p126, %p127
      %p129 = scmp.ne.s32.totalorder %s118, %s119
      %p130 = scmp.eq.s32.totalorder %s18, 0
      %p131 = por %p129, %p130
      %p132 = scmp.ne.s32.totalorder %s118, %s119
      %p133 = scmp.eq.s32.totalorder %s19, 1
      %p134 = por %p132, %p133
      %p136 = scmp.ne.s32.totalorder %s119, %s135
      %p137 = scmp.eq.s32.totalorder %s19, 0
      %p138 = por %p136, %p137
      %p139 = scmp.le.s32.totalorder 1, %s13
      %p140 = scmp.lt.s32.totalorder %s13, 3
      %p141 = pnand %p139, %p140
      %p142 = pneg %p141
      // Predicated region
      $region9: #{vae_forward.5} parent=5 // pred_check
        _
      $region10: #{vae_forward.5} parent=5 // pred_check_branch
        %144 = sbr.rel (%p141) target = $region12
      $region11: #{vae_forward.5} parent=5 // pred_region
        %s145 = ssub.s32 %s13, 1
        // Predicated region
        $region13: #{vae_forward.5} parent=11 // pred_check
          %p146 = pneg %p51
        $region14: #{vae_forward.5} parent=11 // pred_check_branch
          %148 = sbr.rel (%p146) target = $region16
        $region15: #{vae_forward.5} parent=11 // pred_region
          %s149 = smul.u32 8, %s23
          %s151 = ssub.s32 1024, 1024
          %152 = vsyncadd [#allocation4], %s151
          %s153 = smul.addr %s149, 128
          %s154 = scalar_lea.hbm %s0, %s153
          %s156 = sshll.u32 [#allocation3], 4
          %s157 = int_to_ptr.vmem [resolvable:$true] %s156
          %159 = dma.hbm_to_vmem [thread:$0]  %s154, 1024, %s157, [#allocation4]
        $region16: #{vae_forward.5} parent=11 // pred_fallthru
          _
      $region12: #{vae_forward.5} parent=5 // pred_fallthru
        _
      %p160 = scmp.lt.s32.totalorder %s13, 2
      // Predicated region
      $region17: #{vae_forward.5} parent=5 // pred_check
        %p161 = pneg %p160
      $region18: #{vae_forward.5} parent=5 // pred_check_branch
        %163 = sbr.rel (%p161) target = $region20
      $region19: #{vae_forward.5} parent=5 // pred_region
        // Predicated region
        $region21: #{vae_forward.5} parent=19 // pred_check
          %p164 = pneg %p73
        $region22: #{vae_forward.5} parent=19 // pred_check_branch
          %166 = sbr.rel (%p164) target = $region24
        $region23: #{vae_forward.5} parent=19 // pred_region
          %s167 = sand.u32 %s63, 1
          %s168 = scalar_lea.sflag [#allocation6], %s167
          %s169 = sand.u32 %s63, 1
          %s170 = smul.addr %s169, 1024
          %s171 = scalar_lea.vmem [#allocation5], %s170
          %s172 = smul.u32 128, %s21
          %s173 = smul.u32 2, %s20
          %s175 = ssub.s32 16384, 16384
          %176 = vsyncadd %s168, %s175
          %s177 = smul.addr %s172, 4
          %s178 = sadd.s32 %s173, %s177
          %s179 = smul.addr %s178, 64
          %s180 = scalar_lea.hbm %s1, %s179
          %s181 = sshll.u32 %s171, 4
          %s182 = int_to_ptr.vmem [resolvable:$true] %s181
          %187 = dma.hbm_to_vmem [thread:$0]  %s180, 16384, %s182, %s168, 256, 128, 8
        $region24: #{vae_forward.5} parent=19 // pred_fallthru
          _
        // Predicated region
        $region25: #{vae_forward.5} parent=19 // pred_check
          %p188 = pneg %p99
        $region26: #{vae_forward.5} parent=19 // pred_check_branch
          %190 = sbr.rel (%p188) target = $region28
        $region27: #{vae_forward.5} parent=19 // pred_region
          %s191 = smul.u32 2, %s20
          %p192 = scmp.lt.s32.totalorder %s191, 3
          %s193 = scalar_select %p192, %s191, 3
          %s194 = scalar_lea.vmem %s2, %s193
          %s195 = smul.u32 2, %s20
        $region28: #{vae_forward.5} parent=19 // pred_fallthru
          _
      $region20: #{vae_forward.5} parent=5 // pred_fallthru
        _
      %p196 = scmp.le.s32.totalorder 1, %s13
      %p197 = scmp.lt.s32.totalorder %s13, 3
      %p198 = pnand %p196, %p197
      %p199 = pneg %p198
      // Predicated region
      $region29: #{vae_forward.5} parent=5 // pred_check
        _
      $region30: #{vae_forward.5} parent=5 // pred_check_branch
        %201 = sbr.rel (%p198) target = $region32
      $region31: #{vae_forward.5} parent=5 // pred_region
        %s202 = ssub.s32 %s13, 1
        // Predicated region
        $region33: #{vae_forward.5} parent=31 // pred_check
          %p203 = pneg %p51
        $region34: #{vae_forward.5} parent=31 // pred_check_branch
          %205 = sbr.rel (%p203) target = $region36
        $region35: #{vae_forward.5} parent=31 // pred_region
          %206 = dma.done [#allocation4], 1024
        $region36: #{vae_forward.5} parent=31 // pred_fallthru
          _
        %s207 = sand.u32 %s66, 1
        %s208 = scalar_lea.sflag [#allocation6], %s207
        %s209 = sand.u32 %s66, 1
        %s210 = smul.addr %s209, 1024
        %s211 = scalar_lea.vmem [#allocation5], %s210
        // Predicated region
        $region37: #{vae_forward.5} parent=31 // pred_check
          %p212 = pneg %p79
        $region38: #{vae_forward.5} parent=31 // pred_check_branch
          %214 = sbr.rel (%p212) target = $region40
        $region39: #{vae_forward.5} parent=31 // pred_region
          %215 = dma.done %s208, 16384
        $region40: #{vae_forward.5} parent=31 // pred_fallthru
          _
        %p216 = pneg %p51
        %p217 = pneg %p48
        %s218 = sand.u32 %s66, 1
        %s219 = scalar_lea.sflag [#allocation6], %s218
        %s220 = sand.u32 %s66, 1
        %s221 = smul.addr %s220, 1024
        %s222 = scalar_lea.vmem [#allocation5], %s221
        %p223 = pneg %p79
        %p224 = pneg %p76
        %s225 = smul.u32 2, %s22
        %p226 = scmp.lt.s32.totalorder %s225, 3
        %s227 = scalar_select %p226, %s225, 3
        %s228 = scalar_lea.vmem %s2, %s227
        %p229 = pneg %p105
        %p230 = pneg %p102
        %p231 = pneg %p131
        %p232 = pneg %p128
        %s233 = smul.u32 2, %s22
        %p234 = scmp.lt.s32.totalorder %s233, 3
        %s235 = scalar_select %p234, %s233, 3
        %s236 = smul.addr %s235, 4
        %s237 = scalar_lea.vmem %s3, %s236
        %s238 = smul.u32 8, %s23
        %s239 = smul.u32 128, %s23
        %s240 = smul.u32 2, %s22
        %s241 = smul.u32 2, %s22
        %p242 = scmp.lt.s32.totalorder %s241, 3
        %s243 = scalar_select %p242, %s241, 3
        %s244 = scalar_lea.vmem %s2, %s243
        %s245 = smul.u32 2, %s22
        %s246 = smul.u32 2, %s22
        %p247 = scmp.lt.s32.totalorder %s246, 3
        %s248 = scalar_select %p247, %s246, 3
        %s249 = smul.addr %s248, 4
        %s250 = scalar_lea.vmem %s3, %s249
        %s251 = smul.u32 2, %s22
        %p252 = scmp.eq.s32.totalorder %s23, 0
        // Predicated region
        $region41: #{vae_forward.5} parent=31 // pred_check
          %p253 = pneg %p252
        $region42: #{vae_forward.5} parent=31 // pred_check_branch
          %255 = sbr.rel (%p253) target = $region44
        $region43: #{vae_forward.5} parent=31 // pred_region
          %256 = vst [vmem:[#allocation2] sm:$0xff] 0.0
          %257 = vst [vmem:[#allocation2 + $0x8] sm:$0xff] 0.0
        $region44: #{vae_forward.5} parent=31 // pred_fallthru
          _
        %v258 = vld [vmem:[#allocation2] sm:$0xff]
        %v259 = vld [vmem:[#allocation2 + $0x8] sm:$0xff]
        %v260 = vld [vmem:[#allocation3] sm:$0xff]
        %v261 = vld [vmem:[#allocation3 + $0x8] sm:$0xff]
        %v262 = vld [vmem:[#allocation3 + $0x10] sm:$0xff]
        %v263 = vld [vmem:[#allocation3 + $0x18] sm:$0xff]
        %v264 = vld [vmem:[#allocation3 + $0x20] sm:$0xff]
        %v265 = vld [vmem:[#allocation3 + $0x28] sm:$0xff]
        %v266 = vld [vmem:[#allocation3 + $0x30] sm:$0xff]
        %v267 = vld [vmem:[#allocation3 + $0x38] sm:$0xff]
        %v268 = vpack.c.bf16 %v260, %v260
        %v269 = vpack.c.bf16 %v261, %v261
        %v270 = vpack.c.bf16 %v262, %v262
        %v271 = vpack.c.bf16 %v263, %v263
        %v272 = vpack.c.bf16 %v264, %v264
        %v273 = vpack.c.bf16 %v265, %v265
        %v274 = vpack.c.bf16 %v266, %v266
        %v275 = vpack.c.bf16 %v267, %v267
        %v276 = vld [vmem:[%s211] sm:$0xff]
        %v277 = vld [vmem:[%s211 + $0x8] sm:$0xff]
        %v278 = vld [vmem:[%s211 + $0x10] sm:$0xff]
        %v279 = vld [vmem:[%s211 + $0x18] sm:$0xff]
        %v280 = vld [vmem:[%s211 + $0x20] sm:$0xff]
        %v281 = vld [vmem:[%s211 + $0x28] sm:$0xff]
        %v282 = vld [vmem:[%s211 + $0x30] sm:$0xff]
        %v283 = vld [vmem:[%s211 + $0x38] sm:$0xff]
        %v284 = vld [vmem:[%s211 + $0x40] sm:$0xff]
        %v285 = vld [vmem:[%s211 + $0x48] sm:$0xff]
        %v286 = vld [vmem:[%s211 + $0x50] sm:$0xff]
        %v287 = vld [vmem:[%s211 + $0x58] sm:$0xff]
        %v288 = vld [vmem:[%s211 + $0x60] sm:$0xff]
        %v289 = vld [vmem:[%s211 + $0x68] sm:$0xff]
        %v290 = vld [vmem:[%s211 + $0x70] sm:$0xff]
        %v291 = vld [vmem:[%s211 + $0x78] sm:$0xff]
        %v292 = vld [vmem:[%s211 + $0x80] sm:$0xff]
        %v293 = vld [vmem:[%s211 + $0x88] sm:$0xff]
        %v294 = vld [vmem:[%s211 + $0x90] sm:$0xff]
        %v295 = vld [vmem:[%s211 + $0x98] sm:$0xff]
        %v296 = vld [vmem:[%s211 + $0xa0] sm:$0xff]
        %v297 = vld [vmem:[%s211 + $0xa8] sm:$0xff]
        %v298 = vld [vmem:[%s211 + $0xb0] sm:$0xff]
        %v299 = vld [vmem:[%s211 + $0xb8] sm:$0xff]
        %v300 = vld [vmem:[%s211 + $0xc0] sm:$0xff]
        %v301 = vld [vmem:[%s211 + $0xc8] sm:$0xff]
        %v302 = vld [vmem:[%s211 + $0xd0] sm:$0xff]
        %v303 = vld [vmem:[%s211 + $0xd8] sm:$0xff]
        %v304 = vld [vmem:[%s211 + $0xe0] sm:$0xff]
        %v305 = vld [vmem:[%s211 + $0xe8] sm:$0xff]
        %v306 = vld [vmem:[%s211 + $0xf0] sm:$0xff]
        %v307 = vld [vmem:[%s211 + $0xf8] sm:$0xff]
        %v308 = vld [vmem:[%s211 + $0x100] sm:$0xff]
        %v309 = vld [vmem:[%s211 + $0x108] sm:$0xff]
        %v310 = vld [vmem:[%s211 + $0x110] sm:$0xff]
        %v311 = vld [vmem:[%s211 + $0x118] sm:$0xff]
        %v312 = vld [vmem:[%s211 + $0x120] sm:$0xff]
        %v313 = vld [vmem:[%s211 + $0x128] sm:$0xff]
        %v314 = vld [vmem:[%s211 + $0x130] sm:$0xff]
        %v315 = vld [vmem:[%s211 + $0x138] sm:$0xff]
        %v316 = vld [vmem:[%s211 + $0x140] sm:$0xff]
        %v317 = vld [vmem:[%s211 + $0x148] sm:$0xff]
        %v318 = vld [vmem:[%s211 + $0x150] sm:$0xff]
        %v319 = vld [vmem:[%s211 + $0x158] sm:$0xff]
        %v320 = vld [vmem:[%s211 + $0x160] sm:$0xff]
        %v321 = vld [vmem:[%s211 + $0x168] sm:$0xff]
        %v322 = vld [vmem:[%s211 + $0x170] sm:$0xff]
        %v323 = vld [vmem:[%s211 + $0x178] sm:$0xff]
        %v324 = vld [vmem:[%s211 + $0x180] sm:$0xff]
        %v325 = vld [vmem:[%s211 + $0x188] sm:$0xff]
        %v326 = vld [vmem:[%s211 + $0x190] sm:$0xff]
        %v327 = vld [vmem:[%s211 + $0x198] sm:$0xff]
        %v328 = vld [vmem:[%s211 + $0x1a0] sm:$0xff]
        %v329 = vld [vmem:[%s211 + $0x1a8] sm:$0xff]
        %v330 = vld [vmem:[%s211 + $0x1b0] sm:$0xff]
        %v331 = vld [vmem:[%s211 + $0x1b8] sm:$0xff]
        %v332 = vld [vmem:[%s211 + $0x1c0] sm:$0xff]
        %v333 = vld [vmem:[%s211 + $0x1c8] sm:$0xff]
        %v334 = vld [vmem:[%s211 + $0x1d0] sm:$0xff]
        %v335 = vld [vmem:[%s211 + $0x1d8] sm:$0xff]
        %v336 = vld [vmem:[%s211 + $0x1e0] sm:$0xff]
        %v337 = vld [vmem:[%s211 + $0x1e8] sm:$0xff]
        %v338 = vld [vmem:[%s211 + $0x1f0] sm:$0xff]
        %v339 = vld [vmem:[%s211 + $0x1f8] sm:$0xff]
        %v340 = vld [vmem:[%s211 + $0x200] sm:$0xff]
        %v341 = vld [vmem:[%s211 + $0x208] sm:$0xff]
        %v342 = vld [vmem:[%s211 + $0x210] sm:$0xff]
        %v343 = vld [vmem:[%s211 + $0x218] sm:$0xff]
        %v344 = vld [vmem:[%s211 + $0x220] sm:$0xff]
        %v345 = vld [vmem:[%s211 + $0x228] sm:$0xff]
        %v346 = vld [vmem:[%s211 + $0x230] sm:$0xff]
        %v347 = vld [vmem:[%s211 + $0x238] sm:$0xff]
        %v348 = vld [vmem:[%s211 + $0x240] sm:$0xff]
        %v349 = vld [vmem:[%s211 + $0x248] sm:$0xff]
        %v350 = vld [vmem:[%s211 + $0x250] sm:$0xff]
        %v351 = vld [vmem:[%s211 + $0x258] sm:$0xff]
        %v352 = vld [vmem:[%s211 + $0x260] sm:$0xff]
        %v353 = vld [vmem:[%s211 + $0x268] sm:$0xff]
        %v354 = vld [vmem:[%s211 + $0x270] sm:$0xff]
        %v355 = vld [vmem:[%s211 + $0x278] sm:$0xff]
        %v356 = vld [vmem:[%s211 + $0x280] sm:$0xff]
        %v357 = vld [vmem:[%s211 + $0x288] sm:$0xff]
        %v358 = vld [vmem:[%s211 + $0x290] sm:$0xff]
        %v359 = vld [vmem:[%s211 + $0x298] sm:$0xff]
        %v360 = vld [vmem:[%s211 + $0x2a0] sm:$0xff]
        %v361 = vld [vmem:[%s211 + $0x2a8] sm:$0xff]
        %v362 = vld [vmem:[%s211 + $0x2b0] sm:$0xff]
        %v363 = vld [vmem:[%s211 + $0x2b8] sm:$0xff]
        %v364 = vld [vmem:[%s211 + $0x2c0] sm:$0xff]
        %v365 = vld [vmem:[%s211 + $0x2c8] sm:$0xff]
        %v366 = vld [vmem:[%s211 + $0x2d0] sm:$0xff]
        %v367 = vld [vmem:[%s211 + $0x2d8] sm:$0xff]
        %v368 = vld [vmem:[%s211 + $0x2e0] sm:$0xff]
        %v369 = vld [vmem:[%s211 + $0x2e8] sm:$0xff]
        %v370 = vld [vmem:[%s211 + $0x2f0] sm:$0xff]
        %v371 = vld [vmem:[%s211 + $0x2f8] sm:$0xff]
        %v372 = vld [vmem:[%s211 + $0x300] sm:$0xff]
        %v373 = vld [vmem:[%s211 + $0x308] sm:$0xff]
        %v374 = vld [vmem:[%s211 + $0x310] sm:$0xff]
        %v375 = vld [vmem:[%s211 + $0x318] sm:$0xff]
        %v376 = vld [vmem:[%s211 + $0x320] sm:$0xff]
        %v377 = vld [vmem:[%s211 + $0x328] sm:$0xff]
        %v378 = vld [vmem:[%s211 + $0x330] sm:$0xff]
        %v379 = vld [vmem:[%s211 + $0x338] sm:$0xff]
        %v380 = vld [vmem:[%s211 + $0x340] sm:$0xff]
        %v381 = vld [vmem:[%s211 + $0x348] sm:$0xff]
        %v382 = vld [vmem:[%s211 + $0x350] sm:$0xff]
        %v383 = vld [vmem:[%s211 + $0x358] sm:$0xff]
        %v384 = vld [vmem:[%s211 + $0x360] sm:$0xff]
        %v385 = vld [vmem:[%s211 + $0x368] sm:$0xff]
        %v386 = vld [vmem:[%s211 + $0x370] sm:$0xff]
        %v387 = vld [vmem:[%s211 + $0x378] sm:$0xff]
        %v388 = vld [vmem:[%s211 + $0x380] sm:$0xff]
        %v389 = vld [vmem:[%s211 + $0x388] sm:$0xff]
        %v390 = vld [vmem:[%s211 + $0x390] sm:$0xff]
        %v391 = vld [vmem:[%s211 + $0x398] sm:$0xff]
        %v392 = vld [vmem:[%s211 + $0x3a0] sm:$0xff]
        %v393 = vld [vmem:[%s211 + $0x3a8] sm:$0xff]
        %v394 = vld [vmem:[%s211 + $0x3b0] sm:$0xff]
        %v395 = vld [vmem:[%s211 + $0x3b8] sm:$0xff]
        %v396 = vld [vmem:[%s211 + $0x3c0] sm:$0xff]
        %v397 = vld [vmem:[%s211 + $0x3c8] sm:$0xff]
        %v398 = vld [vmem:[%s211 + $0x3d0] sm:$0xff]
        %v399 = vld [vmem:[%s211 + $0x3d8] sm:$0xff]
        %v400 = vld [vmem:[%s211 + $0x3e0] sm:$0xff]
        %v401 = vld [vmem:[%s211 + $0x3e8] sm:$0xff]
        %v402 = vld [vmem:[%s211 + $0x3f0] sm:$0xff]
        %v403 = vld [vmem:[%s211 + $0x3f8] sm:$0xff]
        %v532 = vunpack.c.l.b16 %v276
        %v533 = vunpack.c.h.b16 %v276
        %v534 = vunpack.c.l.b16 %v277
        %v535 = vunpack.c.h.b16 %v277
        %v536 = vunpack.c.l.b16 %v278
        %v537 = vunpack.c.h.b16 %v278
        %v538 = vunpack.c.l.b16 %v279
        %v539 = vunpack.c.h.b16 %v279
        %v540 = vunpack.c.l.b16 %v280
        %v541 = vunpack.c.h.b16 %v280
        %v542 = vunpack.c.l.b16 %v281
        %v543 = vunpack.c.h.b16 %v281
        %v544 = vunpack.c.l.b16 %v282
        %v545 = vunpack.c.h.b16 %v282
        %v546 = vunpack.c.l.b16 %v283
        %v547 = vunpack.c.h.b16 %v283
        %v548 = vunpack.c.l.b16 %v284
        %v549 = vunpack.c.h.b16 %v284
        %v550 = vunpack.c.l.b16 %v285
        %v551 = vunpack.c.h.b16 %v285
        %v552 = vunpack.c.l.b16 %v286
        %v553 = vunpack.c.h.b16 %v286
        %v554 = vunpack.c.l.b16 %v287
        %v555 = vunpack.c.h.b16 %v287
        %v556 = vunpack.c.l.b16 %v288
        %v557 = vunpack.c.h.b16 %v288
        %v558 = vunpack.c.l.b16 %v289
        %v559 = vunpack.c.h.b16 %v289
        %v560 = vunpack.c.l.b16 %v290
        %v561 = vunpack.c.h.b16 %v290
        %v562 = vunpack.c.l.b16 %v291
        %v563 = vunpack.c.h.b16 %v291
        %v564 = vunpack.c.l.b16 %v292
        %v565 = vunpack.c.h.b16 %v292
        %v566 = vunpack.c.l.b16 %v293
        %v567 = vunpack.c.h.b16 %v293
        %v568 = vunpack.c.l.b16 %v294
        %v569 = vunpack.c.h.b16 %v294
        %v570 = vunpack.c.l.b16 %v295
        %v571 = vunpack.c.h.b16 %v295
        %v572 = vunpack.c.l.b16 %v296
        %v573 = vunpack.c.h.b16 %v296
        %v574 = vunpack.c.l.b16 %v297
        %v575 = vunpack.c.h.b16 %v297
        %v576 = vunpack.c.l.b16 %v298
        %v577 = vunpack.c.h.b16 %v298
        %v578 = vunpack.c.l.b16 %v299
        %v579 = vunpack.c.h.b16 %v299
        %v580 = vunpack.c.l.b16 %v300
        %v581 = vunpack.c.h.b16 %v300
        %v582 = vunpack.c.l.b16 %v301
        %v583 = vunpack.c.h.b16 %v301
        %v584 = vunpack.c.l.b16 %v302
        %v585 = vunpack.c.h.b16 %v302
        %v586 = vunpack.c.l.b16 %v303
        %v587 = vunpack.c.h.b16 %v303
        %v588 = vunpack.c.l.b16 %v304
        %v589 = vunpack.c.h.b16 %v304
        %v590 = vunpack.c.l.b16 %v305
        %v591 = vunpack.c.h.b16 %v305
        %v592 = vunpack.c.l.b16 %v306
        %v593 = vunpack.c.h.b16 %v306
        %v594 = vunpack.c.l.b16 %v307
        %v595 = vunpack.c.h.b16 %v307
        %v596 = vunpack.c.l.b16 %v308
        %v597 = vunpack.c.h.b16 %v308
        %v598 = vunpack.c.l.b16 %v309
        %v599 = vunpack.c.h.b16 %v309
        %v600 = vunpack.c.l.b16 %v310
        %v601 = vunpack.c.h.b16 %v310
        %v602 = vunpack.c.l.b16 %v311
        %v603 = vunpack.c.h.b16 %v311
        %v604 = vunpack.c.l.b16 %v312
        %v605 = vunpack.c.h.b16 %v312
        %v606 = vunpack.c.l.b16 %v313
        %v607 = vunpack.c.h.b16 %v313
        %v608 = vunpack.c.l.b16 %v314
        %v609 = vunpack.c.h.b16 %v314
        %v610 = vunpack.c.l.b16 %v315
        %v611 = vunpack.c.h.b16 %v315
        %v612 = vunpack.c.l.b16 %v316
        %v613 = vunpack.c.h.b16 %v316
        %v614 = vunpack.c.l.b16 %v317
        %v615 = vunpack.c.h.b16 %v317
        %v616 = vunpack.c.l.b16 %v318
        %v617 = vunpack.c.h.b16 %v318
        %v618 = vunpack.c.l.b16 %v319
        %v619 = vunpack.c.h.b16 %v319
        %v620 = vunpack.c.l.b16 %v320
        %v621 = vunpack.c.h.b16 %v320
        %v622 = vunpack.c.l.b16 %v321
        %v623 = vunpack.c.h.b16 %v321
        %v624 = vunpack.c.l.b16 %v322
        %v625 = vunpack.c.h.b16 %v322
        %v626 = vunpack.c.l.b16 %v323
        %v627 = vunpack.c.h.b16 %v323
        %v628 = vunpack.c.l.b16 %v324
        %v629 = vunpack.c.h.b16 %v324
        %v630 = vunpack.c.l.b16 %v325
        %v631 = vunpack.c.h.b16 %v325
        %v632 = vunpack.c.l.b16 %v326
        %v633 = vunpack.c.h.b16 %v326
        %v634 = vunpack.c.l.b16 %v327
        %v635 = vunpack.c.h.b16 %v327
        %v636 = vunpack.c.l.b16 %v328
        %v637 = vunpack.c.h.b16 %v328
        %v638 = vunpack.c.l.b16 %v329
        %v639 = vunpack.c.h.b16 %v329
        %v640 = vunpack.c.l.b16 %v330
        %v641 = vunpack.c.h.b16 %v330
        %v642 = vunpack.c.l.b16 %v331
        %v643 = vunpack.c.h.b16 %v331
        %v644 = vunpack.c.l.b16 %v332
        %v645 = vunpack.c.h.b16 %v332
        %v646 = vunpack.c.l.b16 %v333
        %v647 = vunpack.c.h.b16 %v333
        %v648 = vunpack.c.l.b16 %v334
        %v649 = vunpack.c.h.b16 %v334
        %v650 = vunpack.c.l.b16 %v335
        %v651 = vunpack.c.h.b16 %v335
        %v652 = vunpack.c.l.b16 %v336
        %v653 = vunpack.c.h.b16 %v336
        %v654 = vunpack.c.l.b16 %v337
        %v655 = vunpack.c.h.b16 %v337
        %v656 = vunpack.c.l.b16 %v338
        %v657 = vunpack.c.h.b16 %v338
        %v658 = vunpack.c.l.b16 %v339
        %v659 = vunpack.c.h.b16 %v339
        %v660 = vunpack.c.l.b16 %v340
        %v661 = vunpack.c.h.b16 %v340
        %v662 = vunpack.c.l.b16 %v341
        %v663 = vunpack.c.h.b16 %v341
        %v664 = vunpack.c.l.b16 %v342
        %v665 = vunpack.c.h.b16 %v342
        %v666 = vunpack.c.l.b16 %v343
        %v667 = vunpack.c.h.b16 %v343
        %v668 = vunpack.c.l.b16 %v344
        %v669 = vunpack.c.h.b16 %v344
        %v670 = vunpack.c.l.b16 %v345
        %v671 = vunpack.c.h.b16 %v345
        %v672 = vunpack.c.l.b16 %v346
        %v673 = vunpack.c.h.b16 %v346
        %v674 = vunpack.c.l.b16 %v347
        %v675 = vunpack.c.h.b16 %v347
        %v676 = vunpack.c.l.b16 %v348
        %v677 = vunpack.c.h.b16 %v348
        %v678 = vunpack.c.l.b16 %v349
        %v679 = vunpack.c.h.b16 %v349
        %v680 = vunpack.c.l.b16 %v350
        %v681 = vunpack.c.h.b16 %v350
        %v682 = vunpack.c.l.b16 %v351
        %v683 = vunpack.c.h.b16 %v351
        %v684 = vunpack.c.l.b16 %v352
        %v685 = vunpack.c.h.b16 %v352
        %v686 = vunpack.c.l.b16 %v353
        %v687 = vunpack.c.h.b16 %v353
        %v688 = vunpack.c.l.b16 %v354
        %v689 = vunpack.c.h.b16 %v354
        %v690 = vunpack.c.l.b16 %v355
        %v691 = vunpack.c.h.b16 %v355
        %v692 = vunpack.c.l.b16 %v356
        %v693 = vunpack.c.h.b16 %v356
        %v694 = vunpack.c.l.b16 %v357
        %v695 = vunpack.c.h.b16 %v357
        %v696 = vunpack.c.l.b16 %v358
        %v697 = vunpack.c.h.b16 %v358
        %v698 = vunpack.c.l.b16 %v359
        %v699 = vunpack.c.h.b16 %v359
        %v700 = vunpack.c.l.b16 %v360
        %v701 = vunpack.c.h.b16 %v360
        %v702 = vunpack.c.l.b16 %v361
        %v703 = vunpack.c.h.b16 %v361
        %v704 = vunpack.c.l.b16 %v362
        %v705 = vunpack.c.h.b16 %v362
        %v706 = vunpack.c.l.b16 %v363
        %v707 = vunpack.c.h.b16 %v363
        %v708 = vunpack.c.l.b16 %v364
        %v709 = vunpack.c.h.b16 %v364
        %v710 = vunpack.c.l.b16 %v365
        %v711 = vunpack.c.h.b16 %v365
        %v712 = vunpack.c.l.b16 %v366
        %v713 = vunpack.c.h.b16 %v366
        %v714 = vunpack.c.l.b16 %v367
        %v715 = vunpack.c.h.b16 %v367
        %v716 = vunpack.c.l.b16 %v368
        %v717 = vunpack.c.h.b16 %v368
        %v718 = vunpack.c.l.b16 %v369
        %v719 = vunpack.c.h.b16 %v369
        %v720 = vunpack.c.l.b16 %v370
        %v721 = vunpack.c.h.b16 %v370
        %v722 = vunpack.c.l.b16 %v371
        %v723 = vunpack.c.h.b16 %v371
        %v724 = vunpack.c.l.b16 %v372
        %v725 = vunpack.c.h.b16 %v372
        %v726 = vunpack.c.l.b16 %v373
        %v727 = vunpack.c.h.b16 %v373
        %v728 = vunpack.c.l.b16 %v374
        %v729 = vunpack.c.h.b16 %v374
        %v730 = vunpack.c.l.b16 %v375
        %v731 = vunpack.c.h.b16 %v375
        %v732 = vunpack.c.l.b16 %v376
        %v733 = vunpack.c.h.b16 %v376
        %v734 = vunpack.c.l.b16 %v377
        %v735 = vunpack.c.h.b16 %v377
        %v736 = vunpack.c.l.b16 %v378
        %v737 = vunpack.c.h.b16 %v378
        %v738 = vunpack.c.l.b16 %v379
        %v739 = vunpack.c.h.b16 %v379
        %v740 = vunpack.c.l.b16 %v380
        %v741 = vunpack.c.h.b16 %v380
        %v742 = vunpack.c.l.b16 %v381
        %v743 = vunpack.c.h.b16 %v381
        %v744 = vunpack.c.l.b16 %v382
        %v745 = vunpack.c.h.b16 %v382
        %v746 = vunpack.c.l.b16 %v383
        %v747 = vunpack.c.h.b16 %v383
        %v748 = vunpack.c.l.b16 %v384
        %v749 = vunpack.c.h.b16 %v384
        %v750 = vunpack.c.l.b16 %v385
        %v751 = vunpack.c.h.b16 %v385
        %v752 = vunpack.c.l.b16 %v386
        %v753 = vunpack.c.h.b16 %v386
        %v754 = vunpack.c.l.b16 %v387
        %v755 = vunpack.c.h.b16 %v387
        %v756 = vunpack.c.l.b16 %v388
        %v757 = vunpack.c.h.b16 %v388
        %v758 = vunpack.c.l.b16 %v389
        %v759 = vunpack.c.h.b16 %v389
        %v760 = vunpack.c.l.b16 %v390
        %v761 = vunpack.c.h.b16 %v390
        %v762 = vunpack.c.l.b16 %v391
        %v763 = vunpack.c.h.b16 %v391
        %v764 = vunpack.c.l.b16 %v392
        %v765 = vunpack.c.h.b16 %v392
        %v766 = vunpack.c.l.b16 %v393
        %v767 = vunpack.c.h.b16 %v393
        %v768 = vunpack.c.l.b16 %v394
        %v769 = vunpack.c.h.b16 %v394
        %v770 = vunpack.c.l.b16 %v395
        %v771 = vunpack.c.h.b16 %v395
        %v772 = vunpack.c.l.b16 %v396
        %v773 = vunpack.c.h.b16 %v396
        %v774 = vunpack.c.l.b16 %v397
        %v775 = vunpack.c.h.b16 %v397
        %v776 = vunpack.c.l.b16 %v398
        %v777 = vunpack.c.h.b16 %v398
        %v778 = vunpack.c.l.b16 %v399
        %v779 = vunpack.c.h.b16 %v399
        %v780 = vunpack.c.l.b16 %v400
        %v781 = vunpack.c.h.b16 %v400
        %v782 = vunpack.c.l.b16 %v401
        %v783 = vunpack.c.h.b16 %v401
        %v784 = vunpack.c.l.b16 %v402
        %v785 = vunpack.c.h.b16 %v402
        %v786 = vunpack.c.l.b16 %v403
        %v787 = vunpack.c.h.b16 %v403
        %v788 = vpack.c.b16 %v534, %v532
        %v789 = vpack.c.b16 %v535, %v533
        %v790 = vpack.c.b16 %v538, %v536
        %v791 = vpack.c.b16 %v539, %v537
        %v792 = vpack.c.b16 %v542, %v540
        %v793 = vpack.c.b16 %v543, %v541
        %v794 = vpack.c.b16 %v546, %v544
        %v795 = vpack.c.b16 %v547, %v545
        %v796 = vpack.c.b16 %v550, %v548
        %v797 = vpack.c.b16 %v551, %v549
        %v798 = vpack.c.b16 %v554, %v552
        %v799 = vpack.c.b16 %v555, %v553
        %v800 = vpack.c.b16 %v558, %v556
        %v801 = vpack.c.b16 %v559, %v557
        %v802 = vpack.c.b16 %v562, %v560
        %v803 = vpack.c.b16 %v563, %v561
        %v804 = vpack.c.b16 %v566, %v564
        %v805 = vpack.c.b16 %v567, %v565
        %v806 = vpack.c.b16 %v570, %v568
        %v807 = vpack.c.b16 %v571, %v569
        %v808 = vpack.c.b16 %v574, %v572
        %v809 = vpack.c.b16 %v575, %v573
        %v810 = vpack.c.b16 %v578, %v576
        %v811 = vpack.c.b16 %v579, %v577
        %v812 = vpack.c.b16 %v582, %v580
        %v813 = vpack.c.b16 %v583, %v581
        %v814 = vpack.c.b16 %v586, %v584
        %v815 = vpack.c.b16 %v587, %v585
        %v816 = vpack.c.b16 %v590, %v588
        %v817 = vpack.c.b16 %v591, %v589
        %v818 = vpack.c.b16 %v594, %v592
        %v819 = vpack.c.b16 %v595, %v593
        %v820 = vpack.c.b16 %v598, %v596
        %v821 = vpack.c.b16 %v599, %v597
        %v822 = vpack.c.b16 %v602, %v600
        %v823 = vpack.c.b16 %v603, %v601
        %v824 = vpack.c.b16 %v606, %v604
        %v825 = vpack.c.b16 %v607, %v605
        %v826 = vpack.c.b16 %v610, %v608
        %v827 = vpack.c.b16 %v611, %v609
        %v828 = vpack.c.b16 %v614, %v612
        %v829 = vpack.c.b16 %v615, %v613
        %v830 = vpack.c.b16 %v618, %v616
        %v831 = vpack.c.b16 %v619, %v617
        %v832 = vpack.c.b16 %v622, %v620
        %v833 = vpack.c.b16 %v623, %v621
        %v834 = vpack.c.b16 %v626, %v624
        %v835 = vpack.c.b16 %v627, %v625
        %v836 = vpack.c.b16 %v630, %v628
        %v837 = vpack.c.b16 %v631, %v629
        %v838 = vpack.c.b16 %v634, %v632
        %v839 = vpack.c.b16 %v635, %v633
        %v840 = vpack.c.b16 %v638, %v636
        %v841 = vpack.c.b16 %v639, %v637
        %v842 = vpack.c.b16 %v642, %v640
        %v843 = vpack.c.b16 %v643, %v641
        %v844 = vpack.c.b16 %v646, %v644
        %v845 = vpack.c.b16 %v647, %v645
        %v846 = vpack.c.b16 %v650, %v648
        %v847 = vpack.c.b16 %v651, %v649
        %v848 = vpack.c.b16 %v654, %v652
        %v849 = vpack.c.b16 %v655, %v653
        %v850 = vpack.c.b16 %v658, %v656
        %v851 = vpack.c.b16 %v659, %v657
        %v852 = vpack.c.b16 %v662, %v660
        %v853 = vpack.c.b16 %v663, %v661
        %v854 = vpack.c.b16 %v666, %v664
        %v855 = vpack.c.b16 %v667, %v665
        %v856 = vpack.c.b16 %v670, %v668
        %v857 = vpack.c.b16 %v671, %v669
        %v858 = vpack.c.b16 %v674, %v672
        %v859 = vpack.c.b16 %v675, %v673
        %v860 = vpack.c.b16 %v678, %v676
        %v861 = vpack.c.b16 %v679, %v677
        %v862 = vpack.c.b16 %v682, %v680
        %v863 = vpack.c.b16 %v683, %v681
        %v864 = vpack.c.b16 %v686, %v684
        %v865 = vpack.c.b16 %v687, %v685
        %v866 = vpack.c.b16 %v690, %v688
        %v867 = vpack.c.b16 %v691, %v689
        %v868 = vpack.c.b16 %v694, %v692
        %v869 = vpack.c.b16 %v695, %v693
        %v870 = vpack.c.b16 %v698, %v696
        %v871 = vpack.c.b16 %v699, %v697
        %v872 = vpack.c.b16 %v702, %v700
        %v873 = vpack.c.b16 %v703, %v701
        %v874 = vpack.c.b16 %v706, %v704
        %v875 = vpack.c.b16 %v707, %v705
        %v876 = vpack.c.b16 %v710, %v708
        %v877 = vpack.c.b16 %v711, %v709
        %v878 = vpack.c.b16 %v714, %v712
        %v879 = vpack.c.b16 %v715, %v713
        %v880 = vpack.c.b16 %v718, %v716
        %v881 = vpack.c.b16 %v719, %v717
        %v882 = vpack.c.b16 %v722, %v720
        %v883 = vpack.c.b16 %v723, %v721
        %v884 = vpack.c.b16 %v726, %v724
        %v885 = vpack.c.b16 %v727, %v725
        %v886 = vpack.c.b16 %v730, %v728
        %v887 = vpack.c.b16 %v731, %v729
        %v888 = vpack.c.b16 %v734, %v732
        %v889 = vpack.c.b16 %v735, %v733
        %v890 = vpack.c.b16 %v738, %v736
        %v891 = vpack.c.b16 %v739, %v737
        %v892 = vpack.c.b16 %v742, %v740
        %v893 = vpack.c.b16 %v743, %v741
        %v894 = vpack.c.b16 %v746, %v744
        %v895 = vpack.c.b16 %v747, %v745
        %v896 = vpack.c.b16 %v750, %v748
        %v897 = vpack.c.b16 %v751, %v749
        %v898 = vpack.c.b16 %v754, %v752
        %v899 = vpack.c.b16 %v755, %v753
        %v900 = vpack.c.b16 %v758, %v756
        %v901 = vpack.c.b16 %v759, %v757
        %v902 = vpack.c.b16 %v762, %v760
        %v903 = vpack.c.b16 %v763, %v761
        %v904 = vpack.c.b16 %v766, %v764
        %v905 = vpack.c.b16 %v767, %v765
        %v906 = vpack.c.b16 %v770, %v768
        %v907 = vpack.c.b16 %v771, %v769
        %v908 = vpack.c.b16 %v774, %v772
        %v909 = vpack.c.b16 %v775, %v773
        %v910 = vpack.c.b16 %v778, %v776
        %v911 = vpack.c.b16 %v779, %v777
        %v912 = vpack.c.b16 %v782, %v780
        %v913 = vpack.c.b16 %v783, %v781
        %v914 = vpack.c.b16 %v786, %v784
        %v915 = vpack.c.b16 %v787, %v785
        %1044 = vmatprep.subr.bf16.mxu0 %v789
        %1045 = vmatpush1.bf16.msra.mxu0 %v788
        %1046 = vmatprep.subr.bf16.mxu0 %v791
        %1047 = vmatpush1.bf16.msra.mxu0 %v790
        %1048 = vmatprep.subr.bf16.mxu0 %v793
        %1049 = vmatpush1.bf16.msra.mxu0 %v792
        %1050 = vmatprep.subr.bf16.mxu0 %v795
        %1051 = vmatpush1.bf16.msra.mxu0 %v794
        %1052 = vmatprep.subr.bf16.mxu0 %v797
        %1053 = vmatpush1.bf16.msra.mxu0 %v796
        %1054 = vmatprep.subr.bf16.mxu0 %v799
        %1055 = vmatpush1.bf16.msra.mxu0 %v798
        %1056 = vmatprep.subr.bf16.mxu0 %v801
        %1057 = vmatpush1.bf16.msra.mxu0 %v800
        %1058 = vmatprep.subr.bf16.mxu0 %v803
        %1059 = vmatpush1.bf16.msra.mxu0 %v802
        %1060 = vmatprep.subr.bf16.mxu0 %v805
        %1061 = vmatpush1.bf16.msra.mxu0 %v804
        %1062 = vmatprep.subr.bf16.mxu0 %v807
        %1063 = vmatpush1.bf16.msra.mxu0 %v806
        %1064 = vmatprep.subr.bf16.mxu0 %v809
        %1065 = vmatpush1.bf16.msra.mxu0 %v808
        %1066 = vmatprep.subr.bf16.mxu0 %v811
        %1067 = vmatpush1.bf16.msra.mxu0 %v810
        %1068 = vmatprep.subr.bf16.mxu0 %v813
        %1069 = vmatpush1.bf16.msra.mxu0 %v812
        %1070 = vmatprep.subr.bf16.mxu0 %v815
        %1071 = vmatpush1.bf16.msra.mxu0 %v814
        %1072 = vmatprep.subr.bf16.mxu0 %v817
        %1073 = vmatpush1.bf16.msra.mxu0 %v816
        %1074 = vmatprep.subr.bf16.mxu0 %v819
        %1075 = vmatpush1.bf16.msra.mxu0 %v818
        %1076 = vmatprep.mubr.bf16.mxu0 %v269
        %1077 = vmatmul.mubr.bf16.gmra.mrb[0].mxu0 %v268
        %v1078 = vpop.f32.mrb[0].mxu0
        %v1079 = vadd.f32 0.0, %v1078
        %v1080 = vpop.f32.mrb[0].mxu0
        %v1081 = vadd.f32 0.0, %v1080
        %v1082 = vpop.f32.mrb[0].mxu0
        %v1083 = vpop.f32.mrb[0].mxu0
        %1084 = vdwg.mxu0
        %1085 = vmatprep.subr.bf16.mxu0 %v821
        %1086 = vmatpush1.bf16.msra.mxu0 %v820
        %1087 = vmatprep.subr.bf16.mxu0 %v823
        %1088 = vmatpush1.bf16.msra.mxu0 %v822
        %1089 = vmatprep.subr.bf16.mxu0 %v825
        %1090 = vmatpush1.bf16.msra.mxu0 %v824
        %1091 = vmatprep.subr.bf16.mxu0 %v827
        %1092 = vmatpush1.bf16.msra.mxu0 %v826
        %1093 = vmatprep.subr.bf16.mxu0 %v829
        %1094 = vmatpush1.bf16.msra.mxu0 %v828
        %1095 = vmatprep.subr.bf16.mxu0 %v831
        %1096 = vmatpush1.bf16.msra.mxu0 %v830
        %1097 = vmatprep.subr.bf16.mxu0 %v833
        %1098 = vmatpush1.bf16.msra.mxu0 %v832
        %1099 = vmatprep.subr.bf16.mxu0 %v835
        %1100 = vmatpush1.bf16.msra.mxu0 %v834
        %1101 = vmatprep.subr.bf16.mxu0 %v837
        %1102 = vmatpush1.bf16.msra.mxu0 %v836
        %1103 = vmatprep.subr.bf16.mxu0 %v839
        %1104 = vmatpush1.bf16.msra.mxu0 %v838
        %1105 = vmatprep.subr.bf16.mxu0 %v841
        %1106 = vmatpush1.bf16.msra.mxu0 %v840
        %1107 = vmatprep.subr.bf16.mxu0 %v843
        %1108 = vmatpush1.bf16.msra.mxu0 %v842
        %1109 = vmatprep.subr.bf16.mxu0 %v845
        %1110 = vmatpush1.bf16.msra.mxu0 %v844
        %1111 = vmatprep.subr.bf16.mxu0 %v847
        %1112 = vmatpush1.bf16.msra.mxu0 %v846
        %1113 = vmatprep.subr.bf16.mxu0 %v849
        %1114 = vmatpush1.bf16.msra.mxu0 %v848
        %1115 = vmatprep.subr.bf16.mxu0 %v851
        %1116 = vmatpush1.bf16.msra.mxu0 %v850
        %1117 = vmatprep.mubr.bf16.mxu0 %v271
        %1118 = vmatmul.mubr.bf16.gmra.mrb[0].mxu0 %v270
        %v1119 = vpop.f32.mrb[0].mxu0
        %v1120 = vadd.f32 %v1079, %v1119
        %v1121 = vpop.f32.mrb[0].mxu0
        %v1122 = vadd.f32 %v1081, %v1121
        %v1123 = vpop.f32.mrb[0].mxu0
        %v1124 = vpop.f32.mrb[0].mxu0
        %1125 = vdwg.mxu0
        %1126 = vmatprep.subr.bf16.mxu0 %v853
        %1127 = vmatpush1.bf16.msra.mxu0 %v852
        %1128 = vmatprep.subr.bf16.mxu0 %v855
        %1129 = vmatpush1.bf16.msra.mxu0 %v854
        %1130 = vmatprep.subr.bf16.mxu0 %v857
        %1131 = vmatpush1.bf16.msra.mxu0 %v856
        %1132 = vmatprep.subr.bf16.mxu0 %v859
        %1133 = vmatpush1.bf16.msra.mxu0 %v858
        %1134 = vmatprep.subr.bf16.mxu0 %v861
        %1135 = vmatpush1.bf16.msra.mxu0 %v860
        %1136 = vmatprep.subr.bf16.mxu0 %v863
        %1137 = vmatpush1.bf16.msra.mxu0 %v862
        %1138 = vmatprep.subr.bf16.mxu0 %v865
        %1139 = vmatpush1.bf16.msra.mxu0 %v864
        %1140 = vmatprep.subr.bf16.mxu0 %v867
        %1141 = vmatpush1.bf16.msra.mxu0 %v866
        %1142 = vmatprep.subr.bf16.mxu0 %v869
        %1143 = vmatpush1.bf16.msra.mxu0 %v868
        %1144 = vmatprep.subr.bf16.mxu0 %v871
        %1145 = vmatpush1.bf16.msra.mxu0 %v870
        %1146 = vmatprep.subr.bf16.mxu0 %v873
        %1147 = vmatpush1.bf16.msra.mxu0 %v872
        %1148 = vmatprep.subr.bf16.mxu0 %v875
        %1149 = vmatpush1.bf16.msra.mxu0 %v874
        %1150 = vmatprep.subr.bf16.mxu0 %v877
        %1151 = vmatpush1.bf16.msra.mxu0 %v876
        %1152 = vmatprep.subr.bf16.mxu0 %v879
        %1153 = vmatpush1.bf16.msra.mxu0 %v878
        %1154 = vmatprep.subr.bf16.mxu0 %v881
        %1155 = vmatpush1.bf16.msra.mxu0 %v880
        %1156 = vmatprep.subr.bf16.mxu0 %v883
        %1157 = vmatpush1.bf16.msra.mxu0 %v882
        %1158 = vmatprep.mubr.bf16.mxu0 %v273
        %1159 = vmatmul.mubr.bf16.gmra.mrb[0].mxu0 %v272
        %v1160 = vpop.f32.mrb[0].mxu0
        %v1161 = vadd.f32 %v1120, %v1160
        %v1162 = vpop.f32.mrb[0].mxu0
        %v1163 = vadd.f32 %v1122, %v1162
        %v1164 = vpop.f32.mrb[0].mxu0
        %v1165 = vpop.f32.mrb[0].mxu0
        %1166 = vdwg.mxu0
        %1167 = vmatprep.subr.bf16.mxu0 %v885
        %1168 = vmatpush1.bf16.msra.mxu0 %v884
        %1169 = vmatprep.subr.bf16.mxu0 %v887
        %1170 = vmatpush1.bf16.msra.mxu0 %v886
        %1171 = vmatprep.subr.bf16.mxu0 %v889
        %1172 = vmatpush1.bf16.msra.mxu0 %v888
        %1173 = vmatprep.subr.bf16.mxu0 %v891
        %1174 = vmatpush1.bf16.msra.mxu0 %v890
        %1175 = vmatprep.subr.bf16.mxu0 %v893
        %1176 = vmatpush1.bf16.msra.mxu0 %v892
        %1177 = vmatprep.subr.bf16.mxu0 %v895
        %1178 = vmatpush1.bf16.msra.mxu0 %v894
        %1179 = vmatprep.subr.bf16.mxu0 %v897
        %1180 = vmatpush1.bf16.msra.mxu0 %v896
        %1181 = vmatprep.subr.bf16.mxu0 %v899
        %1182 = vmatpush1.bf16.msra.mxu0 %v898
        %1183 = vmatprep.subr.bf16.mxu0 %v901
        %1184 = vmatpush1.bf16.msra.mxu0 %v900
        %1185 = vmatprep.subr.bf16.mxu0 %v903
        %1186 = vmatpush1.bf16.msra.mxu0 %v902
        %1187 = vmatprep.subr.bf16.mxu0 %v905
        %1188 = vmatpush1.bf16.msra.mxu0 %v904
        %1189 = vmatprep.subr.bf16.mxu0 %v907
        %1190 = vmatpush1.bf16.msra.mxu0 %v906
        %1191 = vmatprep.subr.bf16.mxu0 %v909
        %1192 = vmatpush1.bf16.msra.mxu0 %v908
        %1193 = vmatprep.subr.bf16.mxu0 %v911
        %1194 = vmatpush1.bf16.msra.mxu0 %v910
        %1195 = vmatprep.subr.bf16.mxu0 %v913
        %1196 = vmatpush1.bf16.msra.mxu0 %v912
        %1197 = vmatprep.subr.bf16.mxu0 %v915
        %1198 = vmatpush1.bf16.msra.mxu0 %v914
        %1199 = vmatprep.mubr.bf16.mxu0 %v275
        %1200 = vmatmul.mubr.bf16.gmra.mrb[0].mxu0 %v274
        %v1201 = vpop.f32.mrb[0].mxu0
        %v1202 = vadd.f32 %v1161, %v1201
        %v1203 = vpop.f32.mrb[0].mxu0
        %v1204 = vadd.f32 %v1163, %v1203
        %v1205 = vpop.f32.mrb[0].mxu0
        %v1206 = vpop.f32.mrb[0].mxu0
        %1207 = vdwg.mxu0
        %v1208 = vadd.f32 %v258, %v1202
        %v1209 = vadd.f32 %v259, %v1204
        %1210 = vst [vmem:[#allocation2] sm:$0xff] %v1208
        %1211 = vst [vmem:[#allocation2 + $0x8] sm:$0xff] %v1209
        // Predicated region
        $region45: #{vae_forward.5} parent=31 // pred_check
          %p1212 = pneg %p252
        $region46: #{vae_forward.5} parent=31 // pred_check_branch
          %1214 = sbr.rel (%p1212) target = $region48
        $region47: #{vae_forward.5} parent=31 // pred_region
          %v1215 = vld [vmem:[#allocation2] sm:$0xff]
          %v1216 = vld [vmem:[#allocation2 + $0x8] sm:$0xff]
          %v1217 = vld [vmem:[%s244] sm:$0x3]
          %v1219 = vlaneseq
          %v1220 = vshrl.u32 %v1219, 7
          %v1221 = vsub.s32 0, %v1220
          %v1222 = vrot.slane %v1217, %v1221
          %v1223 = vlaneseq
          %v1224 = vshrl.u32 %v1223, 7
          %v1225 = vsub.s32 1, %v1224
          %v1226 = vrot.slane %v1217, %v1225
          %v1229 = vadd.f32 %v1215, %v1222
          %v1230 = vadd.f32 %v1216, %v1226
          %v1231 = vmax.f32 %v1229, 0.0
          %v1232 = vmax.f32 %v1230, 0.0
          %v1233 = vpack.c.bf16 %v1231, %v1231
          %v1234 = vpack.c.bf16 %v1232, %v1232
          %v1237 = vunpack.c.l.b16 %v1233
          %v1238 = vunpack.c.l.b16 %v1234
          %v1239 = vpack.c.b16 %v1238, %v1237
          %1241 = vst [vmem:[%s250] sm:$0xff] %v1239
        $region48: #{vae_forward.5} parent=31 // pred_fallthru
          _
        %s1242 = smul.u32 2, %s22
        %p1243 = scmp.lt.s32.totalorder %s1242, 3
        %s1244 = scalar_select %p1243, %s1242, 3
        %s1245 = smul.addr %s1244, 4
        %s1246 = scalar_lea.vmem %s3, %s1245
        // Predicated region
        $region49: #{vae_forward.5} parent=31 // pred_check
          %p1247 = pneg %p128
        $region50: #{vae_forward.5} parent=31 // pred_check_branch
          %1249 = sbr.rel (%p1247) target = $region52
        $region51: #{vae_forward.5} parent=31 // pred_region
          %s1250 = smul.u32 2, %s22
        $region52: #{vae_forward.5} parent=31 // pred_fallthru
          _
      $region32: #{vae_forward.5} parent=5 // pred_fallthru
        _
      %p1251 = scmp.le.s32.totalorder 2, %s13
      // Predicated region
      $region53: #{vae_forward.5} parent=5 // pred_check
        %p1252 = pneg %p1251
      $region54: #{vae_forward.5} parent=5 // pred_check_branch
        %1254 = sbr.rel (%p1252) target = $region56
      $region55: #{vae_forward.5} parent=5 // pred_region
        %s1255 = ssub.s32 %s13, 2
        // Predicated region
        $region57: #{vae_forward.5} parent=55 // pred_check
          %p1256 = pneg %p134
        $region58: #{vae_forward.5} parent=55 // pred_check_branch
          %1258 = sbr.rel (%p1256) target = $region60
        $region59: #{vae_forward.5} parent=55 // pred_region
          %s1259 = smul.u32 2, %s24
          %p1260 = scmp.lt.s32.totalorder %s1259, 3
          %s1261 = scalar_select %p1260, %s1259, 3
          %s1262 = smul.addr %s1261, 4
          %s1263 = scalar_lea.vmem %s3, %s1262
        $region60: #{vae_forward.5} parent=55 // pred_fallthru
          _
      $region56: #{vae_forward.5} parent=5 // pred_fallthru
        _
    $region6: #{vae_forward.5} parent=1 // loop_footer
      %s17 = sadd.s32 1, %s13
    $region7: #{vae_forward.5} parent=1 // loop_footer_branch
      %12 = sbr.rel target = $region3
    $region8: #{vae_forward.5} parent=1 // loop_exit
      _
    %1264 = vsyncpa [#allocation4], 1
    %s1265 = scalar_lea.sflag [#allocation4], 1
    %1266 = vsyncpa %s1265, 1
    %1267 = vsyncpa [#allocation6], 1
    %s1268 = scalar_lea.sflag [#allocation6], 1
    %1269 = vsyncpa %s1268, 1

// kernel: vae_forward.9
$region0: #{vae_forward.9}
  #allocation0 [shape = 'u32[]', space=smem, size = 0x4, offset = 0x4, fixed_abs, tag = 'smem constant byte address 0x4 - core index']
  #allocation1 [shape = 'u32[144,128]{1,0:T(1,128)}', space=vmem, size = 0x12000, scoped, tag = 'internal scratch']
  #allocation2 [shape = 'f32[8,512]{1,0:T(8,128)}', space=vmem, size = 0x4000, scoped, tag = 'scratch operand']
  %s0 = inlined_call_operand.vmem [shape: bf16[8,512], index: 0, kind: input, shape index: {}]
  %s1 = inlined_call_operand.vmem [shape: bf16[512,1024], index: 1, kind: input, shape index: {}]
  %s2 = inlined_call_operand.vmem [shape: f32[1,1024], index: 2, kind: input, shape index: {}]
  %s3 = inlined_call_operand.hbm [shape: f32[8,1024], index: 3, kind: output, shape index: {}]
  %s4 = sld [smem:[#allocation0]]
  $region76: #{vae_forward.9} parent=0
    _
  %s6 = ssub.s32 1, %s4
  %s7 = scalar_select 0, %s6, %s4
  $region1: #{vae_forward.9} parent=0
    #allocation3 [shape = 'u8[1048576]{0}', space=vmem, size = 0x100000, scoped, tag = 'input window, operand 1']
    #allocation4 [shape = 'u8[32768]{0}', space=vmem, size = 0x8000, scoped, tag = 'output window, operand 0']
    #allocation5 [shape = 's32[2]{0}', space=sflag, size = 0x8, scoped, tag = 'scoped memory for vae_forward.9']
    %8 = vsyncpa [#allocation5], 0
    %s9 = scalar_lea.sflag [#allocation5], 1
    %10 = vsyncpa %s9, 0
    loop: start=0, step=1, limit=4
    $region2: #{vae_forward.9} parent=1 // loop_pre_header
      _
    $region3: #{vae_forward.9} parent=1 // loop_header
      %s12 = sphi 0, %s16
      %p13 = scmp.ge.s32.totalorder %s12, 4
      %s19 = sphi 0, %s31
      %s20 = sphi 0, %s27
      %s21 = sphi 0, %s19
      %s22 = sphi 0, %s20
      %s23 = sphi 0, %s21
      %s24 = sphi 0, %s22
      %s34 = sphi 0, %s36
      %s37 = sphi 0, %s34
      %s38 = sphi 0, %s37
      %s54 = sphi 0, %s38
      %s62 = sphi 0, %s64
      %s65 = sphi 0, %s62
      %s66 = sphi 0, %s65
      %s82 = sphi 0, %s66
      %s88 = sphi 0, %s90
      %s91 = sphi 0, %s88
      %s92 = sphi 0, %s91
      %s108 = sphi 0, %s92
      %s114 = sphi 0, %s116
      %s117 = sphi 0, %s114
      %s118 = sphi 0, %s117
      %s134 = sphi 0, %s118
    $region4: #{vae_forward.9} parent=1 // loop_header_branch
      %15 = sbr.rel (%p13) target = $region8
    $region5: #{vae_forward.9} parent=1 // loop_body
      %s17 = ssub.s32 %s12, 1
      %s18 = ssub.s32 %s12, 2
      %s25 = sadd.s32 1, %s20
      %p26 = scmp.ge.s32.totalorder %s25, 1
      %s27 = scalar_select %p26, 0, %s25
      %s28 = sadd.s32 1, %s19
      %s29 = scalar_select %p26, %s28, %s19
      %p30 = scmp.ge.s32.totalorder %s29, 2
      %s31 = scalar_select %p30, 0, %s29
      %s32 = ssub.s32 %s20, %s27
      %p33 = scmp.eq.s32.totalorder %s32, 0
      %s35 = sadd.s32 %s34, 1
      %s36 = scalar_select %p33, %s34, %s35
      %p39 = pneg %p33
      %p40 = scmp.eq.s32.totalorder %s12, 1
      %p41 = por %p39, %p40
      %p42 = scmp.ne.s32.totalorder %s34, %s37
      %p43 = scmp.eq.s32.totalorder %s12, 0
      %p44 = por %p42, %p43
      %p45 = scmp.ne.s32.totalorder %s34, %s37
      %p46 = scmp.eq.s32.totalorder %s17, 1
      %p47 = por %p45, %p46
      %p48 = scmp.ne.s32.totalorder %s37, %s38
      %p49 = scmp.eq.s32.totalorder %s17, 0
      %p50 = por %p48, %p49
      %p51 = scmp.ne.s32.totalorder %s37, %s38
      %p52 = scmp.eq.s32.totalorder %s18, 1
      %p53 = por %p51, %p52
      %p55 = scmp.ne.s32.totalorder %s38, %s54
      %p56 = scmp.eq.s32.totalorder %s18, 0
      %p57 = por %p55, %p56
      %s58 = ssub.s32 %s20, %s27
      %s59 = ssub.s32 %s19, %s31
      %s60 = sor.u32 %s58, %s59
      %p61 = scmp.eq.s32.totalorder %s60, 0
      %s63 = sadd.s32 %s62, 1
      %s64 = scalar_select %p61, %s62, %s63
      %p67 = pneg %p61
      %p68 = scmp.eq.s32.totalorder %s12, 1
      %p69 = por %p67, %p68
      %p70 = scmp.ne.s32.totalorder %s62, %s65
      %p71 = scmp.eq.s32.totalorder %s12, 0
      %p72 = por %p70, %p71
      %p73 = scmp.ne.s32.totalorder %s62, %s65
      %p74 = scmp.eq.s32.totalorder %s17, 1
      %p75 = por %p73, %p74
      %p76 = scmp.ne.s32.totalorder %s65, %s66
      %p77 = scmp.eq.s32.totalorder %s17, 0
      %p78 = por %p76, %p77
      %p79 = scmp.ne.s32.totalorder %s65, %s66
      %p80 = scmp.eq.s32.totalorder %s18, 1
      %p81 = por %p79, %p80
      %p83 = scmp.ne.s32.totalorder %s66, %s82
      %p84 = scmp.eq.s32.totalorder %s18, 0
      %p85 = por %p83, %p84
      %s86 = ssub.s32 %s19, %s31
      %p87 = scmp.eq.s32.totalorder %s86, 0
      %s89 = sadd.s32 %s88, 1
      %s90 = scalar_select %p87, %s88, %s89
      %p93 = pneg %p87
      %p94 = scmp.eq.s32.totalorder %s12, 1
      %p95 = por %p93, %p94
      %p96 = scmp.ne.s32.totalorder %s88, %s91
      %p97 = scmp.eq.s32.totalorder %s12, 0
      %p98 = por %p96, %p97
      %p99 = scmp.ne.s32.totalorder %s88, %s91
      %p100 = scmp.eq.s32.totalorder %s17, 1
      %p101 = por %p99, %p100
      %p102 = scmp.ne.s32.totalorder %s91, %s92
      %p103 = scmp.eq.s32.totalorder %s17, 0
      %p104 = por %p102, %p103
      %p105 = scmp.ne.s32.totalorder %s91, %s92
      %p106 = scmp.eq.s32.totalorder %s18, 1
      %p107 = por %p105, %p106
      %p109 = scmp.ne.s32.totalorder %s92, %s108
      %p110 = scmp.eq.s32.totalorder %s18, 0
      %p111 = por %p109, %p110
      %s112 = ssub.s32 %s19, %s31
      %p113 = scmp.eq.s32.totalorder %s112, 0
      %s115 = sadd.s32 %s114, 1
      %s116 = scalar_select %p113, %s114, %s115
      %p119 = pneg %p113
      %p120 = scmp.eq.s32.totalorder %s12, 1
      %p121 = por %p119, %p120
      %p122 = scmp.ne.s32.totalorder %s114, %s117
      %p123 = scmp.eq.s32.totalorder %s12, 0
      %p124 = por %p122, %p123
      %p125 = scmp.ne.s32.totalorder %s114, %s117
      %p126 = scmp.eq.s32.totalorder %s17, 1
      %p127 = por %p125, %p126
      %p128 = scmp.ne.s32.totalorder %s117, %s118
      %p129 = scmp.eq.s32.totalorder %s17, 0
      %p130 = por %p128, %p129
      %p131 = scmp.ne.s32.totalorder %s117, %s118
      %p132 = scmp.eq.s32.totalorder %s18, 1
      %p133 = por %p131, %p132
      %p135 = scmp.ne.s32.totalorder %s118, %s134
      %p136 = scmp.eq.s32.totalorder %s18, 0
      %p137 = por %p135, %p136
      %p138 = scmp.le.s32.totalorder 1, %s12
      %p139 = scmp.lt.s32.totalorder %s12, 3
      %p140 = pnand %p138, %p139
      %p141 = pneg %p140
      // Predicated region
      $region9: #{vae_forward.9} parent=5 // pred_check
        _
      $region10: #{vae_forward.9} parent=5 // pred_check_branch
        %143 = sbr.rel (%p140) target = $region12
      $region11: #{vae_forward.9} parent=5 // pred_region
        %s144 = ssub.s32 %s12, 1
        // Predicated region
        $region13: #{vae_forward.9} parent=11 // pred_check
          %p145 = pneg %p50
        $region14: #{vae_forward.9} parent=11 // pred_check_branch
          %147 = sbr.rel (%p145) target = $region16
        $region15: #{vae_forward.9} parent=11 // pred_region
          %s148 = smul.u32 4, %s22
          %p149 = scmp.lt.s32.totalorder %s148, 3
          %s150 = scalar_select %p149, %s148, 3
          %s151 = smul.addr %s150, 4
          %s152 = scalar_lea.vmem %s0, %s151
          %s153 = smul.u32 4, %s22
        $region16: #{vae_forward.9} parent=11 // pred_fallthru
          _
      $region12: #{vae_forward.9} parent=5 // pred_fallthru
        _
      %p154 = scmp.lt.s32.totalorder %s12, 2
      // Predicated region
      $region17: #{vae_forward.9} parent=5 // pred_check
        %p155 = pneg %p154
      $region18: #{vae_forward.9} parent=5 // pred_check_branch
        %157 = sbr.rel (%p155) target = $region20
      $region19: #{vae_forward.9} parent=5 // pred_region
        // Predicated region
        $region21: #{vae_forward.9} parent=19 // pred_check
          %p158 = pneg %p72
        $region22: #{vae_forward.9} parent=19 // pred_check_branch
          %160 = sbr.rel (%p158) target = $region24
        $region23: #{vae_forward.9} parent=19 // pred_region
          %s161 = sand.u32 %s62, 1
          %s162 = sand.u32 %s62, 1
          %s163 = smul.addr %s162, 1024
          %s164 = scalar_lea.vmem [#allocation3], %s163
          %s165 = smul.u32 64, %s20
          %s166 = smul.u32 4, %s19
          %s167 = smul.addr %s165, 8
          %s168 = sadd.s32 %s166, %s167
          %s169 = smul.addr %s168, 4
          %s170 = scalar_lea.vmem %s1, %s169
          // Predicated region
          $region25: #{vae_forward.9} parent=23 // pred_check
            _
          $region26: #{vae_forward.9} parent=23 // pred_check_branch
            %172 = sbr.rel (0) target = $region28
          $region27: #{vae_forward.9} parent=23 // pred_region
            // Predicated region
            $region29: #{vae_forward.9} parent=27 // pred_check
              _
            $region30: #{vae_forward.9} parent=27 // pred_check_branch
              %174 = sbr.rel (0) target = $region32
            $region31: #{vae_forward.9} parent=27 // pred_region
              loop: start=0, step=1, limit=1
              $region33: #{vae_forward.9} parent=31 // loop_pre_header
                _
              $region34: #{vae_forward.9} parent=31 // loop_header
                %s176 = sphi 0, %s180
                %p177 = scmp.ge.s32.totalorder %s176, 1
                %s181 = sphi %s170, %s170
                %s182 = sphi %s164, %s164
              $region35: #{vae_forward.9} parent=31 // loop_header_branch
                %179 = sbr.rel (%p177) target = $region39
              $region36: #{vae_forward.9} parent=31 // loop_body
                %v183 = vld [vmem:[%s181] sm:$0xff]
                %184 = vst [vmem:[%s182] sm:$0xff] %v183
                %v185 = vld [vmem:[%s181 + $0x8] sm:$0xff]
                %186 = vst [vmem:[%s182 + $0x8] sm:$0xff] %v185
                %v187 = vld [vmem:[%s181 + $0x20] sm:$0xff]
                %188 = vst [vmem:[%s182 + $0x10] sm:$0xff] %v187
                %v189 = vld [vmem:[%s181 + $0x28] sm:$0xff]
                %190 = vst [vmem:[%s182 + $0x18] sm:$0xff] %v189
                %v191 = vld [vmem:[%s181 + $0x40] sm:$0xff]
                %192 = vst [vmem:[%s182 + $0x20] sm:$0xff] %v191
                %v193 = vld [vmem:[%s181 + $0x48] sm:$0xff]
                %194 = vst [vmem:[%s182 + $0x28] sm:$0xff] %v193
                %v195 = vld [vmem:[%s181 + $0x60] sm:$0xff]
                %196 = vst [vmem:[%s182 + $0x30] sm:$0xff] %v195
                %v197 = vld [vmem:[%s181 + $0x68] sm:$0xff]
                %198 = vst [vmem:[%s182 + $0x38] sm:$0xff] %v197
                %v199 = vld [vmem:[%s181 + $0x80] sm:$0xff]
                %200 = vst [vmem:[%s182 + $0x40] sm:$0xff] %v199
                %v201 = vld [vmem:[%s181 + $0x88] sm:$0xff]
                %202 = vst [vmem:[%s182 + $0x48] sm:$0xff] %v201
                %v203 = vld [vmem:[%s181 + $0xa0] sm:$0xff]
                %204 = vst [vmem:[%s182 + $0x50] sm:$0xff] %v203
                %v205 = vld [vmem:[%s181 + $0xa8] sm:$0xff]
                %206 = vst [vmem:[%s182 + $0x58] sm:$0xff] %v205
                %v207 = vld [vmem:[%s181 + $0xc0] sm:$0xff]
                %208 = vst [vmem:[%s182 + $0x60] sm:$0xff] %v207
                %v209 = vld [vmem:[%s181 + $0xc8] sm:$0xff]
                %210 = vst [vmem:[%s182 + $0x68] sm:$0xff] %v209
                %v211 = vld [vmem:[%s181 + $0xe0] sm:$0xff]
                %212 = vst [vmem:[%s182 + $0x70] sm:$0xff] %v211
                %v213 = vld [vmem:[%s181 + $0xe8] sm:$0xff]
                %214 = vst [vmem:[%s182 + $0x78] sm:$0xff] %v213
                %v215 = vld [vmem:[%s181 + $0x100] sm:$0xff]
                %216 = vst [vmem:[%s182 + $0x80] sm:$0xff] %v215
                %v217 = vld [vmem:[%s181 + $0x108] sm:$0xff]
                %218 = vst [vmem:[%s182 + $0x88] sm:$0xff] %v217
                %v219 = vld [vmem:[%s181 + $0x120] sm:$0xff]
                %220 = vst [vmem:[%s182 + $0x90] sm:$0xff] %v219
                %v221 = vld [vmem:[%s181 + $0x128] sm:$0xff]
                %222 = vst [vmem:[%s182 + $0x98] sm:$0xff] %v221
                %v223 = vld [vmem:[%s181 + $0x140] sm:$0xff]
                %224 = vst [vmem:[%s182 + $0xa0] sm:$0xff] %v223
                %v225 = vld [vmem:[%s181 + $0x148] sm:$0xff]
                %226 = vst [vmem:[%s182 + $0xa8] sm:$0xff] %v225
                %v227 = vld [vmem:[%s181 + $0x160] sm:$0xff]
                %228 = vst [vmem:[%s182 + $0xb0] sm:$0xff] %v227
                %v229 = vld [vmem:[%s181 + $0x168] sm:$0xff]
                %230 = vst [vmem:[%s182 + $0xb8] sm:$0xff] %v229
                %v231 = vld [vmem:[%s181 + $0x180] sm:$0xff]
                %232 = vst [vmem:[%s182 + $0xc0] sm:$0xff] %v231
                %v233 = vld [vmem:[%s181 + $0x188] sm:$0xff]
                %234 = vst [vmem:[%s182 + $0xc8] sm:$0xff] %v233
                %v235 = vld [vmem:[%s181 + $0x1a0] sm:$0xff]
                %236 = vst [vmem:[%s182 + $0xd0] sm:$0xff] %v235
                %v237 = vld [vmem:[%s181 + $0x1a8] sm:$0xff]
                %238 = vst [vmem:[%s182 + $0xd8] sm:$0xff] %v237
                %v239 = vld [vmem:[%s181 + $0x1c0] sm:$0xff]
                %240 = vst [vmem:[%s182 + $0xe0] sm:$0xff] %v239
                %v241 = vld [vmem:[%s181 + $0x1c8] sm:$0xff]
                %242 = vst [vmem:[%s182 + $0xe8] sm:$0xff] %v241
                %v243 = vld [vmem:[%s181 + $0x1e0] sm:$0xff]
                %244 = vst [vmem:[%s182 + $0xf0] sm:$0xff] %v243
                %v245 = vld [vmem:[%s181 + $0x1e8] sm:$0xff]
                %246 = vst [vmem:[%s182 + $0xf8] sm:$0xff] %v245
                %v247 = vld [vmem:[%s181 + $0x200] sm:$0xff]
                %248 = vst [vmem:[%s182 + $0x100] sm:$0xff] %v247
                %v249 = vld [vmem:[%s181 + $0x208] sm:$0xff]
                %250 = vst [vmem:[%s182 + $0x108] sm:$0xff] %v249
                %v251 = vld [vmem:[%s181 + $0x220] sm:$0xff]
                %252 = vst [vmem:[%s182 + $0x110] sm:$0xff] %v251
                %v253 = vld [vmem:[%s181 + $0x228] sm:$0xff]
                %254 = vst [vmem:[%s182 + $0x118] sm:$0xff] %v253
                %v255 = vld [vmem:[%s181 + $0x240] sm:$0xff]
                %256 = vst [vmem:[%s182 + $0x120] sm:$0xff] %v255
                %v257 = vld [vmem:[%s181 + $0x248] sm:$0xff]
                %258 = vst [vmem:[%s182 + $0x128] sm:$0xff] %v257
                %v259 = vld [vmem:[%s181 + $0x260] sm:$0xff]
                %260 = vst [vmem:[%s182 + $0x130] sm:$0xff] %v259
                %v261 = vld [vmem:[%s181 + $0x268] sm:$0xff]
                %262 = vst [vmem:[%s182 + $0x138] sm:$0xff] %v261
                %v263 = vld [vmem:[%s181 + $0x280] sm:$0xff]
                %264 = vst [vmem:[%s182 + $0x140] sm:$0xff] %v263
                %v265 = vld [vmem:[%s181 + $0x288] sm:$0xff]
                %266 = vst [vmem:[%s182 + $0x148] sm:$0xff] %v265
                %v267 = vld [vmem:[%s181 + $0x2a0] sm:$0xff]
                %268 = vst [vmem:[%s182 + $0x150] sm:$0xff] %v267
                %v269 = vld [vmem:[%s181 + $0x2a8] sm:$0xff]
                %270 = vst [vmem:[%s182 + $0x158] sm:$0xff] %v269
                %v271 = vld [vmem:[%s181 + $0x2c0] sm:$0xff]
                %272 = vst [vmem:[%s182 + $0x160] sm:$0xff] %v271
                %v273 = vld [vmem:[%s181 + $0x2c8] sm:$0xff]
                %274 = vst [vmem:[%s182 + $0x168] sm:$0xff] %v273
                %v275 = vld [vmem:[%s181 + $0x2e0] sm:$0xff]
                %276 = vst [vmem:[%s182 + $0x170] sm:$0xff] %v275
                %v277 = vld [vmem:[%s181 + $0x2e8] sm:$0xff]
                %278 = vst [vmem:[%s182 + $0x178] sm:$0xff] %v277
                %v279 = vld [vmem:[%s181 + $0x300] sm:$0xff]
                %280 = vst [vmem:[%s182 + $0x180] sm:$0xff] %v279
                %v281 = vld [vmem:[%s181 + $0x308] sm:$0xff]
                %282 = vst [vmem:[%s182 + $0x188] sm:$0xff] %v281
                %v283 = vld [vmem:[%s181 + $0x320] sm:$0xff]
                %284 = vst [vmem:[%s182 + $0x190] sm:$0xff] %v283
                %v285 = vld [vmem:[%s181 + $0x328] sm:$0xff]
                %286 = vst [vmem:[%s182 + $0x198] sm:$0xff] %v285
                %v287 = vld [vmem:[%s181 + $0x340] sm:$0xff]
                %288 = vst [vmem:[%s182 + $0x1a0] sm:$0xff] %v287
                %v289 = vld [vmem:[%s181 + $0x348] sm:$0xff]
                %290 = vst [vmem:[%s182 + $0x1a8] sm:$0xff] %v289
                %v291 = vld [vmem:[%s181 + $0x360] sm:$0xff]
                %292 = vst [vmem:[%s182 + $0x1b0] sm:$0xff] %v291
                %v293 = vld [vmem:[%s181 + $0x368] sm:$0xff]
                %294 = vst [vmem:[%s182 + $0x1b8] sm:$0xff] %v293
                %v295 = vld [vmem:[%s181 + $0x380] sm:$0xff]
                %296 = vst [vmem:[%s182 + $0x1c0] sm:$0xff] %v295
                %v297 = vld [vmem:[%s181 + $0x388] sm:$0xff]
                %298 = vst [vmem:[%s182 + $0x1c8] sm:$0xff] %v297
                %v299 = vld [vmem:[%s181 + $0x3a0] sm:$0xff]
                %300 = vst [vmem:[%s182 + $0x1d0] sm:$0xff] %v299
                %v301 = vld [vmem:[%s181 + $0x3a8] sm:$0xff]
                %302 = vst [vmem:[%s182 + $0x1d8] sm:$0xff] %v301
                %v303 = vld [vmem:[%s181 + $0x3c0] sm:$0xff]
                %304 = vst [vmem:[%s182 + $0x1e0] sm:$0xff] %v303
                %v305 = vld [vmem:[%s181 + $0x3c8] sm:$0xff]
                %306 = vst [vmem:[%s182 + $0x1e8] sm:$0xff] %v305
                %v307 = vld [vmem:[%s181 + $0x3e0] sm:$0xff]
                %308 = vst [vmem:[%s182 + $0x1f0] sm:$0xff] %v307
                %v309 = vld [vmem:[%s181 + $0x3e8] sm:$0xff]
                %310 = vst [vmem:[%s182 + $0x1f8] sm:$0xff] %v309
                %v311 = vld [vmem:[%s181 + $0x400] sm:$0xff]
                %312 = vst [vmem:[%s182 + $0x200] sm:$0xff] %v311
                %v313 = vld [vmem:[%s181 + $0x408] sm:$0xff]
                %314 = vst [vmem:[%s182 + $0x208] sm:$0xff] %v313
                %v315 = vld [vmem:[%s181 + $0x420] sm:$0xff]
                %316 = vst [vmem:[%s182 + $0x210] sm:$0xff] %v315
                %v317 = vld [vmem:[%s181 + $0x428] sm:$0xff]
                %318 = vst [vmem:[%s182 + $0x218] sm:$0xff] %v317
                %v319 = vld [vmem:[%s181 + $0x440] sm:$0xff]
                %320 = vst [vmem:[%s182 + $0x220] sm:$0xff] %v319
                %v321 = vld [vmem:[%s181 + $0x448] sm:$0xff]
                %322 = vst [vmem:[%s182 + $0x228] sm:$0xff] %v321
                %v323 = vld [vmem:[%s181 + $0x460] sm:$0xff]
                %324 = vst [vmem:[%s182 + $0x230] sm:$0xff] %v323
                %v325 = vld [vmem:[%s181 + $0x468] sm:$0xff]
                %326 = vst [vmem:[%s182 + $0x238] sm:$0xff] %v325
                %v327 = vld [vmem:[%s181 + $0x480] sm:$0xff]
                %328 = vst [vmem:[%s182 + $0x240] sm:$0xff] %v327
                %v329 = vld [vmem:[%s181 + $0x488] sm:$0xff]
                %330 = vst [vmem:[%s182 + $0x248] sm:$0xff] %v329
                %v331 = vld [vmem:[%s181 + $0x4a0] sm:$0xff]
                %332 = vst [vmem:[%s182 + $0x250] sm:$0xff] %v331
                %v333 = vld [vmem:[%s181 + $0x4a8] sm:$0xff]
                %334 = vst [vmem:[%s182 + $0x258] sm:$0xff] %v333
                %v335 = vld [vmem:[%s181 + $0x4c0] sm:$0xff]
                %336 = vst [vmem:[%s182 + $0x260] sm:$0xff] %v335
                %v337 = vld [vmem:[%s181 + $0x4c8] sm:$0xff]
                %338 = vst [vmem:[%s182 + $0x268] sm:$0xff] %v337
                %v339 = vld [vmem:[%s181 + $0x4e0] sm:$0xff]
                %340 = vst [vmem:[%s182 + $0x270] sm:$0xff] %v339
                %v341 = vld [vmem:[%s181 + $0x4e8] sm:$0xff]
                %342 = vst [vmem:[%s182 + $0x278] sm:$0xff] %v341
                %v343 = vld [vmem:[%s181 + $0x500] sm:$0xff]
                %344 = vst [vmem:[%s182 + $0x280] sm:$0xff] %v343
                %v345 = vld [vmem:[%s181 + $0x508] sm:$0xff]
                %346 = vst [vmem:[%s182 + $0x288] sm:$0xff] %v345
                %v347 = vld [vmem:[%s181 + $0x520] sm:$0xff]
                %348 = vst [vmem:[%s182 + $0x290] sm:$0xff] %v347
                %v349 = vld [vmem:[%s181 + $0x528] sm:$0xff]
                %350 = vst [vmem:[%s182 + $0x298] sm:$0xff] %v349
                %v351 = vld [vmem:[%s181 + $0x540] sm:$0xff]
                %352 = vst [vmem:[%s182 + $0x2a0] sm:$0xff] %v351
                %v353 = vld [vmem:[%s181 + $0x548] sm:$0xff]
                %354 = vst [vmem:[%s182 + $0x2a8] sm:$0xff] %v353
                %v355 = vld [vmem:[%s181 + $0x560] sm:$0xff]
                %356 = vst [vmem:[%s182 + $0x2b0] sm:$0xff] %v355
                %v357 = vld [vmem:[%s181 + $0x568] sm:$0xff]
                %358 = vst [vmem:[%s182 + $0x2b8] sm:$0xff] %v357
                %v359 = vld [vmem:[%s181 + $0x580] sm:$0xff]
                %360 = vst [vmem:[%s182 + $0x2c0] sm:$0xff] %v359
                %v361 = vld [vmem:[%s181 + $0x588] sm:$0xff]
                %362 = vst [vmem:[%s182 + $0x2c8] sm:$0xff] %v361
                %v363 = vld [vmem:[%s181 + $0x5a0] sm:$0xff]
                %364 = vst [vmem:[%s182 + $0x2d0] sm:$0xff] %v363
                %v365 = vld [vmem:[%s181 + $0x5a8] sm:$0xff]
                %366 = vst [vmem:[%s182 + $0x2d8] sm:$0xff] %v365
                %v367 = vld [vmem:[%s181 + $0x5c0] sm:$0xff]
                %368 = vst [vmem:[%s182 + $0x2e0] sm:$0xff] %v367
                %v369 = vld [vmem:[%s181 + $0x5c8] sm:$0xff]
                %370 = vst [vmem:[%s182 + $0x2e8] sm:$0xff] %v369
                %v371 = vld [vmem:[%s181 + $0x5e0] sm:$0xff]
                %372 = vst [vmem:[%s182 + $0x2f0] sm:$0xff] %v371
                %v373 = vld [vmem:[%s181 + $0x5e8] sm:$0xff]
                %374 = vst [vmem:[%s182 + $0x2f8] sm:$0xff] %v373
                %v375 = vld [vmem:[%s181 + $0x600] sm:$0xff]
                %376 = vst [vmem:[%s182 + $0x300] sm:$0xff] %v375
                %v377 = vld [vmem:[%s181 + $0x608] sm:$0xff]
                %378 = vst [vmem:[%s182 + $0x308] sm:$0xff] %v377
                %v379 = vld [vmem:[%s181 + $0x620] sm:$0xff]
                %380 = vst [vmem:[%s182 + $0x310] sm:$0xff] %v379
                %v381 = vld [vmem:[%s181 + $0x628] sm:$0xff]
                %382 = vst [vmem:[%s182 + $0x318] sm:$0xff] %v381
                %v383 = vld [vmem:[%s181 + $0x640] sm:$0xff]
                %384 = vst [vmem:[%s182 + $0x320] sm:$0xff] %v383
                %v385 = vld [vmem:[%s181 + $0x648] sm:$0xff]
                %386 = vst [vmem:[%s182 + $0x328] sm:$0xff] %v385
                %v387 = vld [vmem:[%s181 + $0x660] sm:$0xff]
                %388 = vst [vmem:[%s182 + $0x330] sm:$0xff] %v387
                %v389 = vld [vmem:[%s181 + $0x668] sm:$0xff]
                %390 = vst [vmem:[%s182 + $0x338] sm:$0xff] %v389
                %v391 = vld [vmem:[%s181 + $0x680] sm:$0xff]
                %392 = vst [vmem:[%s182 + $0x340] sm:$0xff] %v391
                %v393 = vld [vmem:[%s181 + $0x688] sm:$0xff]
                %394 = vst [vmem:[%s182 + $0x348] sm:$0xff] %v393
                %v395 = vld [vmem:[%s181 + $0x6a0] sm:$0xff]
                %396 = vst [vmem:[%s182 + $0x350] sm:$0xff] %v395
                %v397 = vld [vmem:[%s181 + $0x6a8] sm:$0xff]
                %398 = vst [vmem:[%s182 + $0x358] sm:$0xff] %v397
                %v399 = vld [vmem:[%s181 + $0x6c0] sm:$0xff]
                %400 = vst [vmem:[%s182 + $0x360] sm:$0xff] %v399
                %v401 = vld [vmem:[%s181 + $0x6c8] sm:$0xff]
                %402 = vst [vmem:[%s182 + $0x368] sm:$0xff] %v401
                %v403 = vld [vmem:[%s181 + $0x6e0] sm:$0xff]
                %404 = vst [vmem:[%s182 + $0x370] sm:$0xff] %v403
                %v405 = vld [vmem:[%s181 + $0x6e8] sm:$0xff]
                %406 = vst [vmem:[%s182 + $0x378] sm:$0xff] %v405
                %v407 = vld [vmem:[%s181 + $0x700] sm:$0xff]
                %408 = vst [vmem:[%s182 + $0x380] sm:$0xff] %v407
                %v409 = vld [vmem:[%s181 + $0x708] sm:$0xff]
                %410 = vst [vmem:[%s182 + $0x388] sm:$0xff] %v409
                %v411 = vld [vmem:[%s181 + $0x720] sm:$0xff]
                %412 = vst [vmem:[%s182 + $0x390] sm:$0xff] %v411
                %v413 = vld [vmem:[%s181 + $0x728] sm:$0xff]
                %414 = vst [vmem:[%s182 + $0x398] sm:$0xff] %v413
                %v415 = vld [vmem:[%s181 + $0x740] sm:$0xff]
                %416 = vst [vmem:[%s182 + $0x3a0] sm:$0xff] %v415
                %v417 = vld [vmem:[%s181 + $0x748] sm:$0xff]
                %418 = vst [vmem:[%s182 + $0x3a8] sm:$0xff] %v417
                %v419 = vld [vmem:[%s181 + $0x760] sm:$0xff]
                %420 = vst [vmem:[%s182 + $0x3b0] sm:$0xff] %v419
                %v421 = vld [vmem:[%s181 + $0x768] sm:$0xff]
                %422 = vst [vmem:[%s182 + $0x3b8] sm:$0xff] %v421
                %v423 = vld [vmem:[%s181 + $0x780] sm:$0xff]
                %424 = vst [vmem:[%s182 + $0x3c0] sm:$0xff] %v423
                %v425 = vld [vmem:[%s181 + $0x788] sm:$0xff]
                %426 = vst [vmem:[%s182 + $0x3c8] sm:$0xff] %v425
                %v427 = vld [vmem:[%s181 + $0x7a0] sm:$0xff]
                %428 = vst [vmem:[%s182 + $0x3d0] sm:$0xff] %v427
                %v429 = vld [vmem:[%s181 + $0x7a8] sm:$0xff]
                %430 = vst [vmem:[%s182 + $0x3d8] sm:$0xff] %v429
                %v431 = vld [vmem:[%s181 + $0x7c0] sm:$0xff]
                %432 = vst [vmem:[%s182 + $0x3e0] sm:$0xff] %v431
                %v433 = vld [vmem:[%s181 + $0x7c8] sm:$0xff]
                %434 = vst [vmem:[%s182 + $0x3e8] sm:$0xff] %v433
                %v435 = vld [vmem:[%s181 + $0x7e0] sm:$0xff]
                %436 = vst [vmem:[%s182 + $0x3f0] sm:$0xff] %v435
                %v437 = vld [vmem:[%s181 + $0x7e8] sm:$0xff]
                %438 = vst [vmem:[%s182 + $0x3f8] sm:$0xff] %v437
              $region37: #{vae_forward.9} parent=31 // loop_footer
                %s180 = sadd.s32 1, %s176
              $region38: #{vae_forward.9} parent=31 // loop_footer_branch
                %175 = sbr.rel target = $region34
              $region39: #{vae_forward.9} parent=31 // loop_exit
                _
            $region32: #{vae_forward.9} parent=27 // pred_fallthru
              _
            // Predicated region
            $region40: #{vae_forward.9} parent=27 // pred_check
              _
            $region41: #{vae_forward.9} parent=27 // pred_check_branch
              %440 = sbr.rel target = $region43
            $region42: #{vae_forward.9} parent=27 // pred_region
              _
            $region43: #{vae_forward.9} parent=27 // pred_fallthru
              _
          $region28: #{vae_forward.9} parent=23 // pred_fallthru
            _
          %441 = vnop
        $region24: #{vae_forward.9} parent=19 // pred_fallthru
          _
        // Predicated region
        $region44: #{vae_forward.9} parent=19 // pred_check
          %p442 = pneg %p98
        $region45: #{vae_forward.9} parent=19 // pred_check_branch
          %444 = sbr.rel (%p442) target = $region47
        $region46: #{vae_forward.9} parent=19 // pred_region
          %s445 = smul.u32 4, %s19
          %p446 = scmp.lt.s32.totalorder %s445, 7
          %s447 = scalar_select %p446, %s445, 7
          %s448 = scalar_lea.vmem %s2, %s447
          %s449 = smul.u32 4, %s19
        $region47: #{vae_forward.9} parent=19 // pred_fallthru
          _
      $region20: #{vae_forward.9} parent=5 // pred_fallthru
        _
      %p450 = scmp.le.s32.totalorder 1, %s12
      %p451 = scmp.lt.s32.totalorder %s12, 3
      %p452 = pnand %p450, %p451
      %p453 = pneg %p452
      // Predicated region
      $region48: #{vae_forward.9} parent=5 // pred_check
        _
      $region49: #{vae_forward.9} parent=5 // pred_check_branch
        %455 = sbr.rel (%p452) target = $region51
      $region50: #{vae_forward.9} parent=5 // pred_region
        %s456 = ssub.s32 %s12, 1
        %s457 = sand.u32 %s65, 1
        %s458 = sand.u32 %s65, 1
        %s459 = smul.addr %s458, 1024
        %s460 = scalar_lea.vmem [#allocation3], %s459
        // Predicated region
        $region52: #{vae_forward.9} parent=50 // pred_check
          %p461 = pneg %p78
        $region53: #{vae_forward.9} parent=50 // pred_check_branch
          %463 = sbr.rel (%p461) target = $region55
        $region54: #{vae_forward.9} parent=50 // pred_region
          _
        $region55: #{vae_forward.9} parent=50 // pred_fallthru
          _
        %s464 = smul.u32 4, %s22
        %p465 = scmp.lt.s32.totalorder %s464, 3
        %s466 = scalar_select %p465, %s464, 3
        %s467 = smul.addr %s466, 4
        %s468 = scalar_lea.vmem %s0, %s467
        %p469 = pneg %p50
        %p470 = pneg %p47
        %s471 = sand.u32 %s65, 1
        %s472 = sand.u32 %s65, 1
        %s473 = smul.addr %s472, 1024
        %s474 = scalar_lea.vmem [#allocation3], %s473
        %p475 = pneg %p78
        %p476 = pneg %p75
        %s477 = smul.u32 4, %s21
        %p478 = scmp.lt.s32.totalorder %s477, 7
        %s479 = scalar_select %p478, %s477, 7
        %s480 = scalar_lea.vmem %s2, %s479
        %p481 = pneg %p104
        %p482 = pneg %p101
        %p483 = pneg %p130
        %p484 = pneg %p127
        %s485 = sand.u32 %s117, 1
        %s486 = scalar_lea.sflag [#allocation5], %s485
        %s487 = sand.u32 %s117, 1
        %s488 = smul.addr %s487, 32
        %s489 = scalar_lea.vmem [#allocation4], %s488
        %s490 = smul.u32 4, %s22
        %p491 = scmp.lt.s32.totalorder %s490, 3
        %s492 = scalar_select %p491, %s490, 3
        %s493 = smul.addr %s492, 4
        %s494 = scalar_lea.vmem %s0, %s493
        %s495 = smul.u32 4, %s22
        %s496 = smul.u32 64, %s22
        %s497 = smul.u32 4, %s21
        %s498 = smul.u32 4, %s21
        %p499 = scmp.lt.s32.totalorder %s498, 7
        %s500 = scalar_select %p499, %s498, 7
        %s501 = scalar_lea.vmem %s2, %s500
        %s502 = smul.u32 4, %s21
        %s503 = smul.u32 4, %s21
        %p504 = scmp.eq.s32.totalorder %s22, 0
        // Predicated region
        $region56: #{vae_forward.9} parent=50 // pred_check
          %p505 = pneg %p504
        $region57: #{vae_forward.9} parent=50 // pred_check_branch
          %507 = sbr.rel (%p505) target = $region59
        $region58: #{vae_forward.9} parent=50 // pred_region
          %508 = vst [vmem:[#allocation2] sm:$0xff] 0.0
          %509 = vst [vmem:[#allocation2 + $0x8] sm:$0xff] 0.0
          %510 = vst [vmem:[#allocation2 + $0x10] sm:$0xff] 0.0
          %511 = vst [vmem:[#allocation2 + $0x18] sm:$0xff] 0.0
        $region59: #{vae_forward.9} parent=50 // pred_fallthru
          _
        %v512 = vld [vmem:[#allocation2] sm:$0xff]
        %v513 = vld [vmem:[#allocation2 + $0x8] sm:$0xff]
        %v514 = vld [vmem:[#allocation2 + $0x10] sm:$0xff]
        %v515 = vld [vmem:[#allocation2 + $0x18] sm:$0xff]
        %v516 = vld [vmem:[%s494] sm:$0xff]
        %v517 = vld [vmem:[%s494 + $0x8] sm:$0xff]
        %v518 = vld [vmem:[%s460] sm:$0xff]
        %v519 = vld [vmem:[%s460 + $0x8] sm:$0xff]
        %v520 = vld [vmem:[%s460 + $0x10] sm:$0xff]
        %v521 = vld [vmem:[%s460 + $0x18] sm:$0xff]
        %v522 = vld [vmem:[%s460 + $0x20] sm:$0xff]
        %v523 = vld [vmem:[%s460 + $0x28] sm:$0xff]
        %v524 = vld [vmem:[%s460 + $0x30] sm:$0xff]
        %v525 = vld [vmem:[%s460 + $0x38] sm:$0xff]
        %v526 = vld [vmem:[%s460 + $0x40] sm:$0xff]
        %v527 = vld [vmem:[%s460 + $0x48] sm:$0xff]
        %v528 = vld [vmem:[%s460 + $0x50] sm:$0xff]
        %v529 = vld [vmem:[%s460 + $0x58] sm:$0xff]
        %v530 = vld [vmem:[%s460 + $0x60] sm:$0xff]
        %v531 = vld [vmem:[%s460 + $0x68] sm:$0xff]
        %v532 = vld [vmem:[%s460 + $0x70] sm:$0xff]
        %v533 = vld [vmem:[%s460 + $0x78] sm:$0xff]
        %v534 = vld [vmem:[%s460 + $0x80] sm:$0xff]
        %v535 = vld [vmem:[%s460 + $0x88] sm:$0xff]
        %v536 = vld [vmem:[%s460 + $0x90] sm:$0xff]
        %v537 = vld [vmem:[%s460 + $0x98] sm:$0xff]
        %v538 = vld [vmem:[%s460 + $0xa0] sm:$0xff]
        %v539 = vld [vmem:[%s460 + $0xa8] sm:$0xff]
        %v540 = vld [vmem:[%s460 + $0xb0] sm:$0xff]
        %v541 = vld [vmem:[%s460 + $0xb8] sm:$0xff]
        %v542 = vld [vmem:[%s460 + $0xc0] sm:$0xff]
        %v543 = vld [vmem:[%s460 + $0xc8] sm:$0xff]
        %v544 = vld [vmem:[%s460 + $0xd0] sm:$0xff]
        %v545 = vld [vmem:[%s460 + $0xd8] sm:$0xff]
        %v546 = vld [vmem:[%s460 + $0xe0] sm:$0xff]
        %v547 = vld [vmem:[%s460 + $0xe8] sm:$0xff]
        %v548 = vld [vmem:[%s460 + $0xf0] sm:$0xff]
        %v549 = vld [vmem:[%s460 + $0xf8] sm:$0xff]
        %v550 = vld [vmem:[%s460 + $0x100] sm:$0xff]
        %v551 = vld [vmem:[%s460 + $0x108] sm:$0xff]
        %v552 = vld [vmem:[%s460 + $0x110] sm:$0xff]
        %v553 = vld [vmem:[%s460 + $0x118] sm:$0xff]
        %v554 = vld [vmem:[%s460 + $0x120] sm:$0xff]
        %v555 = vld [vmem:[%s460 + $0x128] sm:$0xff]
        %v556 = vld [vmem:[%s460 + $0x130] sm:$0xff]
        %v557 = vld [vmem:[%s460 + $0x138] sm:$0xff]
        %v558 = vld [vmem:[%s460 + $0x140] sm:$0xff]
        %v559 = vld [vmem:[%s460 + $0x148] sm:$0xff]
        %v560 = vld [vmem:[%s460 + $0x150] sm:$0xff]
        %v561 = vld [vmem:[%s460 + $0x158] sm:$0xff]
        %v562 = vld [vmem:[%s460 + $0x160] sm:$0xff]
        %v563 = vld [vmem:[%s460 + $0x168] sm:$0xff]
        %v564 = vld [vmem:[%s460 + $0x170] sm:$0xff]
        %v565 = vld [vmem:[%s460 + $0x178] sm:$0xff]
        %v566 = vld [vmem:[%s460 + $0x180] sm:$0xff]
        %v567 = vld [vmem:[%s460 + $0x188] sm:$0xff]
        %v568 = vld [vmem:[%s460 + $0x190] sm:$0xff]
        %v569 = vld [vmem:[%s460 + $0x198] sm:$0xff]
        %v570 = vld [vmem:[%s460 + $0x1a0] sm:$0xff]
        %v571 = vld [vmem:[%s460 + $0x1a8] sm:$0xff]
        %v572 = vld [vmem:[%s460 + $0x1b0] sm:$0xff]
        %v573 = vld [vmem:[%s460 + $0x1b8] sm:$0xff]
        %v574 = vld [vmem:[%s460 + $0x1c0] sm:$0xff]
        %v575 = vld [vmem:[%s460 + $0x1c8] sm:$0xff]
        %v576 = vld [vmem:[%s460 + $0x1d0] sm:$0xff]
        %v577 = vld [vmem:[%s460 + $0x1d8] sm:$0xff]
        %v578 = vld [vmem:[%s460 + $0x1e0] sm:$0xff]
        %v579 = vld [vmem:[%s460 + $0x1e8] sm:$0xff]
        %v580 = vld [vmem:[%s460 + $0x1f0] sm:$0xff]
        %v581 = vld [vmem:[%s460 + $0x1f8] sm:$0xff]
        %v582 = vld [vmem:[%s460 + $0x200] sm:$0xff]
        %v583 = vld [vmem:[%s460 + $0x208] sm:$0xff]
        %v584 = vld [vmem:[%s460 + $0x210] sm:$0xff]
        %v585 = vld [vmem:[%s460 + $0x218] sm:$0xff]
        %v586 = vld [vmem:[%s460 + $0x220] sm:$0xff]
        %v587 = vld [vmem:[%s460 + $0x228] sm:$0xff]
        %v588 = vld [vmem:[%s460 + $0x230] sm:$0xff]
        %v589 = vld [vmem:[%s460 + $0x238] sm:$0xff]
        %v590 = vld [vmem:[%s460 + $0x240] sm:$0xff]
        %v591 = vld [vmem:[%s460 + $0x248] sm:$0xff]
        %v592 = vld [vmem:[%s460 + $0x250] sm:$0xff]
        %v593 = vld [vmem:[%s460 + $0x258] sm:$0xff]
        %v594 = vld [vmem:[%s460 + $0x260] sm:$0xff]
        %v595 = vld [vmem:[%s460 + $0x268] sm:$0xff]
        %v596 = vld [vmem:[%s460 + $0x270] sm:$0xff]
        %v597 = vld [vmem:[%s460 + $0x278] sm:$0xff]
        %v598 = vld [vmem:[%s460 + $0x280] sm:$0xff]
        %v599 = vld [vmem:[%s460 + $0x288] sm:$0xff]
        %v600 = vld [vmem:[%s460 + $0x290] sm:$0xff]
        %v601 = vld [vmem:[%s460 + $0x298] sm:$0xff]
        %v602 = vld [vmem:[%s460 + $0x2a0] sm:$0xff]
        %v603 = vld [vmem:[%s460 + $0x2a8] sm:$0xff]
        %v604 = vld [vmem:[%s460 + $0x2b0] sm:$0xff]
        %v605 = vld [vmem:[%s460 + $0x2b8] sm:$0xff]
        %v606 = vld [vmem:[%s460 + $0x2c0] sm:$0xff]
        %v607 = vld [vmem:[%s460 + $0x2c8] sm:$0xff]
        %v608 = vld [vmem:[%s460 + $0x2d0] sm:$0xff]
        %v609 = vld [vmem:[%s460 + $0x2d8] sm:$0xff]
        %v610 = vld [vmem:[%s460 + $0x2e0] sm:$0xff]
        %v611 = vld [vmem:[%s460 + $0x2e8] sm:$0xff]
        %v612 = vld [vmem:[%s460 + $0x2f0] sm:$0xff]
        %v613 = vld [vmem:[%s460 + $0x2f8] sm:$0xff]
        %v614 = vld [vmem:[%s460 + $0x300] sm:$0xff]
        %v615 = vld [vmem:[%s460 + $0x308] sm:$0xff]
        %v616 = vld [vmem:[%s460 + $0x310] sm:$0xff]
        %v617 = vld [vmem:[%s460 + $0x318] sm:$0xff]
        %v618 = vld [vmem:[%s460 + $0x320] sm:$0xff]
        %v619 = vld [vmem:[%s460 + $0x328] sm:$0xff]
        %v620 = vld [vmem:[%s460 + $0x330] sm:$0xff]
        %v621 = vld [vmem:[%s460 + $0x338] sm:$0xff]
        %v622 = vld [vmem:[%s460 + $0x340] sm:$0xff]
        %v623 = vld [vmem:[%s460 + $0x348] sm:$0xff]
        %v624 = vld [vmem:[%s460 + $0x350] sm:$0xff]
        %v625 = vld [vmem:[%s460 + $0x358] sm:$0xff]
        %v626 = vld [vmem:[%s460 + $0x360] sm:$0xff]
        %v627 = vld [vmem:[%s460 + $0x368] sm:$0xff]
        %v628 = vld [vmem:[%s460 + $0x370] sm:$0xff]
        %v629 = vld [vmem:[%s460 + $0x378] sm:$0xff]
        %v630 = vld [vmem:[%s460 + $0x380] sm:$0xff]
        %v631 = vld [vmem:[%s460 + $0x388] sm:$0xff]
        %v632 = vld [vmem:[%s460 + $0x390] sm:$0xff]
        %v633 = vld [vmem:[%s460 + $0x398] sm:$0xff]
        %v634 = vld [vmem:[%s460 + $0x3a0] sm:$0xff]
        %v635 = vld [vmem:[%s460 + $0x3a8] sm:$0xff]
        %v636 = vld [vmem:[%s460 + $0x3b0] sm:$0xff]
        %v637 = vld [vmem:[%s460 + $0x3b8] sm:$0xff]
        %v638 = vld [vmem:[%s460 + $0x3c0] sm:$0xff]
        %v639 = vld [vmem:[%s460 + $0x3c8] sm:$0xff]
        %v640 = vld [vmem:[%s460 + $0x3d0] sm:$0xff]
        %v641 = vld [vmem:[%s460 + $0x3d8] sm:$0xff]
        %v642 = vld [vmem:[%s460 + $0x3e0] sm:$0xff]
        %v643 = vld [vmem:[%s460 + $0x3e8] sm:$0xff]
        %v644 = vld [vmem:[%s460 + $0x3f0] sm:$0xff]
        %v645 = vld [vmem:[%s460 + $0x3f8] sm:$0xff]
        %v648 = vunpack.c.l.b16 %v516
        %v649 = vunpack.c.h.b16 %v516
        %v650 = vunpack.c.l.b16 %v517
        %v651 = vunpack.c.h.b16 %v517
        %v652 = vpack.c.b16 %v648, %v648
        %v653 = vpack.c.b16 %v649, %v649
        %v654 = vpack.c.b16 %v650, %v650
        %v655 = vpack.c.b16 %v651, %v651
        %v788 = vunpack.c.l.b16 %v518
        %v789 = vunpack.c.h.b16 %v518
        %v790 = vunpack.c.l.b16 %v519
        %v791 = vunpack.c.h.b16 %v519
        %v792 = vunpack.c.l.b16 %v520
        %v793 = vunpack.c.h.b16 %v520
        %v794 = vunpack.c.l.b16 %v521
        %v795 = vunpack.c.h.b16 %v521
        %v796 = vunpack.c.l.b16 %v522
        %v797 = vunpack.c.h.b16 %v522
        %v798 = vunpack.c.l.b16 %v523
        %v799 = vunpack.c.h.b16 %v523
        %v800 = vunpack.c.l.b16 %v524
        %v801 = vunpack.c.h.b16 %v524
        %v802 = vunpack.c.l.b16 %v525
        %v803 = vunpack.c.h.b16 %v525
        %v804 = vunpack.c.l.b16 %v526
        %v805 = vunpack.c.h.b16 %v526
        %v806 = vunpack.c.l.b16 %v527
        %v807 = vunpack.c.h.b16 %v527
        %v808 = vunpack.c.l.b16 %v528
        %v809 = vunpack.c.h.b16 %v528
        %v810 = vunpack.c.l.b16 %v529
        %v811 = vunpack.c.h.b16 %v529
        %v812 = vunpack.c.l.b16 %v530
        %v813 = vunpack.c.h.b16 %v530
        %v814 = vunpack.c.l.b16 %v531
        %v815 = vunpack.c.h.b16 %v531
        %v816 = vunpack.c.l.b16 %v532
        %v817 = vunpack.c.h.b16 %v532
        %v818 = vunpack.c.l.b16 %v533
        %v819 = vunpack.c.h.b16 %v533
        %v820 = vunpack.c.l.b16 %v534
        %v821 = vunpack.c.h.b16 %v534
        %v822 = vunpack.c.l.b16 %v535
        %v823 = vunpack.c.h.b16 %v535
        %v824 = vunpack.c.l.b16 %v536
        %v825 = vunpack.c.h.b16 %v536
        %v826 = vunpack.c.l.b16 %v537
        %v827 = vunpack.c.h.b16 %v537
        %v828 = vunpack.c.l.b16 %v538
        %v829 = vunpack.c.h.b16 %v538
        %v830 = vunpack.c.l.b16 %v539
        %v831 = vunpack.c.h.b16 %v539
        %v832 = vunpack.c.l.b16 %v540
        %v833 = vunpack.c.h.b16 %v540
        %v834 = vunpack.c.l.b16 %v541
        %v835 = vunpack.c.h.b16 %v541
        %v836 = vunpack.c.l.b16 %v542
        %v837 = vunpack.c.h.b16 %v542
        %v838 = vunpack.c.l.b16 %v543
        %v839 = vunpack.c.h.b16 %v543
        %v840 = vunpack.c.l.b16 %v544
        %v841 = vunpack.c.h.b16 %v544
        %v842 = vunpack.c.l.b16 %v545
        %v843 = vunpack.c.h.b16 %v545
        %v844 = vunpack.c.l.b16 %v546
        %v845 = vunpack.c.h.b16 %v546
        %v846 = vunpack.c.l.b16 %v547
        %v847 = vunpack.c.h.b16 %v547
        %v848 = vunpack.c.l.b16 %v548
        %v849 = vunpack.c.h.b16 %v548
        %v850 = vunpack.c.l.b16 %v549
        %v851 = vunpack.c.h.b16 %v549
        %v852 = vunpack.c.l.b16 %v550
        %v853 = vunpack.c.h.b16 %v550
        %v854 = vunpack.c.l.b16 %v551
        %v855 = vunpack.c.h.b16 %v551
        %v856 = vunpack.c.l.b16 %v552
        %v857 = vunpack.c.h.b16 %v552
        %v858 = vunpack.c.l.b16 %v553
        %v859 = vunpack.c.h.b16 %v553
        %v860 = vunpack.c.l.b16 %v554
        %v861 = vunpack.c.h.b16 %v554
        %v862 = vunpack.c.l.b16 %v555
        %v863 = vunpack.c.h.b16 %v555
        %v864 = vunpack.c.l.b16 %v556
        %v865 = vunpack.c.h.b16 %v556
        %v866 = vunpack.c.l.b16 %v557
        %v867 = vunpack.c.h.b16 %v557
        %v868 = vunpack.c.l.b16 %v558
        %v869 = vunpack.c.h.b16 %v558
        %v870 = vunpack.c.l.b16 %v559
        %v871 = vunpack.c.h.b16 %v559
        %v872 = vunpack.c.l.b16 %v560
        %v873 = vunpack.c.h.b16 %v560
        %v874 = vunpack.c.l.b16 %v561
        %v875 = vunpack.c.h.b16 %v561
        %v876 = vunpack.c.l.b16 %v562
        %v877 = vunpack.c.h.b16 %v562
        %v878 = vunpack.c.l.b16 %v563
        %v879 = vunpack.c.h.b16 %v563
        %v880 = vunpack.c.l.b16 %v564
        %v881 = vunpack.c.h.b16 %v564
        %v882 = vunpack.c.l.b16 %v565
        %v883 = vunpack.c.h.b16 %v565
        %v884 = vunpack.c.l.b16 %v566
        %v885 = vunpack.c.h.b16 %v566
        %v886 = vunpack.c.l.b16 %v567
        %v887 = vunpack.c.h.b16 %v567
        %v888 = vunpack.c.l.b16 %v568
        %v889 = vunpack.c.h.b16 %v568
        %v890 = vunpack.c.l.b16 %v569
        %v891 = vunpack.c.h.b16 %v569
        %v892 = vunpack.c.l.b16 %v570
        %v893 = vunpack.c.h.b16 %v570
        %v894 = vunpack.c.l.b16 %v571
        %v895 = vunpack.c.h.b16 %v571
        %v896 = vunpack.c.l.b16 %v572
        %v897 = vunpack.c.h.b16 %v572
        %v898 = vunpack.c.l.b16 %v573
        %v899 = vunpack.c.h.b16 %v573
        %v900 = vunpack.c.l.b16 %v574
        %v901 = vunpack.c.h.b16 %v574
        %v902 = vunpack.c.l.b16 %v575
        %v903 = vunpack.c.h.b16 %v575
        %v904 = vunpack.c.l.b16 %v576
        %v905 = vunpack.c.h.b16 %v576
        %v906 = vunpack.c.l.b16 %v577
        %v907 = vunpack.c.h.b16 %v577
        %v908 = vunpack.c.l.b16 %v578
        %v909 = vunpack.c.h.b16 %v578
        %v910 = vunpack.c.l.b16 %v579
        %v911 = vunpack.c.h.b16 %v579
        %v912 = vunpack.c.l.b16 %v580
        %v913 = vunpack.c.h.b16 %v580
        %v914 = vunpack.c.l.b16 %v581
        %v915 = vunpack.c.h.b16 %v581
        %v916 = vunpack.c.l.b16 %v582
        %v917 = vunpack.c.h.b16 %v582
        %v918 = vunpack.c.l.b16 %v583
        %v919 = vunpack.c.h.b16 %v583
        %v920 = vunpack.c.l.b16 %v584
        %v921 = vunpack.c.h.b16 %v584
        %v922 = vunpack.c.l.b16 %v585
        %v923 = vunpack.c.h.b16 %v585
        %v924 = vunpack.c.l.b16 %v586
        %v925 = vunpack.c.h.b16 %v586
        %v926 = vunpack.c.l.b16 %v587
        %v927 = vunpack.c.h.b16 %v587
        %v928 = vunpack.c.l.b16 %v588
        %v929 = vunpack.c.h.b16 %v588
        %v930 = vunpack.c.l.b16 %v589
        %v931 = vunpack.c.h.b16 %v589
        %v932 = vunpack.c.l.b16 %v590
        %v933 = vunpack.c.h.b16 %v590
        %v934 = vunpack.c.l.b16 %v591
        %v935 = vunpack.c.h.b16 %v591
        %v936 = vunpack.c.l.b16 %v592
        %v937 = vunpack.c.h.b16 %v592
        %v938 = vunpack.c.l.b16 %v593
        %v939 = vunpack.c.h.b16 %v593
        %v940 = vunpack.c.l.b16 %v594
        %v941 = vunpack.c.h.b16 %v594
        %v942 = vunpack.c.l.b16 %v595
        %v943 = vunpack.c.h.b16 %v595
        %v944 = vunpack.c.l.b16 %v596
        %v945 = vunpack.c.h.b16 %v596
        %v946 = vunpack.c.l.b16 %v597
        %v947 = vunpack.c.h.b16 %v597
        %v948 = vunpack.c.l.b16 %v598
        %v949 = vunpack.c.h.b16 %v598
        %v950 = vunpack.c.l.b16 %v599
        %v951 = vunpack.c.h.b16 %v599
        %v952 = vunpack.c.l.b16 %v600
        %v953 = vunpack.c.h.b16 %v600
        %v954 = vunpack.c.l.b16 %v601
        %v955 = vunpack.c.h.b16 %v601
        %v956 = vunpack.c.l.b16 %v602
        %v957 = vunpack.c.h.b16 %v602
        %v958 = vunpack.c.l.b16 %v603
        %v959 = vunpack.c.h.b16 %v603
        %v960 = vunpack.c.l.b16 %v604
        %v961 = vunpack.c.h.b16 %v604
        %v962 = vunpack.c.l.b16 %v605
        %v963 = vunpack.c.h.b16 %v605
        %v964 = vunpack.c.l.b16 %v606
        %v965 = vunpack.c.h.b16 %v606
        %v966 = vunpack.c.l.b16 %v607
        %v967 = vunpack.c.h.b16 %v607
        %v968 = vunpack.c.l.b16 %v608
        %v969 = vunpack.c.h.b16 %v608
        %v970 = vunpack.c.l.b16 %v609
        %v971 = vunpack.c.h.b16 %v609
        %v972 = vunpack.c.l.b16 %v610
        %v973 = vunpack.c.h.b16 %v610
        %v974 = vunpack.c.l.b16 %v611
        %v975 = vunpack.c.h.b16 %v611
        %v976 = vunpack.c.l.b16 %v612
        %v977 = vunpack.c.h.b16 %v612
        %v978 = vunpack.c.l.b16 %v613
        %v979 = vunpack.c.h.b16 %v613
        %v980 = vunpack.c.l.b16 %v614
        %v981 = vunpack.c.h.b16 %v614
        %v982 = vunpack.c.l.b16 %v615
        %v983 = vunpack.c.h.b16 %v615
        %v984 = vunpack.c.l.b16 %v616
        %v985 = vunpack.c.h.b16 %v616
        %v986 = vunpack.c.l.b16 %v617
        %v987 = vunpack.c.h.b16 %v617
        %v988 = vunpack.c.l.b16 %v618
        %v989 = vunpack.c.h.b16 %v618
        %v990 = vunpack.c.l.b16 %v619
        %v991 = vunpack.c.h.b16 %v619
        %v992 = vunpack.c.l.b16 %v620
        %v993 = vunpack.c.h.b16 %v620
        %v994 = vunpack.c.l.b16 %v621
        %v995 = vunpack.c.h.b16 %v621
        %v996 = vunpack.c.l.b16 %v622
        %v997 = vunpack.c.h.b16 %v622
        %v998 = vunpack.c.l.b16 %v623
        %v999 = vunpack.c.h.b16 %v623
        %v1000 = vunpack.c.l.b16 %v624
        %v1001 = vunpack.c.h.b16 %v624
        %v1002 = vunpack.c.l.b16 %v625
        %v1003 = vunpack.c.h.b16 %v625
        %v1004 = vunpack.c.l.b16 %v626
        %v1005 = vunpack.c.h.b16 %v626
        %v1006 = vunpack.c.l.b16 %v627
        %v1007 = vunpack.c.h.b16 %v627
        %v1008 = vunpack.c.l.b16 %v628
        %v1009 = vunpack.c.h.b16 %v628
        %v1010 = vunpack.c.l.b16 %v629
        %v1011 = vunpack.c.h.b16 %v629
        %v1012 = vunpack.c.l.b16 %v630
        %v1013 = vunpack.c.h.b16 %v630
        %v1014 = vunpack.c.l.b16 %v631
        %v1015 = vunpack.c.h.b16 %v631
        %v1016 = vunpack.c.l.b16 %v632
        %v1017 = vunpack.c.h.b16 %v632
        %v1018 = vunpack.c.l.b16 %v633
        %v1019 = vunpack.c.h.b16 %v633
        %v1020 = vunpack.c.l.b16 %v634
        %v1021 = vunpack.c.h.b16 %v634
        %v1022 = vunpack.c.l.b16 %v635
        %v1023 = vunpack.c.h.b16 %v635
        %v1024 = vunpack.c.l.b16 %v636
        %v1025 = vunpack.c.h.b16 %v636
        %v1026 = vunpack.c.l.b16 %v637
        %v1027 = vunpack.c.h.b16 %v637
        %v1028 = vunpack.c.l.b16 %v638
        %v1029 = vunpack.c.h.b16 %v638
        %v1030 = vunpack.c.l.b16 %v639
        %v1031 = vunpack.c.h.b16 %v639
        %v1032 = vunpack.c.l.b16 %v640
        %v1033 = vunpack.c.h.b16 %v640
        %v1034 = vunpack.c.l.b16 %v641
        %v1035 = vunpack.c.h.b16 %v641
        %v1036 = vunpack.c.l.b16 %v642
        %v1037 = vunpack.c.h.b16 %v642
        %v1038 = vunpack.c.l.b16 %v643
        %v1039 = vunpack.c.h.b16 %v643
        %v1040 = vunpack.c.l.b16 %v644
        %v1041 = vunpack.c.h.b16 %v644
        %v1042 = vunpack.c.l.b16 %v645
        %v1043 = vunpack.c.h.b16 %v645
        %v1044 = vpack.c.b16 %v792, %v788
        %v1045 = vpack.c.b16 %v793, %v789
        %v1046 = vpack.c.b16 %v794, %v790
        %v1047 = vpack.c.b16 %v795, %v791
        %v1048 = vpack.c.b16 %v800, %v796
        %v1049 = vpack.c.b16 %v801, %v797
        %v1050 = vpack.c.b16 %v802, %v798
        %v1051 = vpack.c.b16 %v803, %v799
        %v1052 = vpack.c.b16 %v808, %v804
        %v1053 = vpack.c.b16 %v809, %v805
        %v1054 = vpack.c.b16 %v810, %v806
        %v1055 = vpack.c.b16 %v811, %v807
        %v1056 = vpack.c.b16 %v816, %v812
        %v1057 = vpack.c.b16 %v817, %v813
        %v1058 = vpack.c.b16 %v818, %v814
        %v1059 = vpack.c.b16 %v819, %v815
        %v1060 = vpack.c.b16 %v824, %v820
        %v1061 = vpack.c.b16 %v825, %v821
        %v1062 = vpack.c.b16 %v826, %v822
        %v1063 = vpack.c.b16 %v827, %v823
        %v1064 = vpack.c.b16 %v832, %v828
        %v1065 = vpack.c.b16 %v833, %v829
        %v1066 = vpack.c.b16 %v834, %v830
        %v1067 = vpack.c.b16 %v835, %v831
        %v1068 = vpack.c.b16 %v840, %v836
        %v1069 = vpack.c.b16 %v841, %v837
        %v1070 = vpack.c.b16 %v842, %v838
        %v1071 = vpack.c.b16 %v843, %v839
        %v1072 = vpack.c.b16 %v848, %v844
        %v1073 = vpack.c.b16 %v849, %v845
        %v1074 = vpack.c.b16 %v850, %v846
        %v1075 = vpack.c.b16 %v851, %v847
        %v1076 = vpack.c.b16 %v856, %v852
        %v1077 = vpack.c.b16 %v857, %v853
        %v1078 = vpack.c.b16 %v858, %v854
        %v1079 = vpack.c.b16 %v859, %v855
        %v1080 = vpack.c.b16 %v864, %v860
        %v1081 = vpack.c.b16 %v865, %v861
        %v1082 = vpack.c.b16 %v866, %v862
        %v1083 = vpack.c.b16 %v867, %v863
        %v1084 = vpack.c.b16 %v872, %v868
        %v1085 = vpack.c.b16 %v873, %v869
        %v1086 = vpack.c.b16 %v874, %v870
        %v1087 = vpack.c.b16 %v875, %v871
        %v1088 = vpack.c.b16 %v880, %v876
        %v1089 = vpack.c.b16 %v881, %v877
        %v1090 = vpack.c.b16 %v882, %v878
        %v1091 = vpack.c.b16 %v883, %v879
        %v1092 = vpack.c.b16 %v888, %v884
        %v1093 = vpack.c.b16 %v889, %v885
        %v1094 = vpack.c.b16 %v890, %v886
        %v1095 = vpack.c.b16 %v891, %v887
        %v1096 = vpack.c.b16 %v896, %v892
        %v1097 = vpack.c.b16 %v897, %v893
        %v1098 = vpack.c.b16 %v898, %v894
        %v1099 = vpack.c.b16 %v899, %v895
        %v1100 = vpack.c.b16 %v904, %v900
        %v1101 = vpack.c.b16 %v905, %v901
        %v1102 = vpack.c.b16 %v906, %v902
        %v1103 = vpack.c.b16 %v907, %v903
        %v1104 = vpack.c.b16 %v912, %v908
        %v1105 = vpack.c.b16 %v913, %v909
        %v1106 = vpack.c.b16 %v914, %v910
        %v1107 = vpack.c.b16 %v915, %v911
        %v1108 = vpack.c.b16 %v920, %v916
        %v1109 = vpack.c.b16 %v921, %v917
        %v1110 = vpack.c.b16 %v922, %v918
        %v1111 = vpack.c.b16 %v923, %v919
        %v1112 = vpack.c.b16 %v928, %v924
        %v1113 = vpack.c.b16 %v929, %v925
        %v1114 = vpack.c.b16 %v930, %v926
        %v1115 = vpack.c.b16 %v931, %v927
        %v1116 = vpack.c.b16 %v936, %v932
        %v1117 = vpack.c.b16 %v937, %v933
        %v1118 = vpack.c.b16 %v938, %v934
        %v1119 = vpack.c.b16 %v939, %v935
        %v1120 = vpack.c.b16 %v944, %v940
        %v1121 = vpack.c.b16 %v945, %v941
        %v1122 = vpack.c.b16 %v946, %v942
        %v1123 = vpack.c.b16 %v947, %v943
        %v1124 = vpack.c.b16 %v952, %v948
        %v1125 = vpack.c.b16 %v953, %v949
        %v1126 = vpack.c.b16 %v954, %v950
        %v1127 = vpack.c.b16 %v955, %v951
        %v1128 = vpack.c.b16 %v960, %v956
        %v1129 = vpack.c.b16 %v961, %v957
        %v1130 = vpack.c.b16 %v962, %v958
        %v1131 = vpack.c.b16 %v963, %v959
        %v1132 = vpack.c.b16 %v968, %v964
        %v1133 = vpack.c.b16 %v969, %v965
        %v1134 = vpack.c.b16 %v970, %v966
        %v1135 = vpack.c.b16 %v971, %v967
        %v1136 = vpack.c.b16 %v976, %v972
        %v1137 = vpack.c.b16 %v977, %v973
        %v1138 = vpack.c.b16 %v978, %v974
        %v1139 = vpack.c.b16 %v979, %v975
        %v1140 = vpack.c.b16 %v984, %v980
        %v1141 = vpack.c.b16 %v985, %v981
        %v1142 = vpack.c.b16 %v986, %v982
        %v1143 = vpack.c.b16 %v987, %v983
        %v1144 = vpack.c.b16 %v992, %v988
        %v1145 = vpack.c.b16 %v993, %v989
        %v1146 = vpack.c.b16 %v994, %v990
        %v1147 = vpack.c.b16 %v995, %v991
        %v1148 = vpack.c.b16 %v1000, %v996
        %v1149 = vpack.c.b16 %v1001, %v997
        %v1150 = vpack.c.b16 %v1002, %v998
        %v1151 = vpack.c.b16 %v1003, %v999
        %v1152 = vpack.c.b16 %v1008, %v1004
        %v1153 = vpack.c.b16 %v1009, %v1005
        %v1154 = vpack.c.b16 %v1010, %v1006
        %v1155 = vpack.c.b16 %v1011, %v1007
        %v1156 = vpack.c.b16 %v1016, %v1012
        %v1157 = vpack.c.b16 %v1017, %v1013
        %v1158 = vpack.c.b16 %v1018, %v1014
        %v1159 = vpack.c.b16 %v1019, %v1015
        %v1160 = vpack.c.b16 %v1024, %v1020
        %v1161 = vpack.c.b16 %v1025, %v1021
        %v1162 = vpack.c.b16 %v1026, %v1022
        %v1163 = vpack.c.b16 %v1027, %v1023
        %v1164 = vpack.c.b16 %v1032, %v1028
        %v1165 = vpack.c.b16 %v1033, %v1029
        %v1166 = vpack.c.b16 %v1034, %v1030
        %v1167 = vpack.c.b16 %v1035, %v1031
        %v1168 = vpack.c.b16 %v1040, %v1036
        %v1169 = vpack.c.b16 %v1041, %v1037
        %v1170 = vpack.c.b16 %v1042, %v1038
        %v1171 = vpack.c.b16 %v1043, %v1039
        %1300 = vmatprep.subr.bf16.mxu0 %v1045
        %1301 = vmatpush1.bf16.msra.mxu0 %v1044
        %1302 = vmatprep.subr.bf16.mxu0 %v1049
        %1303 = vmatpush1.bf16.msra.mxu0 %v1048
        %1304 = vmatprep.subr.bf16.mxu0 %v1053
        %1305 = vmatpush1.bf16.msra.mxu0 %v1052
        %1306 = vmatprep.subr.bf16.mxu0 %v1057
        %1307 = vmatpush1.bf16.msra.mxu0 %v1056
        %1308 = vmatprep.subr.bf16.mxu0 %v1061
        %1309 = vmatpush1.bf16.msra.mxu0 %v1060
        %1310 = vmatprep.subr.bf16.mxu0 %v1065
        %1311 = vmatpush1.bf16.msra.mxu0 %v1064
        %1312 = vmatprep.subr.bf16.mxu0 %v1069
        %1313 = vmatpush1.bf16.msra.mxu0 %v1068
        %1314 = vmatprep.subr.bf16.mxu0 %v1073
        %1315 = vmatpush1.bf16.msra.mxu0 %v1072
        %1316 = vmatprep.subr.bf16.mxu0 %v1077
        %1317 = vmatpush1.bf16.msra.mxu0 %v1076
        %1318 = vmatprep.subr.bf16.mxu0 %v1081
        %1319 = vmatpush1.bf16.msra.mxu0 %v1080
        %1320 = vmatprep.subr.bf16.mxu0 %v1085
        %1321 = vmatpush1.bf16.msra.mxu0 %v1084
        %1322 = vmatprep.subr.bf16.mxu0 %v1089
        %1323 = vmatpush1.bf16.msra.mxu0 %v1088
        %1324 = vmatprep.subr.bf16.mxu0 %v1093
        %1325 = vmatpush1.bf16.msra.mxu0 %v1092
        %1326 = vmatprep.subr.bf16.mxu0 %v1097
        %1327 = vmatpush1.bf16.msra.mxu0 %v1096
        %1328 = vmatprep.subr.bf16.mxu0 %v1101
        %1329 = vmatpush1.bf16.msra.mxu0 %v1100
        %1330 = vmatprep.subr.bf16.mxu0 %v1105
        %1331 = vmatpush1.bf16.msra.mxu0 %v1104
        %1332 = vmatprep.mubr.bf16.mxu0 %v653
        %1333 = vmatmul.mubr.bf16.gmra.mrb[0].mxu0 %v652
        %v1334 = vpop.f32.mrb[0].mxu0
        %v1335 = vadd.f32 0.0, %v1334
        %v1336 = vpop.f32.mrb[0].mxu0
        %v1337 = vadd.f32 0.0, %v1336
        %v1338 = vpop.f32.mrb[0].mxu0
        %v1339 = vpop.f32.mrb[0].mxu0
        %1340 = vdwg.mxu0
        %1341 = vmatprep.subr.bf16.mxu0 %v1109
        %1342 = vmatpush1.bf16.msra.mxu0 %v1108
        %1343 = vmatprep.subr.bf16.mxu0 %v1113
        %1344 = vmatpush1.bf16.msra.mxu0 %v1112
        %1345 = vmatprep.subr.bf16.mxu0 %v1117
        %1346 = vmatpush1.bf16.msra.mxu0 %v1116
        %1347 = vmatprep.subr.bf16.mxu0 %v1121
        %1348 = vmatpush1.bf16.msra.mxu0 %v1120
        %1349 = vmatprep.subr.bf16.mxu0 %v1125
        %1350 = vmatpush1.bf16.msra.mxu0 %v1124
        %1351 = vmatprep.subr.bf16.mxu0 %v1129
        %1352 = vmatpush1.bf16.msra.mxu0 %v1128
        %1353 = vmatprep.subr.bf16.mxu0 %v1133
        %1354 = vmatpush1.bf16.msra.mxu0 %v1132
        %1355 = vmatprep.subr.bf16.mxu0 %v1137
        %1356 = vmatpush1.bf16.msra.mxu0 %v1136
        %1357 = vmatprep.subr.bf16.mxu0 %v1141
        %1358 = vmatpush1.bf16.msra.mxu0 %v1140
        %1359 = vmatprep.subr.bf16.mxu0 %v1145
        %1360 = vmatpush1.bf16.msra.mxu0 %v1144
        %1361 = vmatprep.subr.bf16.mxu0 %v1149
        %1362 = vmatpush1.bf16.msra.mxu0 %v1148
        %1363 = vmatprep.subr.bf16.mxu0 %v1153
        %1364 = vmatpush1.bf16.msra.mxu0 %v1152
        %1365 = vmatprep.subr.bf16.mxu0 %v1157
        %1366 = vmatpush1.bf16.msra.mxu0 %v1156
        %1367 = vmatprep.subr.bf16.mxu0 %v1161
        %1368 = vmatpush1.bf16.msra.mxu0 %v1160
        %1369 = vmatprep.subr.bf16.mxu0 %v1165
        %1370 = vmatpush1.bf16.msra.mxu0 %v1164
        %1371 = vmatprep.subr.bf16.mxu0 %v1169
        %1372 = vmatpush1.bf16.msra.mxu0 %v1168
        %1373 = vmatprep.mubr.bf16.mxu0 %v655
        %1374 = vmatmul.mubr.bf16.gmra.mrb[0].mxu0 %v654
        %v1375 = vpop.f32.mrb[0].mxu0
        %v1376 = vadd.f32 %v1335, %v1375
        %v1377 = vpop.f32.mrb[0].mxu0
        %v1378 = vadd.f32 %v1337, %v1377
        %v1379 = vpop.f32.mrb[0].mxu0
        %v1380 = vpop.f32.mrb[0].mxu0
        %1381 = vdwg.mxu0
        %1382 = vmatprep.subr.bf16.mxu0 %v1047
        %1383 = vmatpush1.bf16.msra.mxu0 %v1046
        %1384 = vmatprep.subr.bf16.mxu0 %v1051
        %1385 = vmatpush1.bf16.msra.mxu0 %v1050
        %1386 = vmatprep.subr.bf16.mxu0 %v1055
        %1387 = vmatpush1.bf16.msra.mxu0 %v1054
        %1388 = vmatprep.subr.bf16.mxu0 %v1059
        %1389 = vmatpush1.bf16.msra.mxu0 %v1058
        %1390 = vmatprep.subr.bf16.mxu0 %v1063
        %1391 = vmatpush1.bf16.msra.mxu0 %v1062
        %1392 = vmatprep.subr.bf16.mxu0 %v1067
        %1393 = vmatpush1.bf16.msra.mxu0 %v1066
        %1394 = vmatprep.subr.bf16.mxu0 %v1071
        %1395 = vmatpush1.bf16.msra.mxu0 %v1070
        %1396 = vmatprep.subr.bf16.mxu0 %v1075
        %1397 = vmatpush1.bf16.msra.mxu0 %v1074
        %1398 = vmatprep.subr.bf16.mxu0 %v1079
        %1399 = vmatpush1.bf16.msra.mxu0 %v1078
        %1400 = vmatprep.subr.bf16.mxu0 %v1083
        %1401 = vmatpush1.bf16.msra.mxu0 %v1082
        %1402 = vmatprep.subr.bf16.mxu0 %v1087
        %1403 = vmatpush1.bf16.msra.mxu0 %v1086
        %1404 = vmatprep.subr.bf16.mxu0 %v1091
        %1405 = vmatpush1.bf16.msra.mxu0 %v1090
        %1406 = vmatprep.subr.bf16.mxu0 %v1095
        %1407 = vmatpush1.bf16.msra.mxu0 %v1094
        %1408 = vmatprep.subr.bf16.mxu0 %v1099
        %1409 = vmatpush1.bf16.msra.mxu0 %v1098
        %1410 = vmatprep.subr.bf16.mxu0 %v1103
        %1411 = vmatpush1.bf16.msra.mxu0 %v1102
        %1412 = vmatprep.subr.bf16.mxu0 %v1107
        %1413 = vmatpush1.bf16.msra.mxu0 %v1106
        %1414 = vmatprep.mubr.bf16.mxu0 %v653
        %1415 = vmatmul.mubr.bf16.gmra.mrb[0].mxu0 %v652
        %v1416 = vpop.f32.mrb[0].mxu0
        %v1417 = vadd.f32 0.0, %v1416
        %v1418 = vpop.f32.mrb[0].mxu0
        %v1419 = vadd.f32 0.0, %v1418
        %v1420 = vpop.f32.mrb[0].mxu0
        %v1421 = vpop.f32.mrb[0].mxu0
        %1422 = vdwg.mxu0
        %1423 = vmatprep.subr.bf16.mxu0 %v1111
        %1424 = vmatpush1.bf16.msra.mxu0 %v1110
        %1425 = vmatprep.subr.bf16.mxu0 %v1115
        %1426 = vmatpush1.bf16.msra.mxu0 %v1114
        %1427 = vmatprep.subr.bf16.mxu0 %v1119
        %1428 = vmatpush1.bf16.msra.mxu0 %v1118
        %1429 = vmatprep.subr.bf16.mxu0 %v1123
        %1430 = vmatpush1.bf16.msra.mxu0 %v1122
        %1431 = vmatprep.subr.bf16.mxu0 %v1127
        %1432 = vmatpush1.bf16.msra.mxu0 %v1126
        %1433 = vmatprep.subr.bf16.mxu0 %v1131
        %1434 = vmatpush1.bf16.msra.mxu0 %v1130
        %1435 = vmatprep.subr.bf16.mxu0 %v1135
        %1436 = vmatpush1.bf16.msra.mxu0 %v1134
        %1437 = vmatprep.subr.bf16.mxu0 %v1139
        %1438 = vmatpush1.bf16.msra.mxu0 %v1138
        %1439 = vmatprep.subr.bf16.mxu0 %v1143
        %1440 = vmatpush1.bf16.msra.mxu0 %v1142
        %1441 = vmatprep.subr.bf16.mxu0 %v1147
        %1442 = vmatpush1.bf16.msra.mxu0 %v1146
        %1443 = vmatprep.subr.bf16.mxu0 %v1151
        %1444 = vmatpush1.bf16.msra.mxu0 %v1150
        %1445 = vmatprep.subr.bf16.mxu0 %v1155
        %1446 = vmatpush1.bf16.msra.mxu0 %v1154
        %1447 = vmatprep.subr.bf16.mxu0 %v1159
        %1448 = vmatpush1.bf16.msra.mxu0 %v1158
        %1449 = vmatprep.subr.bf16.mxu0 %v1163
        %1450 = vmatpush1.bf16.msra.mxu0 %v1162
        %1451 = vmatprep.subr.bf16.mxu0 %v1167
        %1452 = vmatpush1.bf16.msra.mxu0 %v1166
        %1453 = vmatprep.subr.bf16.mxu0 %v1171
        %1454 = vmatpush1.bf16.msra.mxu0 %v1170
        %1455 = vmatprep.mubr.bf16.mxu0 %v655
        %1456 = vmatmul.mubr.bf16.gmra.mrb[0].mxu0 %v654
        %v1457 = vpop.f32.mrb[0].mxu0
        %v1458 = vadd.f32 %v1417, %v1457
        %v1459 = vpop.f32.mrb[0].mxu0
        %v1460 = vadd.f32 %v1419, %v1459
        %v1461 = vpop.f32.mrb[0].mxu0
        %v1462 = vpop.f32.mrb[0].mxu0
        %1463 = vdwg.mxu0
        %v1464 = vadd.f32 %v512, %v1376
        %v1465 = vadd.f32 %v513, %v1378
        %v1466 = vadd.f32 %v514, %v1458
        %v1467 = vadd.f32 %v515, %v1460
        %1468 = vst [vmem:[#allocation2] sm:$0xff] %v1464
        %1469 = vst [vmem:[#allocation2 + $0x8] sm:$0xff] %v1465
        %1470 = vst [vmem:[#allocation2 + $0x10] sm:$0xff] %v1466
        %1471 = vst [vmem:[#allocation2 + $0x18] sm:$0xff] %v1467
        // Predicated region
        $region60: #{vae_forward.9} parent=50 // pred_check
          %p1472 = pneg %p504
        $region61: #{vae_forward.9} parent=50 // pred_check_branch
          %1474 = sbr.rel (%p1472) target = $region63
        $region62: #{vae_forward.9} parent=50 // pred_region
          %v1475 = vld [vmem:[#allocation2] sm:$0xff]
          %v1476 = vld [vmem:[#allocation2 + $0x8] sm:$0xff]
          %v1477 = vld [vmem:[#allocation2 + $0x10] sm:$0xff]
          %v1478 = vld [vmem:[#allocation2 + $0x18] sm:$0xff]
          %v1479 = vld [vmem:[%s501] sm:$0xf]
          %v1481 = vlaneseq
          %v1482 = vshrl.u32 %v1481, 7
          %v1483 = vsub.s32 0, %v1482
          %v1484 = vrot.slane %v1479, %v1483
          %v1485 = vlaneseq
          %v1486 = vshrl.u32 %v1485, 7
          %v1487 = vsub.s32 1, %v1486
          %v1488 = vrot.slane %v1479, %v1487
          %v1489 = vlaneseq
          %v1490 = vshrl.u32 %v1489, 7
          %v1491 = vsub.s32 2, %v1490
          %v1492 = vrot.slane %v1479, %v1491
          %v1493 = vlaneseq
          %v1494 = vshrl.u32 %v1493, 7
          %v1495 = vsub.s32 3, %v1494
          %v1496 = vrot.slane %v1479, %v1495
          %v1501 = vadd.f32 %v1475, %v1484
          %v1502 = vadd.f32 %v1476, %v1488
          %v1503 = vadd.f32 %v1477, %v1492
          %v1504 = vadd.f32 %v1478, %v1496
          %v1505 = vmul.f32 %v1501, 0.5
          %v1506 = vmul.f32 %v1502, 0.5
          %v1507 = vmul.f32 %v1503, 0.5
          %v1508 = vmul.f32 %v1504, 0.5
          %v1509 = vtanh.pop %v1505
          %v1510 = vtanh.pop %v1506
          %v1511 = vtanh.pop %v1507
          %v1512 = vtanh.pop %v1508
          %v1513 = vadd.f32 %v1509, 1.0
          %v1514 = vadd.f32 %v1510, 1.0
          %v1515 = vadd.f32 %v1511, 1.0
          %v1516 = vadd.f32 %v1512, 1.0
          %v1517 = vmul.f32 %v1513, 0.5
          %v1518 = vmul.f32 %v1514, 0.5
          %v1519 = vmul.f32 %v1515, 0.5
          %v1520 = vmul.f32 %v1516, 0.5
          %1521 = vst [vmem:[%s489] sm:$0xff] %v1517
          %1522 = vst [vmem:[%s489 + $0x8] sm:$0xff] %v1518
          %1523 = vst [vmem:[%s489 + $0x10] sm:$0xff] %v1519
          %1524 = vst [vmem:[%s489 + $0x18] sm:$0xff] %v1520
        $region63: #{vae_forward.9} parent=50 // pred_fallthru
          _
        %s1525 = sand.u32 %s117, 1
        %s1526 = scalar_lea.sflag [#allocation5], %s1525
        %s1527 = sand.u32 %s117, 1
        %s1528 = smul.addr %s1527, 32
        %s1529 = scalar_lea.vmem [#allocation4], %s1528
        // Predicated region
        $region64: #{vae_forward.9} parent=50 // pred_check
          %p1530 = pneg %p127
        $region65: #{vae_forward.9} parent=50 // pred_check_branch
          %1532 = sbr.rel (%p1530) target = $region67
        $region66: #{vae_forward.9} parent=50 // pred_region
          %s1533 = smul.u32 4, %s21
          %s1535 = ssub.s32 512, 512
          %1536 = vsyncadd %s1526, %s1535
          %s1537 = smul.addr %s1533, 128
          %s1538 = scalar_lea.hbm %s3, %s1537
          %s1540 = sshll.u32 %s1529, 4
          %s1541 = int_to_ptr.vmem [resolvable:$true] %s1540
          %1543 = dma.vmem_to_hbm [thread:$0]  %s1541, 512, %s1538, %s1526
        $region67: #{vae_forward.9} parent=50 // pred_fallthru
          _
      $region51: #{vae_forward.9} parent=5 // pred_fallthru
        _
      %p1544 = scmp.le.s32.totalorder 2, %s12
      // Predicated region
      $region68: #{vae_forward.9} parent=5 // pred_check
        %p1545 = pneg %p1544
      $region69: #{vae_forward.9} parent=5 // pred_check_branch
        %1547 = sbr.rel (%p1545) target = $region71
      $region70: #{vae_forward.9} parent=5 // pred_region
        %s1548 = ssub.s32 %s12, 2
        // Predicated region
        $region72: #{vae_forward.9} parent=70 // pred_check
          %p1549 = pneg %p133
        $region73: #{vae_forward.9} parent=70 // pred_check_branch
          %1551 = sbr.rel (%p1549) target = $region75
        $region74: #{vae_forward.9} parent=70 // pred_region
          %s1552 = sand.u32 %s118, 1
          %s1553 = scalar_lea.sflag [#allocation5], %s1552
          %s1554 = sand.u32 %s118, 1
          %s1555 = smul.addr %s1554, 32
          %s1556 = scalar_lea.vmem [#allocation4], %s1555
          %1557 = dma.done %s1553, 512
        $region75: #{vae_forward.9} parent=70 // pred_fallthru
          _
      $region71: #{vae_forward.9} parent=5 // pred_fallthru
        _
    $region6: #{vae_forward.9} parent=1 // loop_footer
      %s16 = sadd.s32 1, %s12
    $region7: #{vae_forward.9} parent=1 // loop_footer_branch
      %11 = sbr.rel target = $region3
    $region8: #{vae_forward.9} parent=1 // loop_exit
      _
    %1558 = vsyncpa [#allocation5], 1
    %s1559 = scalar_lea.sflag [#allocation5], 1
    %1560 = vsyncpa %s1559, 1

</llo_original>
